<compile_context>
chip_gen: v5e
topology: v5e:2x2
jax: 0.10.0
libtpu: 0.0.40
codegen_flags: <defaults>
</compile_context>

<pallas_src>
import jax
import jax.numpy as jnp
from jax.experimental import pallas as pl
from jax.experimental.pallas import tpu as pltpu


# --------------------------------------------------------------------------
# Orthonormal DCT-II basis (matches torch_dct's dct(..., norm='ortho'))
# --------------------------------------------------------------------------
def dct_matrix(n):
    k = jnp.arange(n, dtype=jnp.float32)[:, None]
    i = jnp.arange(n, dtype=jnp.float32)[None, :]
    c = jnp.cos(jnp.pi * (2.0 * i + 1.0) * k / (2.0 * n))
    scale = jnp.where(k == 0, jnp.sqrt(1.0 / n), jnp.sqrt(2.0 / n))
    return (c * scale).astype(jnp.float32)          # y = C @ x along that axis


# --------------------------------------------------------------------------
# Fused kernel: 3-D DCT + two stand-in streams + fusion MLP + temporal pool
# --------------------------------------------------------------------------
def _fused_kernel(x_ref, chwT_ref, ar_ref, af_ref, br_ref, bf_ref,
                  w1_ref, b1_ref, w2_ref, b2_ref, o_ref, y_ref):
    B, CT, P = x_ref.shape          # B samples, 3*T interleaved rows, H*W lanes
    TF = ar_ref.shape[0]            # T * F
    F = br_ref.shape[0]
    T = TF // F
    NC = w2_ref.shape[1]
    inv_p = 1.0 / P
    inv_t = 1.0 / T

    # ---- batched 2-D spatial DCT: one lane-dense (B*3T, HW)@(HW, HW) matmul.
    xall = x_ref[...].reshape(B * CT, P).astype(jnp.bfloat16)
    y_ref[...] = jnp.dot(xall, chwT_ref[...],
                         preferred_element_type=jnp.float32).astype(jnp.bfloat16)

    @pl.loop(0, B)
    def _(b):
        x_b = x_ref[b].astype(jnp.bfloat16)                      # (3T, HW) raw
        row0 = pl.multiple_of(b * CT, 8)
        y_b = y_ref[pl.ds(row0, CT), :]                          # (3T, HW) HW-DCT

        # stream projections (fused with de-interleave / temporal DCT) on MXU;
        # rows ordered (t, f), lanes = pixels.
        pre_r = jnp.dot(ar_ref[...], x_b,
                        preferred_element_type=jnp.float32)      # (T*F, HW)
        pre_f = jnp.dot(af_ref[...], y_b,
                        preferred_element_type=jnp.float32)      # (T*F, HW)
        pre_r = pre_r.reshape(T, F, P) + br_ref[...]             # (F,1) bias bcast
        pre_f = pre_f.reshape(T, F, P) + bf_ref[...]

        # ReLU + spatial mean (lane reduction) -> lane-dense (T, 2F) features
        feat_r = jnp.maximum(pre_r, 0.0).sum(axis=-1) * inv_p    # (T, F)
        feat_f = jnp.maximum(pre_f, 0.0).sum(axis=-1) * inv_p    # (T, F)
        embd = jnp.concatenate([feat_r, feat_f], axis=-1)        # (T, 2F)

        # fusion MLP + temporal average pool (sublane reduce)
        h1 = jnp.maximum(
            jnp.dot(embd, w1_ref[...], preferred_element_type=jnp.float32)
            + b1_ref[...], 0.0)                                  # (T, F)
        logits_t = jnp.dot(h1, w2_ref[...],
                           preferred_element_type=jnp.float32) + b2_ref[...]
        logits = logits_t.sum(axis=0, keepdims=True) * inv_t     # (1, NC)
        o_ref[:, pl.ds(b, 1), :] = logits.reshape(1, 1, NC)


def x3d_2stream_fused(rgb, ops, *, block_n=8):
    """rgb: (N, 3*T, H*W) natural interleaved rows (row = t*3 + c), lane-dense."""
    N, CT, P = rgb.shape
    F = ops["b_rgb"].shape[0]
    NC = ops["w2"].shape[1]
    TF = ops["a_rgb"].shape[0]
    assert CT % 8 == 0, "3*T must be a multiple of 8 for the batched layout"
    # TODO(synk): pad 3*T to a multiple of 8 for clip lengths where it is not.

    B = min(block_n, N)
    nb = pl.cdiv(N, B)
    n_pad = nb * B
    if n_pad != N:
        rgb = jnp.pad(rgb, ((0, n_pad - N), (0, 0), (0, 0)))

    out = pl.pallas_call(
        _fused_kernel,
        out_shape=jax.ShapeDtypeStruct((nb, B, NC), jnp.float32),
        grid=(nb,),
        in_specs=[
            pl.BlockSpec((B, CT, P), lambda g: (g, 0, 0)),   # B samples' volumes
            pl.BlockSpec((P, P), lambda g: (0, 0)),          # kron(Ch, Cw).T   (bf16)
            pl.BlockSpec((TF, CT), lambda g: (0, 0)),        # a_rgb            (bf16)
            pl.BlockSpec((TF, CT), lambda g: (0, 0)),        # a_freq           (bf16)
            pl.BlockSpec((F, 1), lambda g: (0, 0)),          # b_rgb column
            pl.BlockSpec((F, 1), lambda g: (0, 0)),          # b_freq column
            pl.BlockSpec((2 * F, F), lambda g: (0, 0)),      # fusion w1
            pl.BlockSpec((1, F), lambda g: (0, 0)),          # fusion b1
            pl.BlockSpec((F, NC), lambda g: (0, 0)),         # fusion w2
            pl.BlockSpec((1, NC), lambda g: (0, 0)),         # fusion b2
        ],
        out_specs=pl.BlockSpec((1, B, NC), lambda g: (g, 0, 0)),
        scratch_shapes=[pltpu.VMEM((B * CT, P), jnp.bfloat16)],  # spatial-DCT slab
        compiler_params=pltpu.CompilerParams(
            dimension_semantics=("parallel",),       # shard sample blocks across TCs
            vmem_limit_bytes=16 * 1024 * 1024),
        # TODO(synk): at real X3D sizes (H=W~160-224, F=2048) switch to
        #   separable per-axis spatial DCTs and single-buffer the grid-invariant
        #   operands (pl.Buffered(1)); kron(Ch,Cw) grows as (HW)^2 and will not
        #   fit v7x's 64 MiB VMEM.
    )(rgb, ops["chwT"], ops["a_rgb"], ops["a_freq"],
      ops["b_rgb"], ops["b_freq"], ops["w1"], ops["b1"], ops["w2"], ops["b2"])
    return out.reshape(n_pad, NC)[:N]


# --------------------------------------------------------------------------
# Full forward: only a free reshape on the host side (no HBM transpose)
# --------------------------------------------------------------------------
def x3d_2stream_forward(x, ops):
    n, c, h, w = x.shape
    rgb = x.reshape(n, c, h * w)     # rows stay interleaved: row = t*3 + rgb
    return x3d_2stream_fused(rgb, ops)


# --------------------------------------------------------------------------
# Parameters (logical module weights) + kernel-ready fused operands
# --------------------------------------------------------------------------
def init_params(key, feat_dim, num_class):
    ks = jax.random.split(key, 8)
    s = 0.05
    return {
        "w_rgb": s * jax.random.normal(ks[0], (3, feat_dim), jnp.float32),
        "b_rgb": s * jax.random.normal(ks[1], (1, feat_dim), jnp.float32),
        "w_freq": s * jax.random.normal(ks[2], (3, feat_dim), jnp.float32),
        "b_freq": s * jax.random.normal(ks[3], (1, feat_dim), jnp.float32),
        "w1": s * jax.random.normal(ks[4], (2 * feat_dim, feat_dim), jnp.float32),
        "b1": s * jax.random.normal(ks[5], (1, feat_dim), jnp.float32),
        "w2": s * jax.random.normal(ks[6], (feat_dim, num_class), jnp.float32),
        "b2": s * jax.random.normal(ks[7], (1, num_class), jnp.float32),
    }


def pack_operands(raw, t, h, w):
    """Fold DCTs + the 3->F stream projections into MXU-ready (bf16) matrices."""
    chwT = jnp.kron(dct_matrix(h), dct_matrix(w)).T               # (HW, HW)
    ct_i3 = jnp.kron(dct_matrix(t), jnp.eye(3, dtype=jnp.float32))  # T-DCT, interleaved rows
    eye_t = jnp.eye(t, dtype=jnp.float32)
    a_rgb = jnp.kron(eye_t, raw["w_rgb"].T)                       # (T*F, 3T)
    a_freq = jnp.kron(eye_t, raw["w_freq"].T) @ ct_i3             # (T*F, 3T)
    return {
        "chwT": chwT.astype(jnp.bfloat16),
        "a_rgb": a_rgb.astype(jnp.bfloat16),
        "a_freq": a_freq.astype(jnp.bfloat16),
        "b_rgb": raw["b_rgb"].T,                                  # (F, 1)
        "b_freq": raw["b_freq"].T,                                # (F, 1)
        "w1": raw["w1"], "b1": raw["b1"],
        "w2": raw["w2"], "b2": raw["b2"],
    }


# --------------------------------------------------------------------------
# Pure-JAX f32 reference of the stand-in forward (for a loose numeric check)
# --------------------------------------------------------------------------
def reference_forward(x, raw):
    n, c, h, w = x.shape
    t = c // 3
    rgb = jnp.transpose(x.reshape(n, t, 3, h, w), (0, 2, 1, 3, 4))  # (n,3,t,h,w)
    ch, cw, ctm = dct_matrix(h), dct_matrix(w), dct_matrix(t)
    freq = jnp.einsum('ab,ncbhw->ncahw', ctm, rgb)
    freq = jnp.einsum('ab,nctbw->nctaw', ch, freq)
    freq = jnp.einsum('ab,ncthb->nctha', cw, freq)

    def stream(vol, wp, bp):
        pre = jnp.einsum('cf,ncthw->ntfhw', wp, vol) \
            + bp[0][None, None, :, None, None]
        return jnp.maximum(pre, 0.0).mean(axis=(-2, -1))            # (n, t, F)

    fr = stream(rgb, raw["w_rgb"], raw["b_rgb"])
    ff = stream(freq, raw["w_freq"], raw["b_freq"])
    embd = jnp.concatenate([fr, ff], axis=-1)                       # (n, t, 2F)
    h1 = jnp.maximum(embd @ raw["w1"] + raw["b1"], 0.0)
    logits = h1 @ raw["w2"] + raw["b2"]                             # (n, t, NC)
    return logits.mean(axis=1)


if __name__ == "__main__":
    key = jax.random.PRNGKey(0)
    k_in, k_par = jax.random.split(key)

    N, T, H, W = 2, 8, 16, 16          # input channels = 3 * T = 24
    FEAT_DIM = 64                      # stand-in for x3d_s fc_feature_dim (=2048)
    NUM_CLASS = 2

    x = jax.random.normal(k_in, (N, T * 3, H, W), jnp.float32)
    raw = init_params(k_par, FEAT_DIM, NUM_CLASS)
    ops = pack_operands(raw, T, H, W)

    fwd = jax.jit(x3d_2stream_forward)
    out = jax.block_until_ready(fwd(x, ops))

    assert out.shape == (N, NUM_CLASS), out.shape
    assert bool(jnp.all(jnp.isfinite(out)))

    ref = reference_forward(x, raw)
    assert bool(jnp.allclose(out, ref, rtol=2e-2, atol=1e-2)), \
        float(jnp.max(jnp.abs(out - ref)))
    print("KERNEL_OK")
</pallas_src>

<mosaic_0001>
module attributes {stable_mosaic.version = 11 : i64} {
  func.func @_fused_kernel(%arg0: i32, %arg1: memref<2x24x256xf32, #tpu.memory_space<vmem>>, %arg2: memref<256x256xbf16, #tpu.memory_space<vmem>>, %arg3: memref<512x24xbf16, #tpu.memory_space<vmem>>, %arg4: memref<512x24xbf16, #tpu.memory_space<vmem>>, %arg5: memref<64x1xf32, #tpu.memory_space<vmem>>, %arg6: memref<64x1xf32, #tpu.memory_space<vmem>>, %arg7: memref<128x64xf32, #tpu.memory_space<vmem>>, %arg8: memref<1x64xf32, #tpu.memory_space<vmem>>, %arg9: memref<64x2xf32, #tpu.memory_space<vmem>>, %arg10: memref<1x2xf32, #tpu.memory_space<vmem>>, %arg11: memref<1x2x2xf32, #tpu.memory_space<vmem>>, %arg12: memref<48x256xbf16, #tpu.memory_space<vmem>>) attributes {dimension_semantics = [#tpu.dimension_semantics<parallel>], iteration_bounds = array<i64: 1>, scalar_prefetch = 0 : i64, scratch_operands = 1 : i64, tpu.core_type = #tpu.core_type<tc>, window_params = [{transform_indices = @transform_0, window_bounds = array<i64: 2, 24, 256>}, {pipeline_mode = #tpu.pipeline_mode<synchronous>, transform_indices = @transform_1, window_bounds = array<i64: 256, 256>}, {pipeline_mode = #tpu.pipeline_mode<synchronous>, transform_indices = @transform_2, window_bounds = array<i64: 512, 24>}, {pipeline_mode = #tpu.pipeline_mode<synchronous>, transform_indices = @transform_3, window_bounds = array<i64: 512, 24>}, {pipeline_mode = #tpu.pipeline_mode<synchronous>, transform_indices = @transform_4, window_bounds = array<i64: 64, 1>}, {pipeline_mode = #tpu.pipeline_mode<synchronous>, transform_indices = @transform_5, window_bounds = array<i64: 64, 1>}, {pipeline_mode = #tpu.pipeline_mode<synchronous>, transform_indices = @transform_6, window_bounds = array<i64: 128, 64>}, {pipeline_mode = #tpu.pipeline_mode<synchronous>, transform_indices = @transform_7, window_bounds = array<i64: 1, 64>}, {pipeline_mode = #tpu.pipeline_mode<synchronous>, transform_indices = @transform_8, window_bounds = array<i64: 64, 2>}, {pipeline_mode = #tpu.pipeline_mode<synchronous>, transform_indices = @transform_9, window_bounds = array<i64: 1, 2>}, {transform_indices = @transform_10, window_bounds = array<i64: 1, 2, 2>}]} {
    %c0 = arith.constant 0 : index
    %c0_0 = arith.constant 0 : index
    %c0_1 = arith.constant 0 : index
    %0 = vector.load %arg1[%c0, %c0_0, %c0_1] : memref<2x24x256xf32, #tpu.memory_space<vmem>>, vector<2x24x256xf32>
    %1 = vector.shape_cast %0 : vector<2x24x256xf32> to vector<48x256xf32>
    %2 = arith.truncf %1 : vector<48x256xf32> to vector<48x256xbf16>
    %c0_2 = arith.constant 0 : index
    %c0_3 = arith.constant 0 : index
    %3 = vector.load %arg2[%c0_2, %c0_3] : memref<256x256xbf16, #tpu.memory_space<vmem>>, vector<256x256xbf16>
    %cst = arith.constant dense<0.000000e+00> : vector<48x256xf32>
    %4 = tpu.matmul %2, %3, %cst {dimension_numbers = #tpu.dot_dimension_numbers<[1], [0], [0], [1], [0, 0, 1, 1], [], []>} : vector<48x256xbf16>, vector<256x256xbf16>, vector<48x256xf32> -> vector<48x256xf32>
    %5 = arith.truncf %4 : vector<48x256xf32> to vector<48x256xbf16>
    %c0_4 = arith.constant 0 : index
    %c0_5 = arith.constant 0 : index
    %6 = vector.load %arg12[%c0_4, %c0_5] : memref<48x256xbf16, #tpu.memory_space<vmem>>, vector<48x256xbf16>
    tpu.vector_store %arg12[%c0_4, %c0_5], %5 {strides = array<i32>} : memref<48x256xbf16, #tpu.memory_space<vmem>>, vector<48x256xbf16>,
    %c0_i32 = arith.constant 0 : i32
    %c2_i32 = arith.constant 2 : i32
    %7 = arith.addi %c0_i32, %c2_i32 : i32
    %c1_i32 = arith.constant 1 : i32
    scf.for %arg13 = %c0_i32 to %7 step %c1_i32  : i32 {
      %c1_i32_7 = arith.constant 1 : i32
      %8 = arith.muli %arg13, %c1_i32_7 : i32
      %c0_i32_8 = arith.constant 0 : i32
      %9 = arith.addi %c0_i32_8, %8 : i32
      %10 = arith.index_cast %9 : i32 to index
      %c0_9 = arith.constant 0 : index
      %c0_10 = arith.constant 0 : index
      %11 = vector.load %arg1[%10, %c0_9, %c0_10] : memref<2x24x256xf32, #tpu.memory_space<vmem>>, vector<1x24x256xf32>
      %12 = vector.shape_cast %11 : vector<1x24x256xf32> to vector<24x256xf32>
      %13 = arith.truncf %12 : vector<24x256xf32> to vector<24x256xbf16>
      %c24_i32 = arith.constant 24 : i32
      %14 = arith.muli %9, %c24_i32 : i32
      %15 = tpu.assume_multiple %14, 8 : i32
      %16 = arith.index_cast %15 : i32 to index
      %c0_11 = arith.constant 0 : index
      %17 = vector.load %arg12[%16, %c0_11] : memref<48x256xbf16, #tpu.memory_space<vmem>>, vector<24x256xbf16>
      %c0_12 = arith.constant 0 : index
      %c0_13 = arith.constant 0 : index
      %18 = vector.load %arg3[%c0_12, %c0_13] : memref<512x24xbf16, #tpu.memory_space<vmem>>, vector<512x24xbf16>
      %cst_14 = arith.constant dense<0.000000e+00> : vector<512x256xf32>
      %19 = tpu.matmul %18, %13, %cst_14 {dimension_numbers = #tpu.dot_dimension_numbers<[1], [0], [0], [1], [0, 0, 1, 1], [], []>} : vector<512x24xbf16>, vector<24x256xbf16>, vector<512x256xf32> -> vector<512x256xf32>
      %c0_15 = arith.constant 0 : index
      %c0_16 = arith.constant 0 : index
      %20 = vector.load %arg4[%c0_15, %c0_16] : memref<512x24xbf16, #tpu.memory_space<vmem>>, vector<512x24xbf16>
      %cst_17 = arith.constant dense<0.000000e+00> : vector<512x256xf32>
      %21 = tpu.matmul %20, %17, %cst_17 {dimension_numbers = #tpu.dot_dimension_numbers<[1], [0], [0], [1], [0, 0, 1, 1], [], []>} : vector<512x24xbf16>, vector<24x256xbf16>, vector<512x256xf32> -> vector<512x256xf32>
      %22 = vector.shape_cast %19 : vector<512x256xf32> to vector<8x64x256xf32>
      %c0_18 = arith.constant 0 : index
      %c0_19 = arith.constant 0 : index
      %23 = vector.load %arg5[%c0_18, %c0_19] : memref<64x1xf32, #tpu.memory_space<vmem>>, vector<64x1xf32>
      %24 = vector.shape_cast %23 : vector<64x1xf32> to vector<1x64x1xf32>
      %25 = vector.broadcast %24 : vector<1x64x1xf32> to vector<8x64x256xf32>
      %26 = arith.addf %22, %25 : vector<8x64x256xf32>
      %27 = vector.shape_cast %21 : vector<512x256xf32> to vector<8x64x256xf32>
      %c0_20 = arith.constant 0 : index
      %c0_21 = arith.constant 0 : index
      %28 = vector.load %arg6[%c0_20, %c0_21] : memref<64x1xf32, #tpu.memory_space<vmem>>, vector<64x1xf32>
      %29 = vector.shape_cast %28 : vector<64x1xf32> to vector<1x64x1xf32>
      %30 = vector.broadcast %29 : vector<1x64x1xf32> to vector<8x64x256xf32>
      %31 = arith.addf %27, %30 : vector<8x64x256xf32>
      %cst_22 = arith.constant 0.000000e+00 : f32
      %32 = vector.broadcast %cst_22 : f32 to vector<8x64x256xf32>
      %33 = arith.maximumf %26, %32 : vector<8x64x256xf32>
      %cst_23 = arith.constant dense<0.000000e+00> : vector<8x64xf32>
      %34 = vector.multi_reduction <add>, %33, %cst_23 [2] : vector<8x64x256xf32> to vector<8x64xf32>
      %cst_24 = arith.constant 3.906250e-03 : f32
      %35 = vector.broadcast %cst_24 : f32 to vector<8x64xf32>
      %36 = arith.mulf %34, %35 : vector<8x64xf32>
      %cst_25 = arith.constant 0.000000e+00 : f32
      %37 = vector.broadcast %cst_25 : f32 to vector<8x64x256xf32>
      %38 = arith.maximumf %31, %37 : vector<8x64x256xf32>
      %cst_26 = arith.constant dense<0.000000e+00> : vector<8x64xf32>
      %39 = vector.multi_reduction <add>, %38, %cst_26 [2] : vector<8x64x256xf32> to vector<8x64xf32>
      %cst_27 = arith.constant 3.906250e-03 : f32
      %40 = vector.broadcast %cst_27 : f32 to vector<8x64xf32>
      %41 = arith.mulf %39, %40 : vector<8x64xf32>
      %42 = tpu.concatenate %36, %41 in 1 : vector<8x64xf32>, vector<8x64xf32> -> vector<8x128xf32>
      %c0_28 = arith.constant 0 : index
      %c0_29 = arith.constant 0 : index
      %43 = vector.load %arg7[%c0_28, %c0_29] : memref<128x64xf32, #tpu.memory_space<vmem>>, vector<128x64xf32>
      %cst_30 = arith.constant dense<0.000000e+00> : vector<8x64xf32>
      %44 = tpu.matmul %42, %43, %cst_30 {dimension_numbers = #tpu.dot_dimension_numbers<[1], [0], [0], [1], [0, 0, 1, 1], [], []>} : vector<8x128xf32>, vector<128x64xf32>, vector<8x64xf32> -> vector<8x64xf32>
      %c0_31 = arith.constant 0 : index
      %c0_32 = arith.constant 0 : index
      %45 = vector.load %arg8[%c0_31, %c0_32] : memref<1x64xf32, #tpu.memory_space<vmem>>, vector<1x64xf32>
      %46 = vector.broadcast %45 : vector<1x64xf32> to vector<8x64xf32>
      %47 = arith.addf %44, %46 : vector<8x64xf32>
      %cst_33 = arith.constant 0.000000e+00 : f32
      %48 = vector.broadcast %cst_33 : f32 to vector<8x64xf32>
      %49 = arith.maximumf %47, %48 : vector<8x64xf32>
      %c0_34 = arith.constant 0 : index
      %c0_35 = arith.constant 0 : index
      %50 = vector.load %arg9[%c0_34, %c0_35] : memref<64x2xf32, #tpu.memory_space<vmem>>, vector<64x2xf32>
      %cst_36 = arith.constant dense<0.000000e+00> : vector<8x2xf32>
      %51 = tpu.matmul %49, %50, %cst_36 {dimension_numbers = #tpu.dot_dimension_numbers<[1], [0], [0], [1], [0, 0, 1, 1], [], []>} : vector<8x64xf32>, vector<64x2xf32>, vector<8x2xf32> -> vector<8x2xf32>
      %c0_37 = arith.constant 0 : index
      %c0_38 = arith.constant 0 : index
      %52 = vector.load %arg10[%c0_37, %c0_38] : memref<1x2xf32, #tpu.memory_space<vmem>>, vector<1x2xf32>
      %53 = vector.broadcast %52 : vector<1x2xf32> to vector<8x2xf32>
      %54 = arith.addf %51, %53 : vector<8x2xf32>
      %cst_39 = arith.constant dense<0.000000e+00> : vector<2xf32>
      %55 = vector.multi_reduction <add>, %54, %cst_39 [0] : vector<8x2xf32> to vector<2xf32>
      %56 = vector.shape_cast %55 : vector<2xf32> to vector<1x2xf32>
      %cst_40 = arith.constant 1.250000e-01 : f32
      %57 = vector.broadcast %cst_40 : f32 to vector<1x2xf32>
      %58 = arith.mulf %56, %57 : vector<1x2xf32>
      %59 = vector.shape_cast %58 : vector<1x2xf32> to vector<1x1x2xf32>
      %c0_41 = arith.constant 0 : index
      %60 = arith.index_cast %9 : i32 to index
      %c0_42 = arith.constant 0 : index
      %61 = vector.load %arg11[%c0_41, %60, %c0_42] : memref<1x2x2xf32, #tpu.memory_space<vmem>>, vector<1x1x2xf32>
      tpu.vector_store %arg11[%c0_41, %60, %c0_42], %59 {strides = array<i32>} : memref<1x2x2xf32, #tpu.memory_space<vmem>>, vector<1x1x2xf32>,
    }
    %c2_i32_6 = arith.constant 2 : i32
    return
  }
  func.func @transform_0(%arg0: i32) -> (i32, i32, i32) {
    %c0_i32 = arith.constant 0 : i32
    %c0_i32_0 = arith.constant 0 : i32
    %c0_i32_1 = arith.constant 0 : i32
    return %arg0, %c0_i32, %c0_i32_0 : i32, i32, i32
  }
  func.func @transform_1(%arg0: i32) -> (i32, i32) {
    %c0_i32 = arith.constant 0 : i32
    %c0_i32_0 = arith.constant 0 : i32
    %c0_i32_1 = arith.constant 0 : i32
    return %c0_i32, %c0_i32_0 : i32, i32
  }
  func.func @transform_2(%arg0: i32) -> (i32, i32) {
    %c0_i32 = arith.constant 0 : i32
    %c0_i32_0 = arith.constant 0 : i32
    %c0_i32_1 = arith.constant 0 : i32
    return %c0_i32, %c0_i32_0 : i32, i32
  }
  func.func @transform_3(%arg0: i32) -> (i32, i32) {
    %c0_i32 = arith.constant 0 : i32
    %c0_i32_0 = arith.constant 0 : i32
    %c0_i32_1 = arith.constant 0 : i32
    return %c0_i32, %c0_i32_0 : i32, i32
  }
  func.func @transform_4(%arg0: i32) -> (i32, i32) {
    %c0_i32 = arith.constant 0 : i32
    %c0_i32_0 = arith.constant 0 : i32
    %c0_i32_1 = arith.constant 0 : i32
    return %c0_i32, %c0_i32_0 : i32, i32
  }
  func.func @transform_5(%arg0: i32) -> (i32, i32) {
    %c0_i32 = arith.constant 0 : i32
    %c0_i32_0 = arith.constant 0 : i32
    %c0_i32_1 = arith.constant 0 : i32
    return %c0_i32, %c0_i32_0 : i32, i32
  }
  func.func @transform_6(%arg0: i32) -> (i32, i32) {
    %c0_i32 = arith.constant 0 : i32
    %c0_i32_0 = arith.constant 0 : i32
    %c0_i32_1 = arith.constant 0 : i32
    return %c0_i32, %c0_i32_0 : i32, i32
  }
  func.func @transform_7(%arg0: i32) -> (i32, i32) {
    %c0_i32 = arith.constant 0 : i32
    %c0_i32_0 = arith.constant 0 : i32
    %c0_i32_1 = arith.constant 0 : i32
    return %c0_i32, %c0_i32_0 : i32, i32
  }
  func.func @transform_8(%arg0: i32) -> (i32, i32) {
    %c0_i32 = arith.constant 0 : i32
    %c0_i32_0 = arith.constant 0 : i32
    %c0_i32_1 = arith.constant 0 : i32
    return %c0_i32, %c0_i32_0 : i32, i32
  }
  func.func @transform_9(%arg0: i32) -> (i32, i32) {
    %c0_i32 = arith.constant 0 : i32
    %c0_i32_0 = arith.constant 0 : i32
    %c0_i32_1 = arith.constant 0 : i32
    return %c0_i32, %c0_i32_0 : i32, i32
  }
  func.func @transform_10(%arg0: i32) -> (i32, i32, i32) {
    %c0_i32 = arith.constant 0 : i32
    %c0_i32_0 = arith.constant 0 : i32
    %c0_i32_1 = arith.constant 0 : i32
    return %arg0, %c0_i32, %c0_i32_0 : i32, i32, i32
  }
}

</mosaic_0001>

<llo_original>
// kernel: x3d_2stream_forward.1
$region0: #{x3d_2stream_forward.1}
  #allocation0 [shape = 'u32[]', space=smem, size = 0x4, offset = 0x4, fixed_abs, tag = 'smem constant byte address 0x4 - core index']
  #allocation1 [shape = 'u32[72,128]{1,0:T(1,128)}', space=vmem, size = 0x9000, scoped, tag = 'internal scratch']
  #allocation2 [shape = 'bf16[48,256]{1,0:T(8,128)(2,1)}', space=vmem, size = 0x6000, scoped, tag = 'scratch operand']
  %s0 = inlined_call_operand.vmem [shape: f32[2,24,256], index: 0, kind: input, shape index: {}]
  %s1 = inlined_call_operand.vmem [shape: bf16[256,256], index: 1, kind: input, shape index: {}]
  %s2 = inlined_call_operand.vmem [shape: bf16[512,24], index: 2, kind: input, shape index: {}]
  %s3 = inlined_call_operand.vmem [shape: bf16[512,24], index: 3, kind: input, shape index: {}]
  %s4 = inlined_call_operand.vmem [shape: f32[64,1], index: 4, kind: input, shape index: {}]
  %s5 = inlined_call_operand.vmem [shape: f32[64,1], index: 5, kind: input, shape index: {}]
  %s6 = inlined_call_operand.vmem [shape: f32[128,64], index: 6, kind: input, shape index: {}]
  %s7 = inlined_call_operand.vmem [shape: f32[1,64], index: 7, kind: input, shape index: {}]
  %s8 = inlined_call_operand.vmem [shape: f32[64,2], index: 8, kind: input, shape index: {}]
  %s9 = inlined_call_operand.vmem [shape: f32[1,2], index: 9, kind: input, shape index: {}]
  %s10 = inlined_call_operand.hbm [shape: f32[1,2,2], index: 10, kind: output, shape index: {}]
  %s11 = sld [smem:[#allocation0]]
  $region57: #{x3d_2stream_forward.1} parent=0
    _
  %s13 = ssub.s32 1, %s11
  %s14 = scalar_select 0, %s13, %s11
  $region1: #{x3d_2stream_forward.1} parent=0
    #allocation3 [shape = 'u8[1024]{0}', space=vmem, size = 0x400, scoped, tag = 'output window, operand 0, single buffered']
    #allocation4 [shape = 's32[1]{0}', space=sflag, size = 0x4, scoped, tag = 'scoped memory for x3d_2stream_forward.1']
    %15 = vsyncpa [#allocation4], 0
    // Predicated region
    $region2: #{x3d_2stream_forward.1} parent=1 // pred_check
      _
    $region3: #{x3d_2stream_forward.1} parent=1 // pred_check_branch
      %17 = sbr.rel (0) target = $region5
    $region4: #{x3d_2stream_forward.1} parent=1 // pred_region
      _
    $region5: #{x3d_2stream_forward.1} parent=1 // pred_fallthru
      _
    // Predicated region
    $region6: #{x3d_2stream_forward.1} parent=1 // pred_check
      _
    $region7: #{x3d_2stream_forward.1} parent=1 // pred_check_branch
      %19 = sbr.rel (0) target = $region9
    $region8: #{x3d_2stream_forward.1} parent=1 // pred_region
      _
    $region9: #{x3d_2stream_forward.1} parent=1 // pred_fallthru
      _
    // Predicated region
    $region10: #{x3d_2stream_forward.1} parent=1 // pred_check
      _
    $region11: #{x3d_2stream_forward.1} parent=1 // pred_check_branch
      %21 = sbr.rel (0) target = $region13
    $region12: #{x3d_2stream_forward.1} parent=1 // pred_region
      _
    $region13: #{x3d_2stream_forward.1} parent=1 // pred_fallthru
      _
    // Predicated region
    $region14: #{x3d_2stream_forward.1} parent=1 // pred_check
      _
    $region15: #{x3d_2stream_forward.1} parent=1 // pred_check_branch
      %23 = sbr.rel (0) target = $region17
    $region16: #{x3d_2stream_forward.1} parent=1 // pred_region
      _
    $region17: #{x3d_2stream_forward.1} parent=1 // pred_fallthru
      _
    // Predicated region
    $region18: #{x3d_2stream_forward.1} parent=1 // pred_check
      _
    $region19: #{x3d_2stream_forward.1} parent=1 // pred_check_branch
      %25 = sbr.rel (0) target = $region21
    $region20: #{x3d_2stream_forward.1} parent=1 // pred_region
      _
    $region21: #{x3d_2stream_forward.1} parent=1 // pred_fallthru
      _
    // Predicated region
    $region22: #{x3d_2stream_forward.1} parent=1 // pred_check
      _
    $region23: #{x3d_2stream_forward.1} parent=1 // pred_check_branch
      %27 = sbr.rel (0) target = $region25
    $region24: #{x3d_2stream_forward.1} parent=1 // pred_region
      _
    $region25: #{x3d_2stream_forward.1} parent=1 // pred_fallthru
      _
    // Predicated region
    $region26: #{x3d_2stream_forward.1} parent=1 // pred_check
      _
    $region27: #{x3d_2stream_forward.1} parent=1 // pred_check_branch
      %29 = sbr.rel (0) target = $region29
    $region28: #{x3d_2stream_forward.1} parent=1 // pred_region
      _
    $region29: #{x3d_2stream_forward.1} parent=1 // pred_fallthru
      _
    // Predicated region
    $region30: #{x3d_2stream_forward.1} parent=1 // pred_check
      _
    $region31: #{x3d_2stream_forward.1} parent=1 // pred_check_branch
      %31 = sbr.rel (0) target = $region33
    $region32: #{x3d_2stream_forward.1} parent=1 // pred_region
      _
    $region33: #{x3d_2stream_forward.1} parent=1 // pred_fallthru
      _
    // Predicated region
    $region34: #{x3d_2stream_forward.1} parent=1 // pred_check
      _
    $region35: #{x3d_2stream_forward.1} parent=1 // pred_check_branch
      %33 = sbr.rel (0) target = $region37
    $region36: #{x3d_2stream_forward.1} parent=1 // pred_region
      _
    $region37: #{x3d_2stream_forward.1} parent=1 // pred_fallthru
      _
    // Predicated region
    $region38: #{x3d_2stream_forward.1} parent=1 // pred_check
      _
    $region39: #{x3d_2stream_forward.1} parent=1 // pred_check_branch
      %35 = sbr.rel (0) target = $region41
    $region40: #{x3d_2stream_forward.1} parent=1 // pred_region
      _
    $region41: #{x3d_2stream_forward.1} parent=1 // pred_fallthru
      _
    %v37 = vld [vmem:[%s0] sm:$0xff]
    %v38 = vld [vmem:[%s0 + $0x8] sm:$0xff]
    %v39 = vld [vmem:[%s0 + $0x10] sm:$0xff]
    %v40 = vld [vmem:[%s0 + $0x18] sm:$0xff]
    %v41 = vld [vmem:[%s0 + $0x20] sm:$0xff]
    %v42 = vld [vmem:[%s0 + $0x28] sm:$0xff]
    %v43 = vld [vmem:[%s0 + $0x30] sm:$0xff]
    %v44 = vld [vmem:[%s0 + $0x38] sm:$0xff]
    %v45 = vld [vmem:[%s0 + $0x40] sm:$0xff]
    %v46 = vld [vmem:[%s0 + $0x48] sm:$0xff]
    %v47 = vld [vmem:[%s0 + $0x50] sm:$0xff]
    %v48 = vld [vmem:[%s0 + $0x58] sm:$0xff]
    %v49 = vpack.c.bf16 %v39, %v37
    %v50 = vpack.c.bf16 %v40, %v38
    %v51 = vpack.c.bf16 %v43, %v41
    %v52 = vpack.c.bf16 %v44, %v42
    %v53 = vpack.c.bf16 %v47, %v45
    %v54 = vpack.c.bf16 %v48, %v46
    %v55 = vld [vmem:[%s1] sm:$0xff]
    %v56 = vld [vmem:[%s1 + $0x8] sm:$0xff]
    %v57 = vld [vmem:[%s1 + $0x10] sm:$0xff]
    %v58 = vld [vmem:[%s1 + $0x18] sm:$0xff]
    %v59 = vld [vmem:[%s1 + $0x20] sm:$0xff]
    %v60 = vld [vmem:[%s1 + $0x28] sm:$0xff]
    %v61 = vld [vmem:[%s1 + $0x30] sm:$0xff]
    %v62 = vld [vmem:[%s1 + $0x38] sm:$0xff]
    %v63 = vld [vmem:[%s1 + $0x40] sm:$0xff]
    %v64 = vld [vmem:[%s1 + $0x48] sm:$0xff]
    %v65 = vld [vmem:[%s1 + $0x50] sm:$0xff]
    %v66 = vld [vmem:[%s1 + $0x58] sm:$0xff]
    %v67 = vld [vmem:[%s1 + $0x60] sm:$0xff]
    %v68 = vld [vmem:[%s1 + $0x68] sm:$0xff]
    %v69 = vld [vmem:[%s1 + $0x70] sm:$0xff]
    %v70 = vld [vmem:[%s1 + $0x78] sm:$0xff]
    %v71 = vld [vmem:[%s1 + $0x80] sm:$0xff]
    %v72 = vld [vmem:[%s1 + $0x88] sm:$0xff]
    %v73 = vld [vmem:[%s1 + $0x90] sm:$0xff]
    %v74 = vld [vmem:[%s1 + $0x98] sm:$0xff]
    %v75 = vld [vmem:[%s1 + $0xa0] sm:$0xff]
    %v76 = vld [vmem:[%s1 + $0xa8] sm:$0xff]
    %v77 = vld [vmem:[%s1 + $0xb0] sm:$0xff]
    %v78 = vld [vmem:[%s1 + $0xb8] sm:$0xff]
    %v79 = vld [vmem:[%s1 + $0xc0] sm:$0xff]
    %v80 = vld [vmem:[%s1 + $0xc8] sm:$0xff]
    %v81 = vld [vmem:[%s1 + $0xd0] sm:$0xff]
    %v82 = vld [vmem:[%s1 + $0xd8] sm:$0xff]
    %v83 = vld [vmem:[%s1 + $0xe0] sm:$0xff]
    %v84 = vld [vmem:[%s1 + $0xe8] sm:$0xff]
    %v85 = vld [vmem:[%s1 + $0xf0] sm:$0xff]
    %v86 = vld [vmem:[%s1 + $0xf8] sm:$0xff]
    %v119 = vunpack.c.l.b16 %v55
    %v120 = vunpack.c.h.b16 %v55
    %v121 = vunpack.c.l.b16 %v56
    %v122 = vunpack.c.h.b16 %v56
    %v123 = vunpack.c.l.b16 %v57
    %v124 = vunpack.c.h.b16 %v57
    %v125 = vunpack.c.l.b16 %v58
    %v126 = vunpack.c.h.b16 %v58
    %v127 = vunpack.c.l.b16 %v59
    %v128 = vunpack.c.h.b16 %v59
    %v129 = vunpack.c.l.b16 %v60
    %v130 = vunpack.c.h.b16 %v60
    %v131 = vunpack.c.l.b16 %v61
    %v132 = vunpack.c.h.b16 %v61
    %v133 = vunpack.c.l.b16 %v62
    %v134 = vunpack.c.h.b16 %v62
    %v135 = vunpack.c.l.b16 %v63
    %v136 = vunpack.c.h.b16 %v63
    %v137 = vunpack.c.l.b16 %v64
    %v138 = vunpack.c.h.b16 %v64
    %v139 = vunpack.c.l.b16 %v65
    %v140 = vunpack.c.h.b16 %v65
    %v141 = vunpack.c.l.b16 %v66
    %v142 = vunpack.c.h.b16 %v66
    %v143 = vunpack.c.l.b16 %v67
    %v144 = vunpack.c.h.b16 %v67
    %v145 = vunpack.c.l.b16 %v68
    %v146 = vunpack.c.h.b16 %v68
    %v147 = vunpack.c.l.b16 %v69
    %v148 = vunpack.c.h.b16 %v69
    %v149 = vunpack.c.l.b16 %v70
    %v150 = vunpack.c.h.b16 %v70
    %v151 = vunpack.c.l.b16 %v71
    %v152 = vunpack.c.h.b16 %v71
    %v153 = vunpack.c.l.b16 %v72
    %v154 = vunpack.c.h.b16 %v72
    %v155 = vunpack.c.l.b16 %v73
    %v156 = vunpack.c.h.b16 %v73
    %v157 = vunpack.c.l.b16 %v74
    %v158 = vunpack.c.h.b16 %v74
    %v159 = vunpack.c.l.b16 %v75
    %v160 = vunpack.c.h.b16 %v75
    %v161 = vunpack.c.l.b16 %v76
    %v162 = vunpack.c.h.b16 %v76
    %v163 = vunpack.c.l.b16 %v77
    %v164 = vunpack.c.h.b16 %v77
    %v165 = vunpack.c.l.b16 %v78
    %v166 = vunpack.c.h.b16 %v78
    %v167 = vunpack.c.l.b16 %v79
    %v168 = vunpack.c.h.b16 %v79
    %v169 = vunpack.c.l.b16 %v80
    %v170 = vunpack.c.h.b16 %v80
    %v171 = vunpack.c.l.b16 %v81
    %v172 = vunpack.c.h.b16 %v81
    %v173 = vunpack.c.l.b16 %v82
    %v174 = vunpack.c.h.b16 %v82
    %v175 = vunpack.c.l.b16 %v83
    %v176 = vunpack.c.h.b16 %v83
    %v177 = vunpack.c.l.b16 %v84
    %v178 = vunpack.c.h.b16 %v84
    %v179 = vunpack.c.l.b16 %v85
    %v180 = vunpack.c.h.b16 %v85
    %v181 = vunpack.c.l.b16 %v86
    %v182 = vunpack.c.h.b16 %v86
    %v183 = vpack.c.b16 %v121, %v119
    %v184 = vpack.c.b16 %v122, %v120
    %v185 = vpack.c.b16 %v125, %v123
    %v186 = vpack.c.b16 %v126, %v124
    %v187 = vpack.c.b16 %v129, %v127
    %v188 = vpack.c.b16 %v130, %v128
    %v189 = vpack.c.b16 %v133, %v131
    %v190 = vpack.c.b16 %v134, %v132
    %v191 = vpack.c.b16 %v137, %v135
    %v192 = vpack.c.b16 %v138, %v136
    %v193 = vpack.c.b16 %v141, %v139
    %v194 = vpack.c.b16 %v142, %v140
    %v195 = vpack.c.b16 %v145, %v143
    %v196 = vpack.c.b16 %v146, %v144
    %v197 = vpack.c.b16 %v149, %v147
    %v198 = vpack.c.b16 %v150, %v148
    %v199 = vpack.c.b16 %v153, %v151
    %v200 = vpack.c.b16 %v154, %v152
    %v201 = vpack.c.b16 %v157, %v155
    %v202 = vpack.c.b16 %v158, %v156
    %v203 = vpack.c.b16 %v161, %v159
    %v204 = vpack.c.b16 %v162, %v160
    %v205 = vpack.c.b16 %v165, %v163
    %v206 = vpack.c.b16 %v166, %v164
    %v207 = vpack.c.b16 %v169, %v167
    %v208 = vpack.c.b16 %v170, %v168
    %v209 = vpack.c.b16 %v173, %v171
    %v210 = vpack.c.b16 %v174, %v172
    %v211 = vpack.c.b16 %v177, %v175
    %v212 = vpack.c.b16 %v178, %v176
    %v213 = vpack.c.b16 %v181, %v179
    %v214 = vpack.c.b16 %v182, %v180
    %247 = vmatpush.bf16.msra.mxu0 %v197
    %248 = vmatpush.bf16.msra.mxu0 %v195
    %249 = vmatpush.bf16.msra.mxu0 %v193
    %250 = vmatpush.bf16.msra.mxu0 %v191
    %251 = vmatpush.bf16.msra.mxu0 %v189
    %252 = vmatpush.bf16.msra.mxu0 %v187
    %253 = vmatpush.bf16.msra.mxu0 %v185
    %254 = vmatpush.bf16.msra.mxu0 %v183
    %255 = vmatmul.bf16.gmra.mxu0 %v49
    %v256 = vpop.f32.mrf.mxu0
    %v257 = vadd.f32 0.0, %v256
    %v258 = vpop.f32.mrf.mxu0
    %v259 = vadd.f32 0.0, %v258
    %260 = vmatmul.bf16.gmra.mxu0 %v51
    %v261 = vpop.f32.mrf.mxu0
    %v262 = vadd.f32 0.0, %v261
    %v263 = vpop.f32.mrf.mxu0
    %v264 = vadd.f32 0.0, %v263
    %265 = vmatmul.bf16.gmra.mxu0 %v53
    %v266 = vpop.f32.mrf.mxu0
    %v267 = vadd.f32 0.0, %v266
    %v268 = vpop.f32.mrf.mxu0
    %v269 = vadd.f32 0.0, %v268
    %270 = vdwg.mxu0
    %271 = vmatpush.bf16.msra.mxu0 %v213
    %272 = vmatpush.bf16.msra.mxu0 %v211
    %273 = vmatpush.bf16.msra.mxu0 %v209
    %274 = vmatpush.bf16.msra.mxu0 %v207
    %275 = vmatpush.bf16.msra.mxu0 %v205
    %276 = vmatpush.bf16.msra.mxu0 %v203
    %277 = vmatpush.bf16.msra.mxu0 %v201
    %278 = vmatpush.bf16.msra.mxu0 %v199
    %279 = vmatmul.bf16.gmra.mxu0 %v50
    %v280 = vpop.f32.mrf.mxu0
    %v281 = vadd.f32 %v257, %v280
    %v282 = vpop.f32.mrf.mxu0
    %v283 = vadd.f32 %v259, %v282
    %284 = vmatmul.bf16.gmra.mxu0 %v52
    %v285 = vpop.f32.mrf.mxu0
    %v286 = vadd.f32 %v262, %v285
    %v287 = vpop.f32.mrf.mxu0
    %v288 = vadd.f32 %v264, %v287
    %289 = vmatmul.bf16.gmra.mxu0 %v54
    %v290 = vpop.f32.mrf.mxu0
    %v291 = vadd.f32 %v267, %v290
    %v292 = vpop.f32.mrf.mxu0
    %v293 = vadd.f32 %v269, %v292
    %294 = vdwg.mxu0
    %295 = vmatpush.bf16.msra.mxu0 %v198
    %296 = vmatpush.bf16.msra.mxu0 %v196
    %297 = vmatpush.bf16.msra.mxu0 %v194
    %298 = vmatpush.bf16.msra.mxu0 %v192
    %299 = vmatpush.bf16.msra.mxu0 %v190
    %300 = vmatpush.bf16.msra.mxu0 %v188
    %301 = vmatpush.bf16.msra.mxu0 %v186
    %302 = vmatpush.bf16.msra.mxu0 %v184
    %303 = vmatmul.bf16.gmra.mxu0 %v49
    %v304 = vpop.f32.mrf.mxu0
    %v305 = vadd.f32 0.0, %v304
    %v306 = vpop.f32.mrf.mxu0
    %v307 = vadd.f32 0.0, %v306
    %308 = vmatmul.bf16.gmra.mxu0 %v51
    %v309 = vpop.f32.mrf.mxu0
    %v310 = vadd.f32 0.0, %v309
    %v311 = vpop.f32.mrf.mxu0
    %v312 = vadd.f32 0.0, %v311
    %313 = vmatmul.bf16.gmra.mxu0 %v53
    %v314 = vpop.f32.mrf.mxu0
    %v315 = vadd.f32 0.0, %v314
    %v316 = vpop.f32.mrf.mxu0
    %v317 = vadd.f32 0.0, %v316
    %318 = vdwg.mxu0
    %319 = vmatpush.bf16.msra.mxu0 %v214
    %320 = vmatpush.bf16.msra.mxu0 %v212
    %321 = vmatpush.bf16.msra.mxu0 %v210
    %322 = vmatpush.bf16.msra.mxu0 %v208
    %323 = vmatpush.bf16.msra.mxu0 %v206
    %324 = vmatpush.bf16.msra.mxu0 %v204
    %325 = vmatpush.bf16.msra.mxu0 %v202
    %326 = vmatpush.bf16.msra.mxu0 %v200
    %327 = vmatmul.bf16.gmra.mxu0 %v50
    %v328 = vpop.f32.mrf.mxu0
    %v329 = vadd.f32 %v305, %v328
    %v330 = vpop.f32.mrf.mxu0
    %v331 = vadd.f32 %v307, %v330
    %332 = vmatmul.bf16.gmra.mxu0 %v52
    %v333 = vpop.f32.mrf.mxu0
    %v334 = vadd.f32 %v310, %v333
    %v335 = vpop.f32.mrf.mxu0
    %v336 = vadd.f32 %v312, %v335
    %337 = vmatmul.bf16.gmra.mxu0 %v54
    %v338 = vpop.f32.mrf.mxu0
    %v339 = vadd.f32 %v315, %v338
    %v340 = vpop.f32.mrf.mxu0
    %v341 = vadd.f32 %v317, %v340
    %342 = vdwg.mxu0
    %v343 = vpack.c.bf16 %v329, %v281
    %v344 = vpack.c.bf16 %v331, %v283
    %v345 = vpack.c.bf16 %v334, %v286
    %v346 = vpack.c.bf16 %v336, %v288
    %v347 = vpack.c.bf16 %v339, %v291
    %v348 = vpack.c.bf16 %v341, %v293
    %349 = vst [vmem:[#allocation2] sm:$0xff] %v343
    %350 = vst [vmem:[#allocation2 + $0x8] sm:$0xff] %v344
    %351 = vst [vmem:[#allocation2 + $0x10] sm:$0xff] %v345
    %352 = vst [vmem:[#allocation2 + $0x18] sm:$0xff] %v346
    %353 = vst [vmem:[#allocation2 + $0x20] sm:$0xff] %v347
    %354 = vst [vmem:[#allocation2 + $0x28] sm:$0xff] %v348
    loop: start=0, step=1, limit=2
    $region42: #{x3d_2stream_forward.1} parent=1 // loop_pre_header
      _
    $region43: #{x3d_2stream_forward.1} parent=1 // loop_header
      %s356 = sphi 0, %s360
      %p357 = scmp.ge.s32.totalorder %s356, 2
    $region44: #{x3d_2stream_forward.1} parent=1 // loop_header_branch
      %359 = sbr.rel (%p357) target = $region48
    $region45: #{x3d_2stream_forward.1} parent=1 // loop_body
      %s361 = smul.u32 %s356, 6
      %s362 = smul.addr %s361, 8
      %s363 = scalar_lea.vmem %s0, %s362
      %v364 = vld [vmem:[%s363] sm:$0xff]
      %v365 = vld [vmem:[%s363 + $0x8] sm:$0xff]
      %v366 = vld [vmem:[%s363 + $0x10] sm:$0xff]
      %v367 = vld [vmem:[%s363 + $0x18] sm:$0xff]
      %v368 = vld [vmem:[%s363 + $0x20] sm:$0xff]
      %v369 = vld [vmem:[%s363 + $0x28] sm:$0xff]
      %v370 = vpack.c.bf16 %v366, %v364
      %v371 = vpack.c.bf16 %v367, %v365
      %v372 = vpack.c.bf16 %v368, %v368
      %v373 = vpack.c.bf16 %v369, %v369
      %s374 = smul.u32 %s356, 24
      %s375 = sshra.s32 %s374, 3
      %s376 = sand.u32 %s374, 7
      %s377 = smul.u32 %s375, 2
      %s378 = smul.addr %s377, 4
      %s379 = scalar_lea.vmem [#allocation2], %s378
      %v380 = vld [vmem:[%s379] sm:$0xff]
      %v381 = vld [vmem:[%s379 + $0x8] sm:$0xff]
      %v382 = vld [vmem:[%s379 + $0x10] sm:$0xff]
      %v383 = vld [vmem:[%s2] sm:$0xf]
      %v384 = vld [vmem:[%s2 + $0x4] sm:$0xf]
      %v385 = vld [vmem:[%s2 + $0x8] sm:$0xf]
      %v386 = vld [vmem:[%s2 + $0xc] sm:$0xf]
      %v387 = vld [vmem:[%s2 + $0x10] sm:$0xf]
      %v388 = vld [vmem:[%s2 + $0x14] sm:$0xf]
      %v389 = vld [vmem:[%s2 + $0x18] sm:$0xf]
      %v390 = vld [vmem:[%s2 + $0x1c] sm:$0xf]
      %v391 = vld [vmem:[%s2 + $0x20] sm:$0xf]
      %v392 = vld [vmem:[%s2 + $0x24] sm:$0xf]
      %v393 = vld [vmem:[%s2 + $0x28] sm:$0xf]
      %v394 = vld [vmem:[%s2 + $0x2c] sm:$0xf]
      %v395 = vld [vmem:[%s2 + $0x30] sm:$0xf]
      %v396 = vld [vmem:[%s2 + $0x34] sm:$0xf]
      %v397 = vld [vmem:[%s2 + $0x38] sm:$0xf]
      %v398 = vld [vmem:[%s2 + $0x3c] sm:$0xf]
      %v399 = vld [vmem:[%s2 + $0x40] sm:$0xf]
      %v400 = vld [vmem:[%s2 + $0x44] sm:$0xf]
      %v401 = vld [vmem:[%s2 + $0x48] sm:$0xf]
      %v402 = vld [vmem:[%s2 + $0x4c] sm:$0xf]
      %v403 = vld [vmem:[%s2 + $0x50] sm:$0xf]
      %v404 = vld [vmem:[%s2 + $0x54] sm:$0xf]
      %v405 = vld [vmem:[%s2 + $0x58] sm:$0xf]
      %v406 = vld [vmem:[%s2 + $0x5c] sm:$0xf]
      %v407 = vld [vmem:[%s2 + $0x60] sm:$0xf]
      %v408 = vld [vmem:[%s2 + $0x64] sm:$0xf]
      %v409 = vld [vmem:[%s2 + $0x68] sm:$0xf]
      %v410 = vld [vmem:[%s2 + $0x6c] sm:$0xf]
      %v411 = vld [vmem:[%s2 + $0x70] sm:$0xf]
      %v412 = vld [vmem:[%s2 + $0x74] sm:$0xf]
      %v413 = vld [vmem:[%s2 + $0x78] sm:$0xf]
      %v414 = vld [vmem:[%s2 + $0x7c] sm:$0xf]
      %v415 = vld [vmem:[%s2 + $0x80] sm:$0xf]
      %v416 = vld [vmem:[%s2 + $0x84] sm:$0xf]
      %v417 = vld [vmem:[%s2 + $0x88] sm:$0xf]
      %v418 = vld [vmem:[%s2 + $0x8c] sm:$0xf]
      %v419 = vld [vmem:[%s2 + $0x90] sm:$0xf]
      %v420 = vld [vmem:[%s2 + $0x94] sm:$0xf]
      %v421 = vld [vmem:[%s2 + $0x98] sm:$0xf]
      %v422 = vld [vmem:[%s2 + $0x9c] sm:$0xf]
      %v423 = vld [vmem:[%s2 + $0xa0] sm:$0xf]
      %v424 = vld [vmem:[%s2 + $0xa4] sm:$0xf]
      %v425 = vld [vmem:[%s2 + $0xa8] sm:$0xf]
      %v426 = vld [vmem:[%s2 + $0xac] sm:$0xf]
      %v427 = vld [vmem:[%s2 + $0xb0] sm:$0xf]
      %v428 = vld [vmem:[%s2 + $0xb4] sm:$0xf]
      %v429 = vld [vmem:[%s2 + $0xb8] sm:$0xf]
      %v430 = vld [vmem:[%s2 + $0xbc] sm:$0xf]
      %v431 = vld [vmem:[%s2 + $0xc0] sm:$0xf]
      %v432 = vld [vmem:[%s2 + $0xc4] sm:$0xf]
      %v433 = vld [vmem:[%s2 + $0xc8] sm:$0xf]
      %v434 = vld [vmem:[%s2 + $0xcc] sm:$0xf]
      %v435 = vld [vmem:[%s2 + $0xd0] sm:$0xf]
      %v436 = vld [vmem:[%s2 + $0xd4] sm:$0xf]
      %v437 = vld [vmem:[%s2 + $0xd8] sm:$0xf]
      %v438 = vld [vmem:[%s2 + $0xdc] sm:$0xf]
      %v439 = vld [vmem:[%s2 + $0xe0] sm:$0xf]
      %v440 = vld [vmem:[%s2 + $0xe4] sm:$0xf]
      %v441 = vld [vmem:[%s2 + $0xe8] sm:$0xf]
      %v442 = vld [vmem:[%s2 + $0xec] sm:$0xf]
      %v443 = vld [vmem:[%s2 + $0xf0] sm:$0xf]
      %v444 = vld [vmem:[%s2 + $0xf4] sm:$0xf]
      %v445 = vld [vmem:[%s2 + $0xf8] sm:$0xf]
      %v446 = vld [vmem:[%s2 + $0xfc] sm:$0xf]
      %v511 = vunpack.c.l.b16 %v383
      %v512 = vunpack.c.l.b16 %v384
      %v513 = vunpack.c.l.b16 %v385
      %v514 = vunpack.c.l.b16 %v386
      %v515 = vunpack.c.l.b16 %v387
      %v516 = vunpack.c.l.b16 %v388
      %v517 = vunpack.c.l.b16 %v389
      %v518 = vunpack.c.l.b16 %v390
      %v519 = vunpack.c.l.b16 %v391
      %v520 = vunpack.c.l.b16 %v392
      %v521 = vunpack.c.l.b16 %v393
      %v522 = vunpack.c.l.b16 %v394
      %v523 = vunpack.c.l.b16 %v395
      %v524 = vunpack.c.l.b16 %v396
      %v525 = vunpack.c.l.b16 %v397
      %v526 = vunpack.c.l.b16 %v398
      %v527 = vunpack.c.l.b16 %v399
      %v528 = vunpack.c.l.b16 %v400
      %v529 = vunpack.c.l.b16 %v401
      %v530 = vunpack.c.l.b16 %v402
      %v531 = vunpack.c.l.b16 %v403
      %v532 = vunpack.c.l.b16 %v404
      %v533 = vunpack.c.l.b16 %v405
      %v534 = vunpack.c.l.b16 %v406
      %v535 = vunpack.c.l.b16 %v407
      %v536 = vunpack.c.l.b16 %v408
      %v537 = vunpack.c.l.b16 %v409
      %v538 = vunpack.c.l.b16 %v410
      %v539 = vunpack.c.l.b16 %v411
      %v540 = vunpack.c.l.b16 %v412
      %v541 = vunpack.c.l.b16 %v413
      %v542 = vunpack.c.l.b16 %v414
      %v543 = vunpack.c.l.b16 %v415
      %v544 = vunpack.c.l.b16 %v416
      %v545 = vunpack.c.l.b16 %v417
      %v546 = vunpack.c.l.b16 %v418
      %v547 = vunpack.c.l.b16 %v419
      %v548 = vunpack.c.l.b16 %v420
      %v549 = vunpack.c.l.b16 %v421
      %v550 = vunpack.c.l.b16 %v422
      %v551 = vunpack.c.l.b16 %v423
      %v552 = vunpack.c.l.b16 %v424
      %v553 = vunpack.c.l.b16 %v425
      %v554 = vunpack.c.l.b16 %v426
      %v555 = vunpack.c.l.b16 %v427
      %v556 = vunpack.c.l.b16 %v428
      %v557 = vunpack.c.l.b16 %v429
      %v558 = vunpack.c.l.b16 %v430
      %v559 = vunpack.c.l.b16 %v431
      %v560 = vunpack.c.l.b16 %v432
      %v561 = vunpack.c.l.b16 %v433
      %v562 = vunpack.c.l.b16 %v434
      %v563 = vunpack.c.l.b16 %v435
      %v564 = vunpack.c.l.b16 %v436
      %v565 = vunpack.c.l.b16 %v437
      %v566 = vunpack.c.l.b16 %v438
      %v567 = vunpack.c.l.b16 %v439
      %v568 = vunpack.c.l.b16 %v440
      %v569 = vunpack.c.l.b16 %v441
      %v570 = vunpack.c.l.b16 %v442
      %v571 = vunpack.c.l.b16 %v443
      %v572 = vunpack.c.l.b16 %v444
      %v573 = vunpack.c.l.b16 %v445
      %v574 = vunpack.c.l.b16 %v446
      %v575 = vpack.c.b16 %v512, %v511
      %v576 = vpack.c.b16 %v514, %v513
      %v577 = vpack.c.b16 %v516, %v515
      %v578 = vpack.c.b16 %v518, %v517
      %v579 = vpack.c.b16 %v520, %v519
      %v580 = vpack.c.b16 %v522, %v521
      %v581 = vpack.c.b16 %v524, %v523
      %v582 = vpack.c.b16 %v526, %v525
      %v583 = vpack.c.b16 %v528, %v527
      %v584 = vpack.c.b16 %v530, %v529
      %v585 = vpack.c.b16 %v532, %v531
      %v586 = vpack.c.b16 %v534, %v533
      %v587 = vpack.c.b16 %v536, %v535
      %v588 = vpack.c.b16 %v538, %v537
      %v589 = vpack.c.b16 %v540, %v539
      %v590 = vpack.c.b16 %v542, %v541
      %v591 = vpack.c.b16 %v544, %v543
      %v592 = vpack.c.b16 %v546, %v545
      %v593 = vpack.c.b16 %v548, %v547
      %v594 = vpack.c.b16 %v550, %v549
      %v595 = vpack.c.b16 %v552, %v551
      %v596 = vpack.c.b16 %v554, %v553
      %v597 = vpack.c.b16 %v556, %v555
      %v598 = vpack.c.b16 %v558, %v557
      %v599 = vpack.c.b16 %v560, %v559
      %v600 = vpack.c.b16 %v562, %v561
      %v601 = vpack.c.b16 %v564, %v563
      %v602 = vpack.c.b16 %v566, %v565
      %v603 = vpack.c.b16 %v568, %v567
      %v604 = vpack.c.b16 %v570, %v569
      %v605 = vpack.c.b16 %v572, %v571
      %v606 = vpack.c.b16 %v574, %v573
      %vm607 = vcmask 195584
      %v609 = vsel %vm607, %v575, 0
      %v612 = vsel %vm607, %v576, 0
      %v615 = vsel %vm607, %v577, 0
      %v618 = vsel %vm607, %v578, 0
      %v621 = vsel %vm607, %v579, 0
      %v624 = vsel %vm607, %v580, 0
      %v627 = vsel %vm607, %v581, 0
      %v630 = vsel %vm607, %v582, 0
      %v633 = vsel %vm607, %v583, 0
      %v636 = vsel %vm607, %v584, 0
      %v639 = vsel %vm607, %v585, 0
      %v642 = vsel %vm607, %v586, 0
      %v645 = vsel %vm607, %v587, 0
      %v648 = vsel %vm607, %v588, 0
      %v651 = vsel %vm607, %v589, 0
      %v654 = vsel %vm607, %v590, 0
      %v657 = vsel %vm607, %v591, 0
      %v660 = vsel %vm607, %v592, 0
      %v663 = vsel %vm607, %v593, 0
      %v666 = vsel %vm607, %v594, 0
      %v669 = vsel %vm607, %v595, 0
      %v672 = vsel %vm607, %v596, 0
      %v675 = vsel %vm607, %v597, 0
      %v678 = vsel %vm607, %v598, 0
      %v681 = vsel %vm607, %v599, 0
      %v684 = vsel %vm607, %v600, 0
      %v687 = vsel %vm607, %v601, 0
      %v690 = vsel %vm607, %v602, 0
      %v693 = vsel %vm607, %v603, 0
      %v696 = vsel %vm607, %v604, 0
      %v699 = vsel %vm607, %v605, 0
      %v702 = vsel %vm607, %v606, 0
      %vm704 = vcmask 1043456
      %v706 = vsel %vm704, %v372, 0
      %v709 = vsel %vm704, %v373, 0
      %711 = vmatpush.bf16.msra.mxu0 0
      %712 = vmatpush.bf16.msra.mxu0 0
      %713 = vmatpush.bf16.msra.mxu0 0
      %714 = vmatpush.bf16.msra.mxu0 0
      %715 = vmatpush.bf16.msra.mxu0 0
      %716 = vmatpush.bf16.msra.mxu0 0
      %717 = vmatpush.bf16.msra.mxu0 %v706
      %718 = vmatpush.bf16.msra.mxu0 %v370
      %719 = vmatmul.bf16.gmra.mxu0 %v609
      %v720 = vpop.f32.mrf.mxu0
      %v721 = vadd.f32 0.0, %v720
      %v722 = vpop.f32.mrf.mxu0
      %v723 = vadd.f32 0.0, %v722
      %724 = vmatmul.bf16.gmra.mxu0 %v612
      %v725 = vpop.f32.mrf.mxu0
      %v726 = vadd.f32 0.0, %v725
      %v727 = vpop.f32.mrf.mxu0
      %v728 = vadd.f32 0.0, %v727
      %729 = vmatmul.bf16.gmra.mxu0 %v615
      %v730 = vpop.f32.mrf.mxu0
      %v731 = vadd.f32 0.0, %v730
      %v732 = vpop.f32.mrf.mxu0
      %v733 = vadd.f32 0.0, %v732
      %734 = vmatmul.bf16.gmra.mxu0 %v618
      %v735 = vpop.f32.mrf.mxu0
      %v736 = vadd.f32 0.0, %v735
      %v737 = vpop.f32.mrf.mxu0
      %v738 = vadd.f32 0.0, %v737
      %739 = vmatmul.bf16.gmra.mxu0 %v621
      %v740 = vpop.f32.mrf.mxu0
      %v741 = vadd.f32 0.0, %v740
      %v742 = vpop.f32.mrf.mxu0
      %v743 = vadd.f32 0.0, %v742
      %744 = vmatmul.bf16.gmra.mxu0 %v624
      %v745 = vpop.f32.mrf.mxu0
      %v746 = vadd.f32 0.0, %v745
      %v747 = vpop.f32.mrf.mxu0
      %v748 = vadd.f32 0.0, %v747
      %749 = vmatmul.bf16.gmra.mxu0 %v627
      %v750 = vpop.f32.mrf.mxu0
      %v751 = vadd.f32 0.0, %v750
      %v752 = vpop.f32.mrf.mxu0
      %v753 = vadd.f32 0.0, %v752
      %754 = vmatmul.bf16.gmra.mxu0 %v630
      %v755 = vpop.f32.mrf.mxu0
      %v756 = vadd.f32 0.0, %v755
      %v757 = vpop.f32.mrf.mxu0
      %v758 = vadd.f32 0.0, %v757
      %759 = vmatmul.bf16.gmra.mxu0 %v633
      %v760 = vpop.f32.mrf.mxu0
      %v761 = vadd.f32 0.0, %v760
      %v762 = vpop.f32.mrf.mxu0
      %v763 = vadd.f32 0.0, %v762
      %764 = vmatmul.bf16.gmra.mxu0 %v636
      %v765 = vpop.f32.mrf.mxu0
      %v766 = vadd.f32 0.0, %v765
      %v767 = vpop.f32.mrf.mxu0
      %v768 = vadd.f32 0.0, %v767
      %769 = vmatmul.bf16.gmra.mxu0 %v639
      %v770 = vpop.f32.mrf.mxu0
      %v771 = vadd.f32 0.0, %v770
      %v772 = vpop.f32.mrf.mxu0
      %v773 = vadd.f32 0.0, %v772
      %774 = vmatmul.bf16.gmra.mxu0 %v642
      %v775 = vpop.f32.mrf.mxu0
      %v776 = vadd.f32 0.0, %v775
      %v777 = vpop.f32.mrf.mxu0
      %v778 = vadd.f32 0.0, %v777
      %779 = vmatmul.bf16.gmra.mxu0 %v645
      %v780 = vpop.f32.mrf.mxu0
      %v781 = vadd.f32 0.0, %v780
      %v782 = vpop.f32.mrf.mxu0
      %v783 = vadd.f32 0.0, %v782
      %784 = vmatmul.bf16.gmra.mxu0 %v648
      %v785 = vpop.f32.mrf.mxu0
      %v786 = vadd.f32 0.0, %v785
      %v787 = vpop.f32.mrf.mxu0
      %v788 = vadd.f32 0.0, %v787
      %789 = vmatmul.bf16.gmra.mxu0 %v651
      %v790 = vpop.f32.mrf.mxu0
      %v791 = vadd.f32 0.0, %v790
      %v792 = vpop.f32.mrf.mxu0
      %v793 = vadd.f32 0.0, %v792
      %794 = vmatmul.bf16.gmra.mxu0 %v654
      %v795 = vpop.f32.mrf.mxu0
      %v796 = vadd.f32 0.0, %v795
      %v797 = vpop.f32.mrf.mxu0
      %v798 = vadd.f32 0.0, %v797
      %799 = vmatmul.bf16.gmra.mxu0 %v657
      %v800 = vpop.f32.mrf.mxu0
      %v801 = vadd.f32 0.0, %v800
      %v802 = vpop.f32.mrf.mxu0
      %v803 = vadd.f32 0.0, %v802
      %804 = vmatmul.bf16.gmra.mxu0 %v660
      %v805 = vpop.f32.mrf.mxu0
      %v806 = vadd.f32 0.0, %v805
      %v807 = vpop.f32.mrf.mxu0
      %v808 = vadd.f32 0.0, %v807
      %809 = vmatmul.bf16.gmra.mxu0 %v663
      %v810 = vpop.f32.mrf.mxu0
      %v811 = vadd.f32 0.0, %v810
      %v812 = vpop.f32.mrf.mxu0
      %v813 = vadd.f32 0.0, %v812
      %814 = vmatmul.bf16.gmra.mxu0 %v666
      %v815 = vpop.f32.mrf.mxu0
      %v816 = vadd.f32 0.0, %v815
      %v817 = vpop.f32.mrf.mxu0
      %v818 = vadd.f32 0.0, %v817
      %819 = vmatmul.bf16.gmra.mxu0 %v669
      %v820 = vpop.f32.mrf.mxu0
      %v821 = vadd.f32 0.0, %v820
      %v822 = vpop.f32.mrf.mxu0
      %v823 = vadd.f32 0.0, %v822
      %824 = vmatmul.bf16.gmra.mxu0 %v672
      %v825 = vpop.f32.mrf.mxu0
      %v826 = vadd.f32 0.0, %v825
      %v827 = vpop.f32.mrf.mxu0
      %v828 = vadd.f32 0.0, %v827
      %829 = vmatmul.bf16.gmra.mxu0 %v675
      %v830 = vpop.f32.mrf.mxu0
      %v831 = vadd.f32 0.0, %v830
      %v832 = vpop.f32.mrf.mxu0
      %v833 = vadd.f32 0.0, %v832
      %834 = vmatmul.bf16.gmra.mxu0 %v678
      %v835 = vpop.f32.mrf.mxu0
      %v836 = vadd.f32 0.0, %v835
      %v837 = vpop.f32.mrf.mxu0
      %v838 = vadd.f32 0.0, %v837
      %839 = vmatmul.bf16.gmra.mxu0 %v681
      %v840 = vpop.f32.mrf.mxu0
      %v841 = vadd.f32 0.0, %v840
      %v842 = vpop.f32.mrf.mxu0
      %v843 = vadd.f32 0.0, %v842
      %844 = vmatmul.bf16.gmra.mxu0 %v684
      %v845 = vpop.f32.mrf.mxu0
      %v846 = vadd.f32 0.0, %v845
      %v847 = vpop.f32.mrf.mxu0
      %v848 = vadd.f32 0.0, %v847
      %849 = vmatmul.bf16.gmra.mxu0 %v687
      %v850 = vpop.f32.mrf.mxu0
      %v851 = vadd.f32 0.0, %v850
      %v852 = vpop.f32.mrf.mxu0
      %v853 = vadd.f32 0.0, %v852
      %854 = vmatmul.bf16.gmra.mxu0 %v690
      %v855 = vpop.f32.mrf.mxu0
      %v856 = vadd.f32 0.0, %v855
      %v857 = vpop.f32.mrf.mxu0
      %v858 = vadd.f32 0.0, %v857
      %859 = vmatmul.bf16.gmra.mxu0 %v693
      %v860 = vpop.f32.mrf.mxu0
      %v861 = vadd.f32 0.0, %v860
      %v862 = vpop.f32.mrf.mxu0
      %v863 = vadd.f32 0.0, %v862
      %864 = vmatmul.bf16.gmra.mxu0 %v696
      %v865 = vpop.f32.mrf.mxu0
      %v866 = vadd.f32 0.0, %v865
      %v867 = vpop.f32.mrf.mxu0
      %v868 = vadd.f32 0.0, %v867
      %869 = vmatmul.bf16.gmra.mxu0 %v699
      %v870 = vpop.f32.mrf.mxu0
      %v871 = vadd.f32 0.0, %v870
      %v872 = vpop.f32.mrf.mxu0
      %v873 = vadd.f32 0.0, %v872
      %874 = vmatmul.bf16.gmra.mxu0 %v702
      %v875 = vpop.f32.mrf.mxu0
      %v876 = vadd.f32 0.0, %v875
      %v877 = vpop.f32.mrf.mxu0
      %v878 = vadd.f32 0.0, %v877
      %879 = vdwg.mxu0
      %880 = vmatpush.bf16.msra.mxu0 0
      %881 = vmatpush.bf16.msra.mxu0 0
      %882 = vmatpush.bf16.msra.mxu0 0
      %883 = vmatpush.bf16.msra.mxu0 0
      %884 = vmatpush.bf16.msra.mxu0 0
      %885 = vmatpush.bf16.msra.mxu0 0
      %886 = vmatpush.bf16.msra.mxu0 %v709
      %887 = vmatpush.bf16.msra.mxu0 %v371
      %888 = vmatmul.bf16.gmra.mxu0 %v609
      %v889 = vpop.f32.mrf.mxu0
      %v890 = vadd.f32 0.0, %v889
      %v891 = vpop.f32.mrf.mxu0
      %v892 = vadd.f32 0.0, %v891
      %893 = vmatmul.bf16.gmra.mxu0 %v612
      %v894 = vpop.f32.mrf.mxu0
      %v895 = vadd.f32 0.0, %v894
      %v896 = vpop.f32.mrf.mxu0
      %v897 = vadd.f32 0.0, %v896
      %898 = vmatmul.bf16.gmra.mxu0 %v615
      %v899 = vpop.f32.mrf.mxu0
      %v900 = vadd.f32 0.0, %v899
      %v901 = vpop.f32.mrf.mxu0
      %v902 = vadd.f32 0.0, %v901
      %903 = vmatmul.bf16.gmra.mxu0 %v618
      %v904 = vpop.f32.mrf.mxu0
      %v905 = vadd.f32 0.0, %v904
      %v906 = vpop.f32.mrf.mxu0
      %v907 = vadd.f32 0.0, %v906
      %908 = vmatmul.bf16.gmra.mxu0 %v621
      %v909 = vpop.f32.mrf.mxu0
      %v910 = vadd.f32 0.0, %v909
      %v911 = vpop.f32.mrf.mxu0
      %v912 = vadd.f32 0.0, %v911
      %913 = vmatmul.bf16.gmra.mxu0 %v624
      %v914 = vpop.f32.mrf.mxu0
      %v915 = vadd.f32 0.0, %v914
      %v916 = vpop.f32.mrf.mxu0
      %v917 = vadd.f32 0.0, %v916
      %918 = vmatmul.bf16.gmra.mxu0 %v627
      %v919 = vpop.f32.mrf.mxu0
      %v920 = vadd.f32 0.0, %v919
      %v921 = vpop.f32.mrf.mxu0
      %v922 = vadd.f32 0.0, %v921
      %923 = vmatmul.bf16.gmra.mxu0 %v630
      %v924 = vpop.f32.mrf.mxu0
      %v925 = vadd.f32 0.0, %v924
      %v926 = vpop.f32.mrf.mxu0
      %v927 = vadd.f32 0.0, %v926
      %928 = vmatmul.bf16.gmra.mxu0 %v633
      %v929 = vpop.f32.mrf.mxu0
      %v930 = vadd.f32 0.0, %v929
      %v931 = vpop.f32.mrf.mxu0
      %v932 = vadd.f32 0.0, %v931
      %933 = vmatmul.bf16.gmra.mxu0 %v636
      %v934 = vpop.f32.mrf.mxu0
      %v935 = vadd.f32 0.0, %v934
      %v936 = vpop.f32.mrf.mxu0
      %v937 = vadd.f32 0.0, %v936
      %938 = vmatmul.bf16.gmra.mxu0 %v639
      %v939 = vpop.f32.mrf.mxu0
      %v940 = vadd.f32 0.0, %v939
      %v941 = vpop.f32.mrf.mxu0
      %v942 = vadd.f32 0.0, %v941
      %943 = vmatmul.bf16.gmra.mxu0 %v642
      %v944 = vpop.f32.mrf.mxu0
      %v945 = vadd.f32 0.0, %v944
      %v946 = vpop.f32.mrf.mxu0
      %v947 = vadd.f32 0.0, %v946
      %948 = vmatmul.bf16.gmra.mxu0 %v645
      %v949 = vpop.f32.mrf.mxu0
      %v950 = vadd.f32 0.0, %v949
      %v951 = vpop.f32.mrf.mxu0
      %v952 = vadd.f32 0.0, %v951
      %953 = vmatmul.bf16.gmra.mxu0 %v648
      %v954 = vpop.f32.mrf.mxu0
      %v955 = vadd.f32 0.0, %v954
      %v956 = vpop.f32.mrf.mxu0
      %v957 = vadd.f32 0.0, %v956
      %958 = vmatmul.bf16.gmra.mxu0 %v651
      %v959 = vpop.f32.mrf.mxu0
      %v960 = vadd.f32 0.0, %v959
      %v961 = vpop.f32.mrf.mxu0
      %v962 = vadd.f32 0.0, %v961
      %963 = vmatmul.bf16.gmra.mxu0 %v654
      %v964 = vpop.f32.mrf.mxu0
      %v965 = vadd.f32 0.0, %v964
      %v966 = vpop.f32.mrf.mxu0
      %v967 = vadd.f32 0.0, %v966
      %968 = vmatmul.bf16.gmra.mxu0 %v657
      %v969 = vpop.f32.mrf.mxu0
      %v970 = vadd.f32 0.0, %v969
      %v971 = vpop.f32.mrf.mxu0
      %v972 = vadd.f32 0.0, %v971
      %973 = vmatmul.bf16.gmra.mxu0 %v660
      %v974 = vpop.f32.mrf.mxu0
      %v975 = vadd.f32 0.0, %v974
      %v976 = vpop.f32.mrf.mxu0
      %v977 = vadd.f32 0.0, %v976
      %978 = vmatmul.bf16.gmra.mxu0 %v663
      %v979 = vpop.f32.mrf.mxu0
      %v980 = vadd.f32 0.0, %v979
      %v981 = vpop.f32.mrf.mxu0
      %v982 = vadd.f32 0.0, %v981
      %983 = vmatmul.bf16.gmra.mxu0 %v666
      %v984 = vpop.f32.mrf.mxu0
      %v985 = vadd.f32 0.0, %v984
      %v986 = vpop.f32.mrf.mxu0
      %v987 = vadd.f32 0.0, %v986
      %988 = vmatmul.bf16.gmra.mxu0 %v669
      %v989 = vpop.f32.mrf.mxu0
      %v990 = vadd.f32 0.0, %v989
      %v991 = vpop.f32.mrf.mxu0
      %v992 = vadd.f32 0.0, %v991
      %993 = vmatmul.bf16.gmra.mxu0 %v672
      %v994 = vpop.f32.mrf.mxu0
      %v995 = vadd.f32 0.0, %v994
      %v996 = vpop.f32.mrf.mxu0
      %v997 = vadd.f32 0.0, %v996
      %998 = vmatmul.bf16.gmra.mxu0 %v675
      %v999 = vpop.f32.mrf.mxu0
      %v1000 = vadd.f32 0.0, %v999
      %v1001 = vpop.f32.mrf.mxu0
      %v1002 = vadd.f32 0.0, %v1001
      %1003 = vmatmul.bf16.gmra.mxu0 %v678
      %v1004 = vpop.f32.mrf.mxu0
      %v1005 = vadd.f32 0.0, %v1004
      %v1006 = vpop.f32.mrf.mxu0
      %v1007 = vadd.f32 0.0, %v1006
      %1008 = vmatmul.bf16.gmra.mxu0 %v681
      %v1009 = vpop.f32.mrf.mxu0
      %v1010 = vadd.f32 0.0, %v1009
      %v1011 = vpop.f32.mrf.mxu0
      %v1012 = vadd.f32 0.0, %v1011
      %1013 = vmatmul.bf16.gmra.mxu0 %v684
      %v1014 = vpop.f32.mrf.mxu0
      %v1015 = vadd.f32 0.0, %v1014
      %v1016 = vpop.f32.mrf.mxu0
      %v1017 = vadd.f32 0.0, %v1016
      %1018 = vmatmul.bf16.gmra.mxu0 %v687
      %v1019 = vpop.f32.mrf.mxu0
      %v1020 = vadd.f32 0.0, %v1019
      %v1021 = vpop.f32.mrf.mxu0
      %v1022 = vadd.f32 0.0, %v1021
      %1023 = vmatmul.bf16.gmra.mxu0 %v690
      %v1024 = vpop.f32.mrf.mxu0
      %v1025 = vadd.f32 0.0, %v1024
      %v1026 = vpop.f32.mrf.mxu0
      %v1027 = vadd.f32 0.0, %v1026
      %1028 = vmatmul.bf16.gmra.mxu0 %v693
      %v1029 = vpop.f32.mrf.mxu0
      %v1030 = vadd.f32 0.0, %v1029
      %v1031 = vpop.f32.mrf.mxu0
      %v1032 = vadd.f32 0.0, %v1031
      %1033 = vmatmul.bf16.gmra.mxu0 %v696
      %v1034 = vpop.f32.mrf.mxu0
      %v1035 = vadd.f32 0.0, %v1034
      %v1036 = vpop.f32.mrf.mxu0
      %v1037 = vadd.f32 0.0, %v1036
      %1038 = vmatmul.bf16.gmra.mxu0 %v699
      %v1039 = vpop.f32.mrf.mxu0
      %v1040 = vadd.f32 0.0, %v1039
      %v1041 = vpop.f32.mrf.mxu0
      %v1042 = vadd.f32 0.0, %v1041
      %1043 = vmatmul.bf16.gmra.mxu0 %v702
      %v1044 = vpop.f32.mrf.mxu0
      %v1045 = vadd.f32 0.0, %v1044
      %v1046 = vpop.f32.mrf.mxu0
      %v1047 = vadd.f32 0.0, %v1046
      %1048 = vdwg.mxu0
      %v1049 = vld [vmem:[%s3] sm:$0xf]
      %v1050 = vld [vmem:[%s3 + $0x4] sm:$0xf]
      %v1051 = vld [vmem:[%s3 + $0x8] sm:$0xf]
      %v1052 = vld [vmem:[%s3 + $0xc] sm:$0xf]
      %v1053 = vld [vmem:[%s3 + $0x10] sm:$0xf]
      %v1054 = vld [vmem:[%s3 + $0x14] sm:$0xf]
      %v1055 = vld [vmem:[%s3 + $0x18] sm:$0xf]
      %v1056 = vld [vmem:[%s3 + $0x1c] sm:$0xf]
      %v1057 = vld [vmem:[%s3 + $0x20] sm:$0xf]
      %v1058 = vld [vmem:[%s3 + $0x24] sm:$0xf]
      %v1059 = vld [vmem:[%s3 + $0x28] sm:$0xf]
      %v1060 = vld [vmem:[%s3 + $0x2c] sm:$0xf]
      %v1061 = vld [vmem:[%s3 + $0x30] sm:$0xf]
      %v1062 = vld [vmem:[%s3 + $0x34] sm:$0xf]
      %v1063 = vld [vmem:[%s3 + $0x38] sm:$0xf]
      %v1064 = vld [vmem:[%s3 + $0x3c] sm:$0xf]
      %v1065 = vld [vmem:[%s3 + $0x40] sm:$0xf]
      %v1066 = vld [vmem:[%s3 + $0x44] sm:$0xf]
      %v1067 = vld [vmem:[%s3 + $0x48] sm:$0xf]
      %v1068 = vld [vmem:[%s3 + $0x4c] sm:$0xf]
      %v1069 = vld [vmem:[%s3 + $0x50] sm:$0xf]
      %v1070 = vld [vmem:[%s3 + $0x54] sm:$0xf]
      %v1071 = vld [vmem:[%s3 + $0x58] sm:$0xf]
      %v1072 = vld [vmem:[%s3 + $0x5c] sm:$0xf]
      %v1073 = vld [vmem:[%s3 + $0x60] sm:$0xf]
      %v1074 = vld [vmem:[%s3 + $0x64] sm:$0xf]
      %v1075 = vld [vmem:[%s3 + $0x68] sm:$0xf]
      %v1076 = vld [vmem:[%s3 + $0x6c] sm:$0xf]
      %v1077 = vld [vmem:[%s3 + $0x70] sm:$0xf]
      %v1078 = vld [vmem:[%s3 + $0x74] sm:$0xf]
      %v1079 = vld [vmem:[%s3 + $0x78] sm:$0xf]
      %v1080 = vld [vmem:[%s3 + $0x7c] sm:$0xf]
      %v1081 = vld [vmem:[%s3 + $0x80] sm:$0xf]
      %v1082 = vld [vmem:[%s3 + $0x84] sm:$0xf]
      %v1083 = vld [vmem:[%s3 + $0x88] sm:$0xf]
      %v1084 = vld [vmem:[%s3 + $0x8c] sm:$0xf]
      %v1085 = vld [vmem:[%s3 + $0x90] sm:$0xf]
      %v1086 = vld [vmem:[%s3 + $0x94] sm:$0xf]
      %v1087 = vld [vmem:[%s3 + $0x98] sm:$0xf]
      %v1088 = vld [vmem:[%s3 + $0x9c] sm:$0xf]
      %v1089 = vld [vmem:[%s3 + $0xa0] sm:$0xf]
      %v1090 = vld [vmem:[%s3 + $0xa4] sm:$0xf]
      %v1091 = vld [vmem:[%s3 + $0xa8] sm:$0xf]
      %v1092 = vld [vmem:[%s3 + $0xac] sm:$0xf]
      %v1093 = vld [vmem:[%s3 + $0xb0] sm:$0xf]
      %v1094 = vld [vmem:[%s3 + $0xb4] sm:$0xf]
      %v1095 = vld [vmem:[%s3 + $0xb8] sm:$0xf]
      %v1096 = vld [vmem:[%s3 + $0xbc] sm:$0xf]
      %v1097 = vld [vmem:[%s3 + $0xc0] sm:$0xf]
      %v1098 = vld [vmem:[%s3 + $0xc4] sm:$0xf]
      %v1099 = vld [vmem:[%s3 + $0xc8] sm:$0xf]
      %v1100 = vld [vmem:[%s3 + $0xcc] sm:$0xf]
      %v1101 = vld [vmem:[%s3 + $0xd0] sm:$0xf]
      %v1102 = vld [vmem:[%s3 + $0xd4] sm:$0xf]
      %v1103 = vld [vmem:[%s3 + $0xd8] sm:$0xf]
      %v1104 = vld [vmem:[%s3 + $0xdc] sm:$0xf]
      %v1105 = vld [vmem:[%s3 + $0xe0] sm:$0xf]
      %v1106 = vld [vmem:[%s3 + $0xe4] sm:$0xf]
      %v1107 = vld [vmem:[%s3 + $0xe8] sm:$0xf]
      %v1108 = vld [vmem:[%s3 + $0xec] sm:$0xf]
      %v1109 = vld [vmem:[%s3 + $0xf0] sm:$0xf]
      %v1110 = vld [vmem:[%s3 + $0xf4] sm:$0xf]
      %v1111 = vld [vmem:[%s3 + $0xf8] sm:$0xf]
      %v1112 = vld [vmem:[%s3 + $0xfc] sm:$0xf]
      %v1177 = vunpack.c.l.b16 %v1049
      %v1178 = vunpack.c.l.b16 %v1050
      %v1179 = vunpack.c.l.b16 %v1051
      %v1180 = vunpack.c.l.b16 %v1052
      %v1181 = vunpack.c.l.b16 %v1053
      %v1182 = vunpack.c.l.b16 %v1054
      %v1183 = vunpack.c.l.b16 %v1055
      %v1184 = vunpack.c.l.b16 %v1056
      %v1185 = vunpack.c.l.b16 %v1057
      %v1186 = vunpack.c.l.b16 %v1058
      %v1187 = vunpack.c.l.b16 %v1059
      %v1188 = vunpack.c.l.b16 %v1060
      %v1189 = vunpack.c.l.b16 %v1061
      %v1190 = vunpack.c.l.b16 %v1062
      %v1191 = vunpack.c.l.b16 %v1063
      %v1192 = vunpack.c.l.b16 %v1064
      %v1193 = vunpack.c.l.b16 %v1065
      %v1194 = vunpack.c.l.b16 %v1066
      %v1195 = vunpack.c.l.b16 %v1067
      %v1196 = vunpack.c.l.b16 %v1068
      %v1197 = vunpack.c.l.b16 %v1069
      %v1198 = vunpack.c.l.b16 %v1070
      %v1199 = vunpack.c.l.b16 %v1071
      %v1200 = vunpack.c.l.b16 %v1072
      %v1201 = vunpack.c.l.b16 %v1073
      %v1202 = vunpack.c.l.b16 %v1074
      %v1203 = vunpack.c.l.b16 %v1075
      %v1204 = vunpack.c.l.b16 %v1076
      %v1205 = vunpack.c.l.b16 %v1077
      %v1206 = vunpack.c.l.b16 %v1078
      %v1207 = vunpack.c.l.b16 %v1079
      %v1208 = vunpack.c.l.b16 %v1080
      %v1209 = vunpack.c.l.b16 %v1081
      %v1210 = vunpack.c.l.b16 %v1082
      %v1211 = vunpack.c.l.b16 %v1083
      %v1212 = vunpack.c.l.b16 %v1084
      %v1213 = vunpack.c.l.b16 %v1085
      %v1214 = vunpack.c.l.b16 %v1086
      %v1215 = vunpack.c.l.b16 %v1087
      %v1216 = vunpack.c.l.b16 %v1088
      %v1217 = vunpack.c.l.b16 %v1089
      %v1218 = vunpack.c.l.b16 %v1090
      %v1219 = vunpack.c.l.b16 %v1091
      %v1220 = vunpack.c.l.b16 %v1092
      %v1221 = vunpack.c.l.b16 %v1093
      %v1222 = vunpack.c.l.b16 %v1094
      %v1223 = vunpack.c.l.b16 %v1095
      %v1224 = vunpack.c.l.b16 %v1096
      %v1225 = vunpack.c.l.b16 %v1097
      %v1226 = vunpack.c.l.b16 %v1098
      %v1227 = vunpack.c.l.b16 %v1099
      %v1228 = vunpack.c.l.b16 %v1100
      %v1229 = vunpack.c.l.b16 %v1101
      %v1230 = vunpack.c.l.b16 %v1102
      %v1231 = vunpack.c.l.b16 %v1103
      %v1232 = vunpack.c.l.b16 %v1104
      %v1233 = vunpack.c.l.b16 %v1105
      %v1234 = vunpack.c.l.b16 %v1106
      %v1235 = vunpack.c.l.b16 %v1107
      %v1236 = vunpack.c.l.b16 %v1108
      %v1237 = vunpack.c.l.b16 %v1109
      %v1238 = vunpack.c.l.b16 %v1110
      %v1239 = vunpack.c.l.b16 %v1111
      %v1240 = vunpack.c.l.b16 %v1112
      %v1241 = vpack.c.b16 %v1178, %v1177
      %v1242 = vpack.c.b16 %v1180, %v1179
      %v1243 = vpack.c.b16 %v1182, %v1181
      %v1244 = vpack.c.b16 %v1184, %v1183
      %v1245 = vpack.c.b16 %v1186, %v1185
      %v1246 = vpack.c.b16 %v1188, %v1187
      %v1247 = vpack.c.b16 %v1190, %v1189
      %v1248 = vpack.c.b16 %v1192, %v1191
      %v1249 = vpack.c.b16 %v1194, %v1193
      %v1250 = vpack.c.b16 %v1196, %v1195
      %v1251 = vpack.c.b16 %v1198, %v1197
      %v1252 = vpack.c.b16 %v1200, %v1199
      %v1253 = vpack.c.b16 %v1202, %v1201
      %v1254 = vpack.c.b16 %v1204, %v1203
      %v1255 = vpack.c.b16 %v1206, %v1205
      %v1256 = vpack.c.b16 %v1208, %v1207
      %v1257 = vpack.c.b16 %v1210, %v1209
      %v1258 = vpack.c.b16 %v1212, %v1211
      %v1259 = vpack.c.b16 %v1214, %v1213
      %v1260 = vpack.c.b16 %v1216, %v1215
      %v1261 = vpack.c.b16 %v1218, %v1217
      %v1262 = vpack.c.b16 %v1220, %v1219
      %v1263 = vpack.c.b16 %v1222, %v1221
      %v1264 = vpack.c.b16 %v1224, %v1223
      %v1265 = vpack.c.b16 %v1226, %v1225
      %v1266 = vpack.c.b16 %v1228, %v1227
      %v1267 = vpack.c.b16 %v1230, %v1229
      %v1268 = vpack.c.b16 %v1232, %v1231
      %v1269 = vpack.c.b16 %v1234, %v1233
      %v1270 = vpack.c.b16 %v1236, %v1235
      %v1271 = vpack.c.b16 %v1238, %v1237
      %v1272 = vpack.c.b16 %v1240, %v1239
      %v1276 = vunpack.c.l.b16 %v380
      %v1277 = vunpack.c.h.b16 %v380
      %v1278 = vunpack.c.l.b16 %v381
      %v1279 = vunpack.c.h.b16 %v381
      %v1280 = vunpack.c.l.b16 %v382
      %v1281 = vunpack.c.h.b16 %v382
      %v1282 = vpack.c.b16 %v1278, %v1276
      %v1283 = vpack.c.b16 %v1279, %v1277
      %v1284 = vpack.c.b16 %v1280, %v1280
      %v1285 = vpack.c.b16 %v1281, %v1281
      %v1289 = vsel %vm607, %v1241, 0
      %v1292 = vsel %vm607, %v1242, 0
      %v1295 = vsel %vm607, %v1243, 0
      %v1298 = vsel %vm607, %v1244, 0
      %v1301 = vsel %vm607, %v1245, 0
      %v1304 = vsel %vm607, %v1246, 0
      %v1307 = vsel %vm607, %v1247, 0
      %v1310 = vsel %vm607, %v1248, 0
      %v1313 = vsel %vm607, %v1249, 0
      %v1316 = vsel %vm607, %v1250, 0
      %v1319 = vsel %vm607, %v1251, 0
      %v1322 = vsel %vm607, %v1252, 0
      %v1325 = vsel %vm607, %v1253, 0
      %v1328 = vsel %vm607, %v1254, 0
      %v1331 = vsel %vm607, %v1255, 0
      %v1334 = vsel %vm607, %v1256, 0
      %v1337 = vsel %vm607, %v1257, 0
      %v1340 = vsel %vm607, %v1258, 0
      %v1343 = vsel %vm607, %v1259, 0
      %v1346 = vsel %vm607, %v1260, 0
      %v1349 = vsel %vm607, %v1261, 0
      %v1352 = vsel %vm607, %v1262, 0
      %v1355 = vsel %vm607, %v1263, 0
      %v1358 = vsel %vm607, %v1264, 0
      %v1361 = vsel %vm607, %v1265, 0
      %v1364 = vsel %vm607, %v1266, 0
      %v1367 = vsel %vm607, %v1267, 0
      %v1370 = vsel %vm607, %v1268, 0
      %v1373 = vsel %vm607, %v1269, 0
      %v1376 = vsel %vm607, %v1270, 0
      %v1379 = vsel %vm607, %v1271, 0
      %v1382 = vsel %vm607, %v1272, 0
      %v1385 = vsel %vm704, %v1284, 0
      %v1388 = vsel %vm704, %v1285, 0
      %1390 = vmatpush.bf16.msra.mxu0 0
      %1391 = vmatpush.bf16.msra.mxu0 0
      %1392 = vmatpush.bf16.msra.mxu0 0
      %1393 = vmatpush.bf16.msra.mxu0 0
      %1394 = vmatpush.bf16.msra.mxu0 0
      %1395 = vmatpush.bf16.msra.mxu0 0
      %1396 = vmatpush.bf16.msra.mxu0 %v1385
      %1397 = vmatpush.bf16.msra.mxu0 %v1282
      %1398 = vmatmul.bf16.gmra.mxu0 %v1289
      %v1399 = vpop.f32.mrf.mxu0
      %v1400 = vadd.f32 0.0, %v1399
      %v1401 = vpop.f32.mrf.mxu0
      %v1402 = vadd.f32 0.0, %v1401
      %1403 = vmatmul.bf16.gmra.mxu0 %v1292
      %v1404 = vpop.f32.mrf.mxu0
      %v1405 = vadd.f32 0.0, %v1404
      %v1406 = vpop.f32.mrf.mxu0
      %v1407 = vadd.f32 0.0, %v1406
      %1408 = vmatmul.bf16.gmra.mxu0 %v1295
      %v1409 = vpop.f32.mrf.mxu0
      %v1410 = vadd.f32 0.0, %v1409
      %v1411 = vpop.f32.mrf.mxu0
      %v1412 = vadd.f32 0.0, %v1411
      %1413 = vmatmul.bf16.gmra.mxu0 %v1298
      %v1414 = vpop.f32.mrf.mxu0
      %v1415 = vadd.f32 0.0, %v1414
      %v1416 = vpop.f32.mrf.mxu0
      %v1417 = vadd.f32 0.0, %v1416
      %1418 = vmatmul.bf16.gmra.mxu0 %v1301
      %v1419 = vpop.f32.mrf.mxu0
      %v1420 = vadd.f32 0.0, %v1419
      %v1421 = vpop.f32.mrf.mxu0
      %v1422 = vadd.f32 0.0, %v1421
      %1423 = vmatmul.bf16.gmra.mxu0 %v1304
      %v1424 = vpop.f32.mrf.mxu0
      %v1425 = vadd.f32 0.0, %v1424
      %v1426 = vpop.f32.mrf.mxu0
      %v1427 = vadd.f32 0.0, %v1426
      %1428 = vmatmul.bf16.gmra.mxu0 %v1307
      %v1429 = vpop.f32.mrf.mxu0
      %v1430 = vadd.f32 0.0, %v1429
      %v1431 = vpop.f32.mrf.mxu0
      %v1432 = vadd.f32 0.0, %v1431
      %1433 = vmatmul.bf16.gmra.mxu0 %v1310
      %v1434 = vpop.f32.mrf.mxu0
      %v1435 = vadd.f32 0.0, %v1434
      %v1436 = vpop.f32.mrf.mxu0
      %v1437 = vadd.f32 0.0, %v1436
      %1438 = vmatmul.bf16.gmra.mxu0 %v1313
      %v1439 = vpop.f32.mrf.mxu0
      %v1440 = vadd.f32 0.0, %v1439
      %v1441 = vpop.f32.mrf.mxu0
      %v1442 = vadd.f32 0.0, %v1441
      %1443 = vmatmul.bf16.gmra.mxu0 %v1316
      %v1444 = vpop.f32.mrf.mxu0
      %v1445 = vadd.f32 0.0, %v1444
      %v1446 = vpop.f32.mrf.mxu0
      %v1447 = vadd.f32 0.0, %v1446
      %1448 = vmatmul.bf16.gmra.mxu0 %v1319
      %v1449 = vpop.f32.mrf.mxu0
      %v1450 = vadd.f32 0.0, %v1449
      %v1451 = vpop.f32.mrf.mxu0
      %v1452 = vadd.f32 0.0, %v1451
      %1453 = vmatmul.bf16.gmra.mxu0 %v1322
      %v1454 = vpop.f32.mrf.mxu0
      %v1455 = vadd.f32 0.0, %v1454
      %v1456 = vpop.f32.mrf.mxu0
      %v1457 = vadd.f32 0.0, %v1456
      %1458 = vmatmul.bf16.gmra.mxu0 %v1325
      %v1459 = vpop.f32.mrf.mxu0
      %v1460 = vadd.f32 0.0, %v1459
      %v1461 = vpop.f32.mrf.mxu0
      %v1462 = vadd.f32 0.0, %v1461
      %1463 = vmatmul.bf16.gmra.mxu0 %v1328
      %v1464 = vpop.f32.mrf.mxu0
      %v1465 = vadd.f32 0.0, %v1464
      %v1466 = vpop.f32.mrf.mxu0
      %v1467 = vadd.f32 0.0, %v1466
      %1468 = vmatmul.bf16.gmra.mxu0 %v1331
      %v1469 = vpop.f32.mrf.mxu0
      %v1470 = vadd.f32 0.0, %v1469
      %v1471 = vpop.f32.mrf.mxu0
      %v1472 = vadd.f32 0.0, %v1471
      %1473 = vmatmul.bf16.gmra.mxu0 %v1334
      %v1474 = vpop.f32.mrf.mxu0
      %v1475 = vadd.f32 0.0, %v1474
      %v1476 = vpop.f32.mrf.mxu0
      %v1477 = vadd.f32 0.0, %v1476
      %1478 = vmatmul.bf16.gmra.mxu0 %v1337
      %v1479 = vpop.f32.mrf.mxu0
      %v1480 = vadd.f32 0.0, %v1479
      %v1481 = vpop.f32.mrf.mxu0
      %v1482 = vadd.f32 0.0, %v1481
      %1483 = vmatmul.bf16.gmra.mxu0 %v1340
      %v1484 = vpop.f32.mrf.mxu0
      %v1485 = vadd.f32 0.0, %v1484
      %v1486 = vpop.f32.mrf.mxu0
      %v1487 = vadd.f32 0.0, %v1486
      %1488 = vmatmul.bf16.gmra.mxu0 %v1343
      %v1489 = vpop.f32.mrf.mxu0
      %v1490 = vadd.f32 0.0, %v1489
      %v1491 = vpop.f32.mrf.mxu0
      %v1492 = vadd.f32 0.0, %v1491
      %1493 = vmatmul.bf16.gmra.mxu0 %v1346
      %v1494 = vpop.f32.mrf.mxu0
      %v1495 = vadd.f32 0.0, %v1494
      %v1496 = vpop.f32.mrf.mxu0
      %v1497 = vadd.f32 0.0, %v1496
      %1498 = vmatmul.bf16.gmra.mxu0 %v1349
      %v1499 = vpop.f32.mrf.mxu0
      %v1500 = vadd.f32 0.0, %v1499
      %v1501 = vpop.f32.mrf.mxu0
      %v1502 = vadd.f32 0.0, %v1501
      %1503 = vmatmul.bf16.gmra.mxu0 %v1352
      %v1504 = vpop.f32.mrf.mxu0
      %v1505 = vadd.f32 0.0, %v1504
      %v1506 = vpop.f32.mrf.mxu0
      %v1507 = vadd.f32 0.0, %v1506
      %1508 = vmatmul.bf16.gmra.mxu0 %v1355
      %v1509 = vpop.f32.mrf.mxu0
      %v1510 = vadd.f32 0.0, %v1509
      %v1511 = vpop.f32.mrf.mxu0
      %v1512 = vadd.f32 0.0, %v1511
      %1513 = vmatmul.bf16.gmra.mxu0 %v1358
      %v1514 = vpop.f32.mrf.mxu0
      %v1515 = vadd.f32 0.0, %v1514
      %v1516 = vpop.f32.mrf.mxu0
      %v1517 = vadd.f32 0.0, %v1516
      %1518 = vmatmul.bf16.gmra.mxu0 %v1361
      %v1519 = vpop.f32.mrf.mxu0
      %v1520 = vadd.f32 0.0, %v1519
      %v1521 = vpop.f32.mrf.mxu0
      %v1522 = vadd.f32 0.0, %v1521
      %1523 = vmatmul.bf16.gmra.mxu0 %v1364
      %v1524 = vpop.f32.mrf.mxu0
      %v1525 = vadd.f32 0.0, %v1524
      %v1526 = vpop.f32.mrf.mxu0
      %v1527 = vadd.f32 0.0, %v1526
      %1528 = vmatmul.bf16.gmra.mxu0 %v1367
      %v1529 = vpop.f32.mrf.mxu0
      %v1530 = vadd.f32 0.0, %v1529
      %v1531 = vpop.f32.mrf.mxu0
      %v1532 = vadd.f32 0.0, %v1531
      %1533 = vmatmul.bf16.gmra.mxu0 %v1370
      %v1534 = vpop.f32.mrf.mxu0
      %v1535 = vadd.f32 0.0, %v1534
      %v1536 = vpop.f32.mrf.mxu0
      %v1537 = vadd.f32 0.0, %v1536
      %1538 = vmatmul.bf16.gmra.mxu0 %v1373
      %v1539 = vpop.f32.mrf.mxu0
      %v1540 = vadd.f32 0.0, %v1539
      %v1541 = vpop.f32.mrf.mxu0
      %v1542 = vadd.f32 0.0, %v1541
      %1543 = vmatmul.bf16.gmra.mxu0 %v1376
      %v1544 = vpop.f32.mrf.mxu0
      %v1545 = vadd.f32 0.0, %v1544
      %v1546 = vpop.f32.mrf.mxu0
      %v1547 = vadd.f32 0.0, %v1546
      %1548 = vmatmul.bf16.gmra.mxu0 %v1379
      %v1549 = vpop.f32.mrf.mxu0
      %v1550 = vadd.f32 0.0, %v1549
      %v1551 = vpop.f32.mrf.mxu0
      %v1552 = vadd.f32 0.0, %v1551
      %1553 = vmatmul.bf16.gmra.mxu0 %v1382
      %v1554 = vpop.f32.mrf.mxu0
      %v1555 = vadd.f32 0.0, %v1554
      %v1556 = vpop.f32.mrf.mxu0
      %v1557 = vadd.f32 0.0, %v1556
      %1558 = vdwg.mxu0
      %1559 = vmatpush.bf16.msra.mxu0 0
      %1560 = vmatpush.bf16.msra.mxu0 0
      %1561 = vmatpush.bf16.msra.mxu0 0
      %1562 = vmatpush.bf16.msra.mxu0 0
      %1563 = vmatpush.bf16.msra.mxu0 0
      %1564 = vmatpush.bf16.msra.mxu0 0
      %1565 = vmatpush.bf16.msra.mxu0 %v1388
      %1566 = vmatpush.bf16.msra.mxu0 %v1283
      %1567 = vmatmul.bf16.gmra.mxu0 %v1289
      %v1568 = vpop.f32.mrf.mxu0
      %v1569 = vadd.f32 0.0, %v1568
      %v1570 = vpop.f32.mrf.mxu0
      %v1571 = vadd.f32 0.0, %v1570
      %1572 = vmatmul.bf16.gmra.mxu0 %v1292
      %v1573 = vpop.f32.mrf.mxu0
      %v1574 = vadd.f32 0.0, %v1573
      %v1575 = vpop.f32.mrf.mxu0
      %v1576 = vadd.f32 0.0, %v1575
      %1577 = vmatmul.bf16.gmra.mxu0 %v1295
      %v1578 = vpop.f32.mrf.mxu0
      %v1579 = vadd.f32 0.0, %v1578
      %v1580 = vpop.f32.mrf.mxu0
      %v1581 = vadd.f32 0.0, %v1580
      %1582 = vmatmul.bf16.gmra.mxu0 %v1298
      %v1583 = vpop.f32.mrf.mxu0
      %v1584 = vadd.f32 0.0, %v1583
      %v1585 = vpop.f32.mrf.mxu0
      %v1586 = vadd.f32 0.0, %v1585
      %1587 = vmatmul.bf16.gmra.mxu0 %v1301
      %v1588 = vpop.f32.mrf.mxu0
      %v1589 = vadd.f32 0.0, %v1588
      %v1590 = vpop.f32.mrf.mxu0
      %v1591 = vadd.f32 0.0, %v1590
      %1592 = vmatmul.bf16.gmra.mxu0 %v1304
      %v1593 = vpop.f32.mrf.mxu0
      %v1594 = vadd.f32 0.0, %v1593
      %v1595 = vpop.f32.mrf.mxu0
      %v1596 = vadd.f32 0.0, %v1595
      %1597 = vmatmul.bf16.gmra.mxu0 %v1307
      %v1598 = vpop.f32.mrf.mxu0
      %v1599 = vadd.f32 0.0, %v1598
      %v1600 = vpop.f32.mrf.mxu0
      %v1601 = vadd.f32 0.0, %v1600
      %1602 = vmatmul.bf16.gmra.mxu0 %v1310
      %v1603 = vpop.f32.mrf.mxu0
      %v1604 = vadd.f32 0.0, %v1603
      %v1605 = vpop.f32.mrf.mxu0
      %v1606 = vadd.f32 0.0, %v1605
      %1607 = vmatmul.bf16.gmra.mxu0 %v1313
      %v1608 = vpop.f32.mrf.mxu0
      %v1609 = vadd.f32 0.0, %v1608
      %v1610 = vpop.f32.mrf.mxu0
      %v1611 = vadd.f32 0.0, %v1610
      %1612 = vmatmul.bf16.gmra.mxu0 %v1316
      %v1613 = vpop.f32.mrf.mxu0
      %v1614 = vadd.f32 0.0, %v1613
      %v1615 = vpop.f32.mrf.mxu0
      %v1616 = vadd.f32 0.0, %v1615
      %1617 = vmatmul.bf16.gmra.mxu0 %v1319
      %v1618 = vpop.f32.mrf.mxu0
      %v1619 = vadd.f32 0.0, %v1618
      %v1620 = vpop.f32.mrf.mxu0
      %v1621 = vadd.f32 0.0, %v1620
      %1622 = vmatmul.bf16.gmra.mxu0 %v1322
      %v1623 = vpop.f32.mrf.mxu0
      %v1624 = vadd.f32 0.0, %v1623
      %v1625 = vpop.f32.mrf.mxu0
      %v1626 = vadd.f32 0.0, %v1625
      %1627 = vmatmul.bf16.gmra.mxu0 %v1325
      %v1628 = vpop.f32.mrf.mxu0
      %v1629 = vadd.f32 0.0, %v1628
      %v1630 = vpop.f32.mrf.mxu0
      %v1631 = vadd.f32 0.0, %v1630
      %1632 = vmatmul.bf16.gmra.mxu0 %v1328
      %v1633 = vpop.f32.mrf.mxu0
      %v1634 = vadd.f32 0.0, %v1633
      %v1635 = vpop.f32.mrf.mxu0
      %v1636 = vadd.f32 0.0, %v1635
      %1637 = vmatmul.bf16.gmra.mxu0 %v1331
      %v1638 = vpop.f32.mrf.mxu0
      %v1639 = vadd.f32 0.0, %v1638
      %v1640 = vpop.f32.mrf.mxu0
      %v1641 = vadd.f32 0.0, %v1640
      %1642 = vmatmul.bf16.gmra.mxu0 %v1334
      %v1643 = vpop.f32.mrf.mxu0
      %v1644 = vadd.f32 0.0, %v1643
      %v1645 = vpop.f32.mrf.mxu0
      %v1646 = vadd.f32 0.0, %v1645
      %1647 = vmatmul.bf16.gmra.mxu0 %v1337
      %v1648 = vpop.f32.mrf.mxu0
      %v1649 = vadd.f32 0.0, %v1648
      %v1650 = vpop.f32.mrf.mxu0
      %v1651 = vadd.f32 0.0, %v1650
      %1652 = vmatmul.bf16.gmra.mxu0 %v1340
      %v1653 = vpop.f32.mrf.mxu0
      %v1654 = vadd.f32 0.0, %v1653
      %v1655 = vpop.f32.mrf.mxu0
      %v1656 = vadd.f32 0.0, %v1655
      %1657 = vmatmul.bf16.gmra.mxu0 %v1343
      %v1658 = vpop.f32.mrf.mxu0
      %v1659 = vadd.f32 0.0, %v1658
      %v1660 = vpop.f32.mrf.mxu0
      %v1661 = vadd.f32 0.0, %v1660
      %1662 = vmatmul.bf16.gmra.mxu0 %v1346
      %v1663 = vpop.f32.mrf.mxu0
      %v1664 = vadd.f32 0.0, %v1663
      %v1665 = vpop.f32.mrf.mxu0
      %v1666 = vadd.f32 0.0, %v1665
      %1667 = vmatmul.bf16.gmra.mxu0 %v1349
      %v1668 = vpop.f32.mrf.mxu0
      %v1669 = vadd.f32 0.0, %v1668
      %v1670 = vpop.f32.mrf.mxu0
      %v1671 = vadd.f32 0.0, %v1670
      %1672 = vmatmul.bf16.gmra.mxu0 %v1352
      %v1673 = vpop.f32.mrf.mxu0
      %v1674 = vadd.f32 0.0, %v1673
      %v1675 = vpop.f32.mrf.mxu0
      %v1676 = vadd.f32 0.0, %v1675
      %1677 = vmatmul.bf16.gmra.mxu0 %v1355
      %v1678 = vpop.f32.mrf.mxu0
      %v1679 = vadd.f32 0.0, %v1678
      %v1680 = vpop.f32.mrf.mxu0
      %v1681 = vadd.f32 0.0, %v1680
      %1682 = vmatmul.bf16.gmra.mxu0 %v1358
      %v1683 = vpop.f32.mrf.mxu0
      %v1684 = vadd.f32 0.0, %v1683
      %v1685 = vpop.f32.mrf.mxu0
      %v1686 = vadd.f32 0.0, %v1685
      %1687 = vmatmul.bf16.gmra.mxu0 %v1361
      %v1688 = vpop.f32.mrf.mxu0
      %v1689 = vadd.f32 0.0, %v1688
      %v1690 = vpop.f32.mrf.mxu0
      %v1691 = vadd.f32 0.0, %v1690
      %1692 = vmatmul.bf16.gmra.mxu0 %v1364
      %v1693 = vpop.f32.mrf.mxu0
      %v1694 = vadd.f32 0.0, %v1693
      %v1695 = vpop.f32.mrf.mxu0
      %v1696 = vadd.f32 0.0, %v1695
      %1697 = vmatmul.bf16.gmra.mxu0 %v1367
      %v1698 = vpop.f32.mrf.mxu0
      %v1699 = vadd.f32 0.0, %v1698
      %v1700 = vpop.f32.mrf.mxu0
      %v1701 = vadd.f32 0.0, %v1700
      %1702 = vmatmul.bf16.gmra.mxu0 %v1370
      %v1703 = vpop.f32.mrf.mxu0
      %v1704 = vadd.f32 0.0, %v1703
      %v1705 = vpop.f32.mrf.mxu0
      %v1706 = vadd.f32 0.0, %v1705
      %1707 = vmatmul.bf16.gmra.mxu0 %v1373
      %v1708 = vpop.f32.mrf.mxu0
      %v1709 = vadd.f32 0.0, %v1708
      %v1710 = vpop.f32.mrf.mxu0
      %v1711 = vadd.f32 0.0, %v1710
      %1712 = vmatmul.bf16.gmra.mxu0 %v1376
      %v1713 = vpop.f32.mrf.mxu0
      %v1714 = vadd.f32 0.0, %v1713
      %v1715 = vpop.f32.mrf.mxu0
      %v1716 = vadd.f32 0.0, %v1715
      %1717 = vmatmul.bf16.gmra.mxu0 %v1379
      %v1718 = vpop.f32.mrf.mxu0
      %v1719 = vadd.f32 0.0, %v1718
      %v1720 = vpop.f32.mrf.mxu0
      %v1721 = vadd.f32 0.0, %v1720
      %1722 = vmatmul.bf16.gmra.mxu0 %v1382
      %v1723 = vpop.f32.mrf.mxu0
      %v1724 = vadd.f32 0.0, %v1723
      %v1725 = vpop.f32.mrf.mxu0
      %v1726 = vadd.f32 0.0, %v1725
      %1727 = vdwg.mxu0
      %v1728 = vld [vmem:[%s4] sm:$0xff]
      %v1729 = vld [vmem:[%s4 + $0x8] sm:$0xff]
      %v1730 = vld [vmem:[%s4 + $0x10] sm:$0xff]
      %v1731 = vld [vmem:[%s4 + $0x18] sm:$0xff]
      %v1732 = vld [vmem:[%s4 + $0x20] sm:$0xff]
      %v1733 = vld [vmem:[%s4 + $0x28] sm:$0xff]
      %v1734 = vld [vmem:[%s4 + $0x30] sm:$0xff]
      %v1735 = vld [vmem:[%s4 + $0x38] sm:$0xff]
      %1737 = vset.pattern.permute.xlu0 0
      %1738 = vperm.xlu0 %1737, %v1728
      %v1739 = vpop.permute.xlu0 %1738
      %1742 = vset.pattern.permute.xlu0 0
      %1743 = vperm.xlu0 %1742, %v1729
      %v1744 = vpop.permute.xlu0 %1743
      %1747 = vset.pattern.permute.xlu0 0
      %1748 = vperm.xlu0 %1747, %v1730
      %v1749 = vpop.permute.xlu0 %1748
      %1752 = vset.pattern.permute.xlu0 0
      %1753 = vperm.xlu0 %1752, %v1731
      %v1754 = vpop.permute.xlu0 %1753
      %1757 = vset.pattern.permute.xlu0 0
      %1758 = vperm.xlu0 %1757, %v1732
      %v1759 = vpop.permute.xlu0 %1758
      %1762 = vset.pattern.permute.xlu0 0
      %1763 = vperm.xlu0 %1762, %v1733
      %v1764 = vpop.permute.xlu0 %1763
      %1767 = vset.pattern.permute.xlu0 0
      %1768 = vperm.xlu0 %1767, %v1734
      %v1769 = vpop.permute.xlu0 %1768
      %1772 = vset.pattern.permute.xlu0 0
      %1773 = vperm.xlu0 %1772, %v1735
      %v1774 = vpop.permute.xlu0 %1773
      %v1776 = vadd.f32 %v721, %v1739
      %v1777 = vadd.f32 %v890, %v1739
      %v1778 = vadd.f32 %v723, %v1744
      %v1779 = vadd.f32 %v892, %v1744
      %v1780 = vadd.f32 %v726, %v1749
      %v1781 = vadd.f32 %v895, %v1749
      %v1782 = vadd.f32 %v728, %v1754
      %v1783 = vadd.f32 %v897, %v1754
      %v1784 = vadd.f32 %v731, %v1759
      %v1785 = vadd.f32 %v900, %v1759
      %v1786 = vadd.f32 %v733, %v1764
      %v1787 = vadd.f32 %v902, %v1764
      %v1788 = vadd.f32 %v736, %v1769
      %v1789 = vadd.f32 %v905, %v1769
      %v1790 = vadd.f32 %v738, %v1774
      %v1791 = vadd.f32 %v907, %v1774
      %v1792 = vadd.f32 %v741, %v1739
      %v1793 = vadd.f32 %v910, %v1739
      %v1794 = vadd.f32 %v743, %v1744
      %v1795 = vadd.f32 %v912, %v1744
      %v1796 = vadd.f32 %v746, %v1749
      %v1797 = vadd.f32 %v915, %v1749
      %v1798 = vadd.f32 %v748, %v1754
      %v1799 = vadd.f32 %v917, %v1754
      %v1800 = vadd.f32 %v751, %v1759
      %v1801 = vadd.f32 %v920, %v1759
      %v1802 = vadd.f32 %v753, %v1764
      %v1803 = vadd.f32 %v922, %v1764
      %v1804 = vadd.f32 %v756, %v1769
      %v1805 = vadd.f32 %v925, %v1769
      %v1806 = vadd.f32 %v758, %v1774
      %v1807 = vadd.f32 %v927, %v1774
      %v1808 = vadd.f32 %v761, %v1739
      %v1809 = vadd.f32 %v930, %v1739
      %v1810 = vadd.f32 %v763, %v1744
      %v1811 = vadd.f32 %v932, %v1744
      %v1812 = vadd.f32 %v766, %v1749
      %v1813 = vadd.f32 %v935, %v1749
      %v1814 = vadd.f32 %v768, %v1754
      %v1815 = vadd.f32 %v937, %v1754
      %v1816 = vadd.f32 %v771, %v1759
      %v1817 = vadd.f32 %v940, %v1759
      %v1818 = vadd.f32 %v773, %v1764
      %v1819 = vadd.f32 %v942, %v1764
      %v1820 = vadd.f32 %v776, %v1769
      %v1821 = vadd.f32 %v945, %v1769
      %v1822 = vadd.f32 %v778, %v1774
      %v1823 = vadd.f32 %v947, %v1774
      %v1824 = vadd.f32 %v781, %v1739
      %v1825 = vadd.f32 %v950, %v1739
      %v1826 = vadd.f32 %v783, %v1744
      %v1827 = vadd.f32 %v952, %v1744
      %v1828 = vadd.f32 %v786, %v1749
      %v1829 = vadd.f32 %v955, %v1749
      %v1830 = vadd.f32 %v788, %v1754
      %v1831 = vadd.f32 %v957, %v1754
      %v1832 = vadd.f32 %v791, %v1759
      %v1833 = vadd.f32 %v960, %v1759
      %v1834 = vadd.f32 %v793, %v1764
      %v1835 = vadd.f32 %v962, %v1764
      %v1836 = vadd.f32 %v796, %v1769
      %v1837 = vadd.f32 %v965, %v1769
      %v1838 = vadd.f32 %v798, %v1774
      %v1839 = vadd.f32 %v967, %v1774
      %v1840 = vadd.f32 %v801, %v1739
      %v1841 = vadd.f32 %v970, %v1739
      %v1842 = vadd.f32 %v803, %v1744
      %v1843 = vadd.f32 %v972, %v1744
      %v1844 = vadd.f32 %v806, %v1749
      %v1845 = vadd.f32 %v975, %v1749
      %v1846 = vadd.f32 %v808, %v1754
      %v1847 = vadd.f32 %v977, %v1754
      %v1848 = vadd.f32 %v811, %v1759
      %v1849 = vadd.f32 %v980, %v1759
      %v1850 = vadd.f32 %v813, %v1764
      %v1851 = vadd.f32 %v982, %v1764
      %v1852 = vadd.f32 %v816, %v1769
      %v1853 = vadd.f32 %v985, %v1769
      %v1854 = vadd.f32 %v818, %v1774
      %v1855 = vadd.f32 %v987, %v1774
      %v1856 = vadd.f32 %v821, %v1739
      %v1857 = vadd.f32 %v990, %v1739
      %v1858 = vadd.f32 %v823, %v1744
      %v1859 = vadd.f32 %v992, %v1744
      %v1860 = vadd.f32 %v826, %v1749
      %v1861 = vadd.f32 %v995, %v1749
      %v1862 = vadd.f32 %v828, %v1754
      %v1863 = vadd.f32 %v997, %v1754
      %v1864 = vadd.f32 %v831, %v1759
      %v1865 = vadd.f32 %v1000, %v1759
      %v1866 = vadd.f32 %v833, %v1764
      %v1867 = vadd.f32 %v1002, %v1764
      %v1868 = vadd.f32 %v836, %v1769
      %v1869 = vadd.f32 %v1005, %v1769
      %v1870 = vadd.f32 %v838, %v1774
      %v1871 = vadd.f32 %v1007, %v1774
      %v1872 = vadd.f32 %v841, %v1739
      %v1873 = vadd.f32 %v1010, %v1739
      %v1874 = vadd.f32 %v843, %v1744
      %v1875 = vadd.f32 %v1012, %v1744
      %v1876 = vadd.f32 %v846, %v1749
      %v1877 = vadd.f32 %v1015, %v1749
      %v1878 = vadd.f32 %v848, %v1754
      %v1879 = vadd.f32 %v1017, %v1754
      %v1880 = vadd.f32 %v851, %v1759
      %v1881 = vadd.f32 %v1020, %v1759
      %v1882 = vadd.f32 %v853, %v1764
      %v1883 = vadd.f32 %v1022, %v1764
      %v1884 = vadd.f32 %v856, %v1769
      %v1885 = vadd.f32 %v1025, %v1769
      %v1886 = vadd.f32 %v858, %v1774
      %v1887 = vadd.f32 %v1027, %v1774
      %v1888 = vadd.f32 %v861, %v1739
      %v1889 = vadd.f32 %v1030, %v1739
      %v1890 = vadd.f32 %v863, %v1744
      %v1891 = vadd.f32 %v1032, %v1744
      %v1892 = vadd.f32 %v866, %v1749
      %v1893 = vadd.f32 %v1035, %v1749
      %v1894 = vadd.f32 %v868, %v1754
      %v1895 = vadd.f32 %v1037, %v1754
      %v1896 = vadd.f32 %v871, %v1759
      %v1897 = vadd.f32 %v1040, %v1759
      %v1898 = vadd.f32 %v873, %v1764
      %v1899 = vadd.f32 %v1042, %v1764
      %v1900 = vadd.f32 %v876, %v1769
      %v1901 = vadd.f32 %v1045, %v1769
      %v1902 = vadd.f32 %v878, %v1774
      %v1903 = vadd.f32 %v1047, %v1774
      %v1904 = vld [vmem:[%s5] sm:$0xff]
      %v1905 = vld [vmem:[%s5 + $0x8] sm:$0xff]
      %v1906 = vld [vmem:[%s5 + $0x10] sm:$0xff]
      %v1907 = vld [vmem:[%s5 + $0x18] sm:$0xff]
      %v1908 = vld [vmem:[%s5 + $0x20] sm:$0xff]
      %v1909 = vld [vmem:[%s5 + $0x28] sm:$0xff]
      %v1910 = vld [vmem:[%s5 + $0x30] sm:$0xff]
      %v1911 = vld [vmem:[%s5 + $0x38] sm:$0xff]
      %1913 = vset.pattern.permute.xlu0 0
      %1914 = vperm.xlu0 %1913, %v1904
      %v1915 = vpop.permute.xlu0 %1914
      %1918 = vset.pattern.permute.xlu0 0
      %1919 = vperm.xlu0 %1918, %v1905
      %v1920 = vpop.permute.xlu0 %1919
      %1923 = vset.pattern.permute.xlu0 0
      %1924 = vperm.xlu0 %1923, %v1906
      %v1925 = vpop.permute.xlu0 %1924
      %1928 = vset.pattern.permute.xlu0 0
      %1929 = vperm.xlu0 %1928, %v1907
      %v1930 = vpop.permute.xlu0 %1929
      %1933 = vset.pattern.permute.xlu0 0
      %1934 = vperm.xlu0 %1933, %v1908
      %v1935 = vpop.permute.xlu0 %1934
      %1938 = vset.pattern.permute.xlu0 0
      %1939 = vperm.xlu0 %1938, %v1909
      %v1940 = vpop.permute.xlu0 %1939
      %1943 = vset.pattern.permute.xlu0 0
      %1944 = vperm.xlu0 %1943, %v1910
      %v1945 = vpop.permute.xlu0 %1944
      %1948 = vset.pattern.permute.xlu0 0
      %1949 = vperm.xlu0 %1948, %v1911
      %v1950 = vpop.permute.xlu0 %1949
      %v1952 = vadd.f32 %v1400, %v1915
      %v1953 = vadd.f32 %v1569, %v1915
      %v1954 = vadd.f32 %v1402, %v1920
      %v1955 = vadd.f32 %v1571, %v1920
      %v1956 = vadd.f32 %v1405, %v1925
      %v1957 = vadd.f32 %v1574, %v1925
      %v1958 = vadd.f32 %v1407, %v1930
      %v1959 = vadd.f32 %v1576, %v1930
      %v1960 = vadd.f32 %v1410, %v1935
      %v1961 = vadd.f32 %v1579, %v1935
      %v1962 = vadd.f32 %v1412, %v1940
      %v1963 = vadd.f32 %v1581, %v1940
      %v1964 = vadd.f32 %v1415, %v1945
      %v1965 = vadd.f32 %v1584, %v1945
      %v1966 = vadd.f32 %v1417, %v1950
      %v1967 = vadd.f32 %v1586, %v1950
      %v1968 = vadd.f32 %v1420, %v1915
      %v1969 = vadd.f32 %v1589, %v1915
      %v1970 = vadd.f32 %v1422, %v1920
      %v1971 = vadd.f32 %v1591, %v1920
      %v1972 = vadd.f32 %v1425, %v1925
      %v1973 = vadd.f32 %v1594, %v1925
      %v1974 = vadd.f32 %v1427, %v1930
      %v1975 = vadd.f32 %v1596, %v1930
      %v1976 = vadd.f32 %v1430, %v1935
      %v1977 = vadd.f32 %v1599, %v1935
      %v1978 = vadd.f32 %v1432, %v1940
      %v1979 = vadd.f32 %v1601, %v1940
      %v1980 = vadd.f32 %v1435, %v1945
      %v1981 = vadd.f32 %v1604, %v1945
      %v1982 = vadd.f32 %v1437, %v1950
      %v1983 = vadd.f32 %v1606, %v1950
      %v1984 = vadd.f32 %v1440, %v1915
      %v1985 = vadd.f32 %v1609, %v1915
      %v1986 = vadd.f32 %v1442, %v1920
      %v1987 = vadd.f32 %v1611, %v1920
      %v1988 = vadd.f32 %v1445, %v1925
      %v1989 = vadd.f32 %v1614, %v1925
      %v1990 = vadd.f32 %v1447, %v1930
      %v1991 = vadd.f32 %v1616, %v1930
      %v1992 = vadd.f32 %v1450, %v1935
      %v1993 = vadd.f32 %v1619, %v1935
      %v1994 = vadd.f32 %v1452, %v1940
      %v1995 = vadd.f32 %v1621, %v1940
      %v1996 = vadd.f32 %v1455, %v1945
      %v1997 = vadd.f32 %v1624, %v1945
      %v1998 = vadd.f32 %v1457, %v1950
      %v1999 = vadd.f32 %v1626, %v1950
      %v2000 = vadd.f32 %v1460, %v1915
      %v2001 = vadd.f32 %v1629, %v1915
      %v2002 = vadd.f32 %v1462, %v1920
      %v2003 = vadd.f32 %v1631, %v1920
      %v2004 = vadd.f32 %v1465, %v1925
      %v2005 = vadd.f32 %v1634, %v1925
      %v2006 = vadd.f32 %v1467, %v1930
      %v2007 = vadd.f32 %v1636, %v1930
      %v2008 = vadd.f32 %v1470, %v1935
      %v2009 = vadd.f32 %v1639, %v1935
      %v2010 = vadd.f32 %v1472, %v1940
      %v2011 = vadd.f32 %v1641, %v1940
      %v2012 = vadd.f32 %v1475, %v1945
      %v2013 = vadd.f32 %v1644, %v1945
      %v2014 = vadd.f32 %v1477, %v1950
      %v2015 = vadd.f32 %v1646, %v1950
      %v2016 = vadd.f32 %v1480, %v1915
      %v2017 = vadd.f32 %v1649, %v1915
      %v2018 = vadd.f32 %v1482, %v1920
      %v2019 = vadd.f32 %v1651, %v1920
      %v2020 = vadd.f32 %v1485, %v1925
      %v2021 = vadd.f32 %v1654, %v1925
      %v2022 = vadd.f32 %v1487, %v1930
      %v2023 = vadd.f32 %v1656, %v1930
      %v2024 = vadd.f32 %v1490, %v1935
      %v2025 = vadd.f32 %v1659, %v1935
      %v2026 = vadd.f32 %v1492, %v1940
      %v2027 = vadd.f32 %v1661, %v1940
      %v2028 = vadd.f32 %v1495, %v1945
      %v2029 = vadd.f32 %v1664, %v1945
      %v2030 = vadd.f32 %v1497, %v1950
      %v2031 = vadd.f32 %v1666, %v1950
      %v2032 = vadd.f32 %v1500, %v1915
      %v2033 = vadd.f32 %v1669, %v1915
      %v2034 = vadd.f32 %v1502, %v1920
      %v2035 = vadd.f32 %v1671, %v1920
      %v2036 = vadd.f32 %v1505, %v1925
      %v2037 = vadd.f32 %v1674, %v1925
      %v2038 = vadd.f32 %v1507, %v1930
      %v2039 = vadd.f32 %v1676, %v1930
      %v2040 = vadd.f32 %v1510, %v1935
      %v2041 = vadd.f32 %v1679, %v1935
      %v2042 = vadd.f32 %v1512, %v1940
      %v2043 = vadd.f32 %v1681, %v1940
      %v2044 = vadd.f32 %v1515, %v1945
      %v2045 = vadd.f32 %v1684, %v1945
      %v2046 = vadd.f32 %v1517, %v1950
      %v2047 = vadd.f32 %v1686, %v1950
      %v2048 = vadd.f32 %v1520, %v1915
      %v2049 = vadd.f32 %v1689, %v1915
      %v2050 = vadd.f32 %v1522, %v1920
      %v2051 = vadd.f32 %v1691, %v1920
      %v2052 = vadd.f32 %v1525, %v1925
      %v2053 = vadd.f32 %v1694, %v1925
      %v2054 = vadd.f32 %v1527, %v1930
      %v2055 = vadd.f32 %v1696, %v1930
      %v2056 = vadd.f32 %v1530, %v1935
      %v2057 = vadd.f32 %v1699, %v1935
      %v2058 = vadd.f32 %v1532, %v1940
      %v2059 = vadd.f32 %v1701, %v1940
      %v2060 = vadd.f32 %v1535, %v1945
      %v2061 = vadd.f32 %v1704, %v1945
      %v2062 = vadd.f32 %v1537, %v1950
      %v2063 = vadd.f32 %v1706, %v1950
      %v2064 = vadd.f32 %v1540, %v1915
      %v2065 = vadd.f32 %v1709, %v1915
      %v2066 = vadd.f32 %v1542, %v1920
      %v2067 = vadd.f32 %v1711, %v1920
      %v2068 = vadd.f32 %v1545, %v1925
      %v2069 = vadd.f32 %v1714, %v1925
      %v2070 = vadd.f32 %v1547, %v1930
      %v2071 = vadd.f32 %v1716, %v1930
      %v2072 = vadd.f32 %v1550, %v1935
      %v2073 = vadd.f32 %v1719, %v1935
      %v2074 = vadd.f32 %v1552, %v1940
      %v2075 = vadd.f32 %v1721, %v1940
      %v2076 = vadd.f32 %v1555, %v1945
      %v2077 = vadd.f32 %v1724, %v1945
      %v2078 = vadd.f32 %v1557, %v1950
      %v2079 = vadd.f32 %v1726, %v1950
      %v2080 = vmax.f32 %v1776, 0.0
      %v2081 = vmax.f32 %v1777, 0.0
      %v2082 = vmax.f32 %v1778, 0.0
      %v2083 = vmax.f32 %v1779, 0.0
      %v2084 = vmax.f32 %v1780, 0.0
      %v2085 = vmax.f32 %v1781, 0.0
      %v2086 = vmax.f32 %v1782, 0.0
      %v2087 = vmax.f32 %v1783, 0.0
      %v2088 = vmax.f32 %v1784, 0.0
      %v2089 = vmax.f32 %v1785, 0.0
      %v2090 = vmax.f32 %v1786, 0.0
      %v2091 = vmax.f32 %v1787, 0.0
      %v2092 = vmax.f32 %v1788, 0.0
      %v2093 = vmax.f32 %v1789, 0.0
      %v2094 = vmax.f32 %v1790, 0.0
      %v2095 = vmax.f32 %v1791, 0.0
      %v2096 = vmax.f32 %v1792, 0.0
      %v2097 = vmax.f32 %v1793, 0.0
      %v2098 = vmax.f32 %v1794, 0.0
      %v2099 = vmax.f32 %v1795, 0.0
      %v2100 = vmax.f32 %v1796, 0.0
      %v2101 = vmax.f32 %v1797, 0.0
      %v2102 = vmax.f32 %v1798, 0.0
      %v2103 = vmax.f32 %v1799, 0.0
      %v2104 = vmax.f32 %v1800, 0.0
      %v2105 = vmax.f32 %v1801, 0.0
      %v2106 = vmax.f32 %v1802, 0.0
      %v2107 = vmax.f32 %v1803, 0.0
      %v2108 = vmax.f32 %v1804, 0.0
      %v2109 = vmax.f32 %v1805, 0.0
      %v2110 = vmax.f32 %v1806, 0.0
      %v2111 = vmax.f32 %v1807, 0.0
      %v2112 = vmax.f32 %v1808, 0.0
      %v2113 = vmax.f32 %v1809, 0.0
      %v2114 = vmax.f32 %v1810, 0.0
      %v2115 = vmax.f32 %v1811, 0.0
      %v2116 = vmax.f32 %v1812, 0.0
      %v2117 = vmax.f32 %v1813, 0.0
      %v2118 = vmax.f32 %v1814, 0.0
      %v2119 = vmax.f32 %v1815, 0.0
      %v2120 = vmax.f32 %v1816, 0.0
      %v2121 = vmax.f32 %v1817, 0.0
      %v2122 = vmax.f32 %v1818, 0.0
      %v2123 = vmax.f32 %v1819, 0.0
      %v2124 = vmax.f32 %v1820, 0.0
      %v2125 = vmax.f32 %v1821, 0.0
      %v2126 = vmax.f32 %v1822, 0.0
      %v2127 = vmax.f32 %v1823, 0.0
      %v2128 = vmax.f32 %v1824, 0.0
      %v2129 = vmax.f32 %v1825, 0.0
      %v2130 = vmax.f32 %v1826, 0.0
      %v2131 = vmax.f32 %v1827, 0.0
      %v2132 = vmax.f32 %v1828, 0.0
      %v2133 = vmax.f32 %v1829, 0.0
      %v2134 = vmax.f32 %v1830, 0.0
      %v2135 = vmax.f32 %v1831, 0.0
      %v2136 = vmax.f32 %v1832, 0.0
      %v2137 = vmax.f32 %v1833, 0.0
      %v2138 = vmax.f32 %v1834, 0.0
      %v2139 = vmax.f32 %v1835, 0.0
      %v2140 = vmax.f32 %v1836, 0.0
      %v2141 = vmax.f32 %v1837, 0.0
      %v2142 = vmax.f32 %v1838, 0.0
      %v2143 = vmax.f32 %v1839, 0.0
      %v2144 = vmax.f32 %v1840, 0.0
      %v2145 = vmax.f32 %v1841, 0.0
      %v2146 = vmax.f32 %v1842, 0.0
      %v2147 = vmax.f32 %v1843, 0.0
      %v2148 = vmax.f32 %v1844, 0.0
      %v2149 = vmax.f32 %v1845, 0.0
      %v2150 = vmax.f32 %v1846, 0.0
      %v2151 = vmax.f32 %v1847, 0.0
      %v2152 = vmax.f32 %v1848, 0.0
      %v2153 = vmax.f32 %v1849, 0.0
      %v2154 = vmax.f32 %v1850, 0.0
      %v2155 = vmax.f32 %v1851, 0.0
      %v2156 = vmax.f32 %v1852, 0.0
      %v2157 = vmax.f32 %v1853, 0.0
      %v2158 = vmax.f32 %v1854, 0.0
      %v2159 = vmax.f32 %v1855, 0.0
      %v2160 = vmax.f32 %v1856, 0.0
      %v2161 = vmax.f32 %v1857, 0.0
      %v2162 = vmax.f32 %v1858, 0.0
      %v2163 = vmax.f32 %v1859, 0.0
      %v2164 = vmax.f32 %v1860, 0.0
      %v2165 = vmax.f32 %v1861, 0.0
      %v2166 = vmax.f32 %v1862, 0.0
      %v2167 = vmax.f32 %v1863, 0.0
      %v2168 = vmax.f32 %v1864, 0.0
      %v2169 = vmax.f32 %v1865, 0.0
      %v2170 = vmax.f32 %v1866, 0.0
      %v2171 = vmax.f32 %v1867, 0.0
      %v2172 = vmax.f32 %v1868, 0.0
      %v2173 = vmax.f32 %v1869, 0.0
      %v2174 = vmax.f32 %v1870, 0.0
      %v2175 = vmax.f32 %v1871, 0.0
      %v2176 = vmax.f32 %v1872, 0.0
      %v2177 = vmax.f32 %v1873, 0.0
      %v2178 = vmax.f32 %v1874, 0.0
      %v2179 = vmax.f32 %v1875, 0.0
      %v2180 = vmax.f32 %v1876, 0.0
      %v2181 = vmax.f32 %v1877, 0.0
      %v2182 = vmax.f32 %v1878, 0.0
      %v2183 = vmax.f32 %v1879, 0.0
      %v2184 = vmax.f32 %v1880, 0.0
      %v2185 = vmax.f32 %v1881, 0.0
      %v2186 = vmax.f32 %v1882, 0.0
      %v2187 = vmax.f32 %v1883, 0.0
      %v2188 = vmax.f32 %v1884, 0.0
      %v2189 = vmax.f32 %v1885, 0.0
      %v2190 = vmax.f32 %v1886, 0.0
      %v2191 = vmax.f32 %v1887, 0.0
      %v2192 = vmax.f32 %v1888, 0.0
      %v2193 = vmax.f32 %v1889, 0.0
      %v2194 = vmax.f32 %v1890, 0.0
      %v2195 = vmax.f32 %v1891, 0.0
      %v2196 = vmax.f32 %v1892, 0.0
      %v2197 = vmax.f32 %v1893, 0.0
      %v2198 = vmax.f32 %v1894, 0.0
      %v2199 = vmax.f32 %v1895, 0.0
      %v2200 = vmax.f32 %v1896, 0.0
      %v2201 = vmax.f32 %v1897, 0.0
      %v2202 = vmax.f32 %v1898, 0.0
      %v2203 = vmax.f32 %v1899, 0.0
      %v2204 = vmax.f32 %v1900, 0.0
      %v2205 = vmax.f32 %v1901, 0.0
      %v2206 = vmax.f32 %v1902, 0.0
      %v2207 = vmax.f32 %v1903, 0.0
      %v2208 = vadd.f32 %v2080, %v2081
      %2209 = vadd.xlane.f32.xlu0 %v2208
      %v2210 = vpop.xlane.xlu0 %2209
      %v2211 = vadd.f32 %v2082, %v2083
      %2212 = vadd.xlane.f32.xlu0 %v2211
      %v2213 = vpop.xlane.xlu0 %2212
      %v2214 = vadd.f32 %v2084, %v2085
      %2215 = vadd.xlane.f32.xlu0 %v2214
      %v2216 = vpop.xlane.xlu0 %2215
      %v2217 = vadd.f32 %v2086, %v2087
      %2218 = vadd.xlane.f32.xlu0 %v2217
      %v2219 = vpop.xlane.xlu0 %2218
      %v2220 = vadd.f32 %v2088, %v2089
      %2221 = vadd.xlane.f32.xlu0 %v2220
      %v2222 = vpop.xlane.xlu0 %2221
      %v2223 = vadd.f32 %v2090, %v2091
      %2224 = vadd.xlane.f32.xlu0 %v2223
      %v2225 = vpop.xlane.xlu0 %2224
      %v2226 = vadd.f32 %v2092, %v2093
      %2227 = vadd.xlane.f32.xlu0 %v2226
      %v2228 = vpop.xlane.xlu0 %2227
      %v2229 = vadd.f32 %v2094, %v2095
      %2230 = vadd.xlane.f32.xlu0 %v2229
      %v2231 = vpop.xlane.xlu0 %2230
      %v2232 = vadd.f32 %v2096, %v2097
      %2233 = vadd.xlane.f32.xlu0 %v2232
      %v2234 = vpop.xlane.xlu0 %2233
      %v2235 = vadd.f32 %v2098, %v2099
      %2236 = vadd.xlane.f32.xlu0 %v2235
      %v2237 = vpop.xlane.xlu0 %2236
      %v2238 = vadd.f32 %v2100, %v2101
      %2239 = vadd.xlane.f32.xlu0 %v2238
      %v2240 = vpop.xlane.xlu0 %2239
      %v2241 = vadd.f32 %v2102, %v2103
      %2242 = vadd.xlane.f32.xlu0 %v2241
      %v2243 = vpop.xlane.xlu0 %2242
      %v2244 = vadd.f32 %v2104, %v2105
      %2245 = vadd.xlane.f32.xlu0 %v2244
      %v2246 = vpop.xlane.xlu0 %2245
      %v2247 = vadd.f32 %v2106, %v2107
      %2248 = vadd.xlane.f32.xlu0 %v2247
      %v2249 = vpop.xlane.xlu0 %2248
      %v2250 = vadd.f32 %v2108, %v2109
      %2251 = vadd.xlane.f32.xlu0 %v2250
      %v2252 = vpop.xlane.xlu0 %2251
      %v2253 = vadd.f32 %v2110, %v2111
      %2254 = vadd.xlane.f32.xlu0 %v2253
      %v2255 = vpop.xlane.xlu0 %2254
      %v2256 = vadd.f32 %v2112, %v2113
      %2257 = vadd.xlane.f32.xlu0 %v2256
      %v2258 = vpop.xlane.xlu0 %2257
      %v2259 = vadd.f32 %v2114, %v2115
      %2260 = vadd.xlane.f32.xlu0 %v2259
      %v2261 = vpop.xlane.xlu0 %2260
      %v2262 = vadd.f32 %v2116, %v2117
      %2263 = vadd.xlane.f32.xlu0 %v2262
      %v2264 = vpop.xlane.xlu0 %2263
      %v2265 = vadd.f32 %v2118, %v2119
      %2266 = vadd.xlane.f32.xlu0 %v2265
      %v2267 = vpop.xlane.xlu0 %2266
      %v2268 = vadd.f32 %v2120, %v2121
      %2269 = vadd.xlane.f32.xlu0 %v2268
      %v2270 = vpop.xlane.xlu0 %2269
      %v2271 = vadd.f32 %v2122, %v2123
      %2272 = vadd.xlane.f32.xlu0 %v2271
      %v2273 = vpop.xlane.xlu0 %2272
      %v2274 = vadd.f32 %v2124, %v2125
      %2275 = vadd.xlane.f32.xlu0 %v2274
      %v2276 = vpop.xlane.xlu0 %2275
      %v2277 = vadd.f32 %v2126, %v2127
      %2278 = vadd.xlane.f32.xlu0 %v2277
      %v2279 = vpop.xlane.xlu0 %2278
      %v2280 = vadd.f32 %v2128, %v2129
      %2281 = vadd.xlane.f32.xlu0 %v2280
      %v2282 = vpop.xlane.xlu0 %2281
      %v2283 = vadd.f32 %v2130, %v2131
      %2284 = vadd.xlane.f32.xlu0 %v2283
      %v2285 = vpop.xlane.xlu0 %2284
      %v2286 = vadd.f32 %v2132, %v2133
      %2287 = vadd.xlane.f32.xlu0 %v2286
      %v2288 = vpop.xlane.xlu0 %2287
      %v2289 = vadd.f32 %v2134, %v2135
      %2290 = vadd.xlane.f32.xlu0 %v2289
      %v2291 = vpop.xlane.xlu0 %2290
      %v2292 = vadd.f32 %v2136, %v2137
      %2293 = vadd.xlane.f32.xlu0 %v2292
      %v2294 = vpop.xlane.xlu0 %2293
      %v2295 = vadd.f32 %v2138, %v2139
      %2296 = vadd.xlane.f32.xlu0 %v2295
      %v2297 = vpop.xlane.xlu0 %2296
      %v2298 = vadd.f32 %v2140, %v2141
      %2299 = vadd.xlane.f32.xlu0 %v2298
      %v2300 = vpop.xlane.xlu0 %2299
      %v2301 = vadd.f32 %v2142, %v2143
      %2302 = vadd.xlane.f32.xlu0 %v2301
      %v2303 = vpop.xlane.xlu0 %2302
      %v2304 = vadd.f32 %v2144, %v2145
      %2305 = vadd.xlane.f32.xlu0 %v2304
      %v2306 = vpop.xlane.xlu0 %2305
      %v2307 = vadd.f32 %v2146, %v2147
      %2308 = vadd.xlane.f32.xlu0 %v2307
      %v2309 = vpop.xlane.xlu0 %2308
      %v2310 = vadd.f32 %v2148, %v2149
      %2311 = vadd.xlane.f32.xlu0 %v2310
      %v2312 = vpop.xlane.xlu0 %2311
      %v2313 = vadd.f32 %v2150, %v2151
      %2314 = vadd.xlane.f32.xlu0 %v2313
      %v2315 = vpop.xlane.xlu0 %2314
      %v2316 = vadd.f32 %v2152, %v2153
      %2317 = vadd.xlane.f32.xlu0 %v2316
      %v2318 = vpop.xlane.xlu0 %2317
      %v2319 = vadd.f32 %v2154, %v2155
      %2320 = vadd.xlane.f32.xlu0 %v2319
      %v2321 = vpop.xlane.xlu0 %2320
      %v2322 = vadd.f32 %v2156, %v2157
      %2323 = vadd.xlane.f32.xlu0 %v2322
      %v2324 = vpop.xlane.xlu0 %2323
      %v2325 = vadd.f32 %v2158, %v2159
      %2326 = vadd.xlane.f32.xlu0 %v2325
      %v2327 = vpop.xlane.xlu0 %2326
      %v2328 = vadd.f32 %v2160, %v2161
      %2329 = vadd.xlane.f32.xlu0 %v2328
      %v2330 = vpop.xlane.xlu0 %2329
      %v2331 = vadd.f32 %v2162, %v2163
      %2332 = vadd.xlane.f32.xlu0 %v2331
      %v2333 = vpop.xlane.xlu0 %2332
      %v2334 = vadd.f32 %v2164, %v2165
      %2335 = vadd.xlane.f32.xlu0 %v2334
      %v2336 = vpop.xlane.xlu0 %2335
      %v2337 = vadd.f32 %v2166, %v2167
      %2338 = vadd.xlane.f32.xlu0 %v2337
      %v2339 = vpop.xlane.xlu0 %2338
      %v2340 = vadd.f32 %v2168, %v2169
      %2341 = vadd.xlane.f32.xlu0 %v2340
      %v2342 = vpop.xlane.xlu0 %2341
      %v2343 = vadd.f32 %v2170, %v2171
      %2344 = vadd.xlane.f32.xlu0 %v2343
      %v2345 = vpop.xlane.xlu0 %2344
      %v2346 = vadd.f32 %v2172, %v2173
      %2347 = vadd.xlane.f32.xlu0 %v2346
      %v2348 = vpop.xlane.xlu0 %2347
      %v2349 = vadd.f32 %v2174, %v2175
      %2350 = vadd.xlane.f32.xlu0 %v2349
      %v2351 = vpop.xlane.xlu0 %2350
      %v2352 = vadd.f32 %v2176, %v2177
      %2353 = vadd.xlane.f32.xlu0 %v2352
      %v2354 = vpop.xlane.xlu0 %2353
      %v2355 = vadd.f32 %v2178, %v2179
      %2356 = vadd.xlane.f32.xlu0 %v2355
      %v2357 = vpop.xlane.xlu0 %2356
      %v2358 = vadd.f32 %v2180, %v2181
      %2359 = vadd.xlane.f32.xlu0 %v2358
      %v2360 = vpop.xlane.xlu0 %2359
      %v2361 = vadd.f32 %v2182, %v2183
      %2362 = vadd.xlane.f32.xlu0 %v2361
      %v2363 = vpop.xlane.xlu0 %2362
      %v2364 = vadd.f32 %v2184, %v2185
      %2365 = vadd.xlane.f32.xlu0 %v2364
      %v2366 = vpop.xlane.xlu0 %2365
      %v2367 = vadd.f32 %v2186, %v2187
      %2368 = vadd.xlane.f32.xlu0 %v2367
      %v2369 = vpop.xlane.xlu0 %2368
      %v2370 = vadd.f32 %v2188, %v2189
      %2371 = vadd.xlane.f32.xlu0 %v2370
      %v2372 = vpop.xlane.xlu0 %2371
      %v2373 = vadd.f32 %v2190, %v2191
      %2374 = vadd.xlane.f32.xlu0 %v2373
      %v2375 = vpop.xlane.xlu0 %2374
      %v2376 = vadd.f32 %v2192, %v2193
      %2377 = vadd.xlane.f32.xlu0 %v2376
      %v2378 = vpop.xlane.xlu0 %2377
      %v2379 = vadd.f32 %v2194, %v2195
      %2380 = vadd.xlane.f32.xlu0 %v2379
      %v2381 = vpop.xlane.xlu0 %2380
      %v2382 = vadd.f32 %v2196, %v2197
      %2383 = vadd.xlane.f32.xlu0 %v2382
      %v2384 = vpop.xlane.xlu0 %2383
      %v2385 = vadd.f32 %v2198, %v2199
      %2386 = vadd.xlane.f32.xlu0 %v2385
      %v2387 = vpop.xlane.xlu0 %2386
      %v2388 = vadd.f32 %v2200, %v2201
      %2389 = vadd.xlane.f32.xlu0 %v2388
      %v2390 = vpop.xlane.xlu0 %2389
      %v2391 = vadd.f32 %v2202, %v2203
      %2392 = vadd.xlane.f32.xlu0 %v2391
      %v2393 = vpop.xlane.xlu0 %2392
      %v2394 = vadd.f32 %v2204, %v2205
      %2395 = vadd.xlane.f32.xlu0 %v2394
      %v2396 = vpop.xlane.xlu0 %2395
      %v2397 = vadd.f32 %v2206, %v2207
      %2398 = vadd.xlane.f32.xlu0 %v2397
      %v2399 = vpop.xlane.xlu0 %2398
      %v2400 = vmul.f32 %v2210, 0.00390625
      %v2401 = vmul.f32 %v2213, 0.00390625
      %v2402 = vmul.f32 %v2216, 0.00390625
      %v2403 = vmul.f32 %v2219, 0.00390625
      %v2404 = vmul.f32 %v2222, 0.00390625
      %v2405 = vmul.f32 %v2225, 0.00390625
      %v2406 = vmul.f32 %v2228, 0.00390625
      %v2407 = vmul.f32 %v2231, 0.00390625
      %v2408 = vmul.f32 %v2234, 0.00390625
      %v2409 = vmul.f32 %v2237, 0.00390625
      %v2410 = vmul.f32 %v2240, 0.00390625
      %v2411 = vmul.f32 %v2243, 0.00390625
      %v2412 = vmul.f32 %v2246, 0.00390625
      %v2413 = vmul.f32 %v2249, 0.00390625
      %v2414 = vmul.f32 %v2252, 0.00390625
      %v2415 = vmul.f32 %v2255, 0.00390625
      %v2416 = vmul.f32 %v2258, 0.00390625
      %v2417 = vmul.f32 %v2261, 0.00390625
      %v2418 = vmul.f32 %v2264, 0.00390625
      %v2419 = vmul.f32 %v2267, 0.00390625
      %v2420 = vmul.f32 %v2270, 0.00390625
      %v2421 = vmul.f32 %v2273, 0.00390625
      %v2422 = vmul.f32 %v2276, 0.00390625
      %v2423 = vmul.f32 %v2279, 0.00390625
      %v2424 = vmul.f32 %v2282, 0.00390625
      %v2425 = vmul.f32 %v2285, 0.00390625
      %v2426 = vmul.f32 %v2288, 0.00390625
      %v2427 = vmul.f32 %v2291, 0.00390625
      %v2428 = vmul.f32 %v2294, 0.00390625
      %v2429 = vmul.f32 %v2297, 0.00390625
      %v2430 = vmul.f32 %v2300, 0.00390625
      %v2431 = vmul.f32 %v2303, 0.00390625
      %v2432 = vmul.f32 %v2306, 0.00390625
      %v2433 = vmul.f32 %v2309, 0.00390625
      %v2434 = vmul.f32 %v2312, 0.00390625
      %v2435 = vmul.f32 %v2315, 0.00390625
      %v2436 = vmul.f32 %v2318, 0.00390625
      %v2437 = vmul.f32 %v2321, 0.00390625
      %v2438 = vmul.f32 %v2324, 0.00390625
      %v2439 = vmul.f32 %v2327, 0.00390625
      %v2440 = vmul.f32 %v2330, 0.00390625
      %v2441 = vmul.f32 %v2333, 0.00390625
      %v2442 = vmul.f32 %v2336, 0.00390625
      %v2443 = vmul.f32 %v2339, 0.00390625
      %v2444 = vmul.f32 %v2342, 0.00390625
      %v2445 = vmul.f32 %v2345, 0.00390625
      %v2446 = vmul.f32 %v2348, 0.00390625
      %v2447 = vmul.f32 %v2351, 0.00390625
      %v2448 = vmul.f32 %v2354, 0.00390625
      %v2449 = vmul.f32 %v2357, 0.00390625
      %v2450 = vmul.f32 %v2360, 0.00390625
      %v2451 = vmul.f32 %v2363, 0.00390625
      %v2452 = vmul.f32 %v2366, 0.00390625
      %v2453 = vmul.f32 %v2369, 0.00390625
      %v2454 = vmul.f32 %v2372, 0.00390625
      %v2455 = vmul.f32 %v2375, 0.00390625
      %v2456 = vmul.f32 %v2378, 0.00390625
      %v2457 = vmul.f32 %v2381, 0.00390625
      %v2458 = vmul.f32 %v2384, 0.00390625
      %v2459 = vmul.f32 %v2387, 0.00390625
      %v2460 = vmul.f32 %v2390, 0.00390625
      %v2461 = vmul.f32 %v2393, 0.00390625
      %v2462 = vmul.f32 %v2396, 0.00390625
      %v2463 = vmul.f32 %v2399, 0.00390625
      %v2464 = vmax.f32 %v1952, 0.0
      %v2465 = vmax.f32 %v1953, 0.0
      %v2466 = vmax.f32 %v1954, 0.0
      %v2467 = vmax.f32 %v1955, 0.0
      %v2468 = vmax.f32 %v1956, 0.0
      %v2469 = vmax.f32 %v1957, 0.0
      %v2470 = vmax.f32 %v1958, 0.0
      %v2471 = vmax.f32 %v1959, 0.0
      %v2472 = vmax.f32 %v1960, 0.0
      %v2473 = vmax.f32 %v1961, 0.0
      %v2474 = vmax.f32 %v1962, 0.0
      %v2475 = vmax.f32 %v1963, 0.0
      %v2476 = vmax.f32 %v1964, 0.0
      %v2477 = vmax.f32 %v1965, 0.0
      %v2478 = vmax.f32 %v1966, 0.0
      %v2479 = vmax.f32 %v1967, 0.0
      %v2480 = vmax.f32 %v1968, 0.0
      %v2481 = vmax.f32 %v1969, 0.0
      %v2482 = vmax.f32 %v1970, 0.0
      %v2483 = vmax.f32 %v1971, 0.0
      %v2484 = vmax.f32 %v1972, 0.0
      %v2485 = vmax.f32 %v1973, 0.0
      %v2486 = vmax.f32 %v1974, 0.0
      %v2487 = vmax.f32 %v1975, 0.0
      %v2488 = vmax.f32 %v1976, 0.0
      %v2489 = vmax.f32 %v1977, 0.0
      %v2490 = vmax.f32 %v1978, 0.0
      %v2491 = vmax.f32 %v1979, 0.0
      %v2492 = vmax.f32 %v1980, 0.0
      %v2493 = vmax.f32 %v1981, 0.0
      %v2494 = vmax.f32 %v1982, 0.0
      %v2495 = vmax.f32 %v1983, 0.0
      %v2496 = vmax.f32 %v1984, 0.0
      %v2497 = vmax.f32 %v1985, 0.0
      %v2498 = vmax.f32 %v1986, 0.0
      %v2499 = vmax.f32 %v1987, 0.0
      %v2500 = vmax.f32 %v1988, 0.0
      %v2501 = vmax.f32 %v1989, 0.0
      %v2502 = vmax.f32 %v1990, 0.0
      %v2503 = vmax.f32 %v1991, 0.0
      %v2504 = vmax.f32 %v1992, 0.0
      %v2505 = vmax.f32 %v1993, 0.0
      %v2506 = vmax.f32 %v1994, 0.0
      %v2507 = vmax.f32 %v1995, 0.0
      %v2508 = vmax.f32 %v1996, 0.0
      %v2509 = vmax.f32 %v1997, 0.0
      %v2510 = vmax.f32 %v1998, 0.0
      %v2511 = vmax.f32 %v1999, 0.0
      %v2512 = vmax.f32 %v2000, 0.0
      %v2513 = vmax.f32 %v2001, 0.0
      %v2514 = vmax.f32 %v2002, 0.0
      %v2515 = vmax.f32 %v2003, 0.0
      %v2516 = vmax.f32 %v2004, 0.0
      %v2517 = vmax.f32 %v2005, 0.0
      %v2518 = vmax.f32 %v2006, 0.0
      %v2519 = vmax.f32 %v2007, 0.0
      %v2520 = vmax.f32 %v2008, 0.0
      %v2521 = vmax.f32 %v2009, 0.0
      %v2522 = vmax.f32 %v2010, 0.0
      %v2523 = vmax.f32 %v2011, 0.0
      %v2524 = vmax.f32 %v2012, 0.0
      %v2525 = vmax.f32 %v2013, 0.0
      %v2526 = vmax.f32 %v2014, 0.0
      %v2527 = vmax.f32 %v2015, 0.0
      %v2528 = vmax.f32 %v2016, 0.0
      %v2529 = vmax.f32 %v2017, 0.0
      %v2530 = vmax.f32 %v2018, 0.0
      %v2531 = vmax.f32 %v2019, 0.0
      %v2532 = vmax.f32 %v2020, 0.0
      %v2533 = vmax.f32 %v2021, 0.0
      %v2534 = vmax.f32 %v2022, 0.0
      %v2535 = vmax.f32 %v2023, 0.0
      %v2536 = vmax.f32 %v2024, 0.0
      %v2537 = vmax.f32 %v2025, 0.0
      %v2538 = vmax.f32 %v2026, 0.0
      %v2539 = vmax.f32 %v2027, 0.0
      %v2540 = vmax.f32 %v2028, 0.0
      %v2541 = vmax.f32 %v2029, 0.0
      %v2542 = vmax.f32 %v2030, 0.0
      %v2543 = vmax.f32 %v2031, 0.0
      %v2544 = vmax.f32 %v2032, 0.0
      %v2545 = vmax.f32 %v2033, 0.0
      %v2546 = vmax.f32 %v2034, 0.0
      %v2547 = vmax.f32 %v2035, 0.0
      %v2548 = vmax.f32 %v2036, 0.0
      %v2549 = vmax.f32 %v2037, 0.0
      %v2550 = vmax.f32 %v2038, 0.0
      %v2551 = vmax.f32 %v2039, 0.0
      %v2552 = vmax.f32 %v2040, 0.0
      %v2553 = vmax.f32 %v2041, 0.0
      %v2554 = vmax.f32 %v2042, 0.0
      %v2555 = vmax.f32 %v2043, 0.0
      %v2556 = vmax.f32 %v2044, 0.0
      %v2557 = vmax.f32 %v2045, 0.0
      %v2558 = vmax.f32 %v2046, 0.0
      %v2559 = vmax.f32 %v2047, 0.0
      %v2560 = vmax.f32 %v2048, 0.0
      %v2561 = vmax.f32 %v2049, 0.0
      %v2562 = vmax.f32 %v2050, 0.0
      %v2563 = vmax.f32 %v2051, 0.0
      %v2564 = vmax.f32 %v2052, 0.0
      %v2565 = vmax.f32 %v2053, 0.0
      %v2566 = vmax.f32 %v2054, 0.0
      %v2567 = vmax.f32 %v2055, 0.0
      %v2568 = vmax.f32 %v2056, 0.0
      %v2569 = vmax.f32 %v2057, 0.0
      %v2570 = vmax.f32 %v2058, 0.0
      %v2571 = vmax.f32 %v2059, 0.0
      %v2572 = vmax.f32 %v2060, 0.0
      %v2573 = vmax.f32 %v2061, 0.0
      %v2574 = vmax.f32 %v2062, 0.0
      %v2575 = vmax.f32 %v2063, 0.0
      %v2576 = vmax.f32 %v2064, 0.0
      %v2577 = vmax.f32 %v2065, 0.0
      %v2578 = vmax.f32 %v2066, 0.0
      %v2579 = vmax.f32 %v2067, 0.0
      %v2580 = vmax.f32 %v2068, 0.0
      %v2581 = vmax.f32 %v2069, 0.0
      %v2582 = vmax.f32 %v2070, 0.0
      %v2583 = vmax.f32 %v2071, 0.0
      %v2584 = vmax.f32 %v2072, 0.0
      %v2585 = vmax.f32 %v2073, 0.0
      %v2586 = vmax.f32 %v2074, 0.0
      %v2587 = vmax.f32 %v2075, 0.0
      %v2588 = vmax.f32 %v2076, 0.0
      %v2589 = vmax.f32 %v2077, 0.0
      %v2590 = vmax.f32 %v2078, 0.0
      %v2591 = vmax.f32 %v2079, 0.0
      %v2592 = vadd.f32 %v2464, %v2465
      %2593 = vadd.xlane.f32.xlu0 %v2592
      %v2594 = vpop.xlane.xlu0 %2593
      %v2595 = vadd.f32 %v2466, %v2467
      %2596 = vadd.xlane.f32.xlu0 %v2595
      %v2597 = vpop.xlane.xlu0 %2596
      %v2598 = vadd.f32 %v2468, %v2469
      %2599 = vadd.xlane.f32.xlu0 %v2598
      %v2600 = vpop.xlane.xlu0 %2599
      %v2601 = vadd.f32 %v2470, %v2471
      %2602 = vadd.xlane.f32.xlu0 %v2601
      %v2603 = vpop.xlane.xlu0 %2602
      %v2604 = vadd.f32 %v2472, %v2473
      %2605 = vadd.xlane.f32.xlu0 %v2604
      %v2606 = vpop.xlane.xlu0 %2605
      %v2607 = vadd.f32 %v2474, %v2475
      %2608 = vadd.xlane.f32.xlu0 %v2607
      %v2609 = vpop.xlane.xlu0 %2608
      %v2610 = vadd.f32 %v2476, %v2477
      %2611 = vadd.xlane.f32.xlu0 %v2610
      %v2612 = vpop.xlane.xlu0 %2611
      %v2613 = vadd.f32 %v2478, %v2479
      %2614 = vadd.xlane.f32.xlu0 %v2613
      %v2615 = vpop.xlane.xlu0 %2614
      %v2616 = vadd.f32 %v2480, %v2481
      %2617 = vadd.xlane.f32.xlu0 %v2616
      %v2618 = vpop.xlane.xlu0 %2617
      %v2619 = vadd.f32 %v2482, %v2483
      %2620 = vadd.xlane.f32.xlu0 %v2619
      %v2621 = vpop.xlane.xlu0 %2620
      %v2622 = vadd.f32 %v2484, %v2485
      %2623 = vadd.xlane.f32.xlu0 %v2622
      %v2624 = vpop.xlane.xlu0 %2623
      %v2625 = vadd.f32 %v2486, %v2487
      %2626 = vadd.xlane.f32.xlu0 %v2625
      %v2627 = vpop.xlane.xlu0 %2626
      %v2628 = vadd.f32 %v2488, %v2489
      %2629 = vadd.xlane.f32.xlu0 %v2628
      %v2630 = vpop.xlane.xlu0 %2629
      %v2631 = vadd.f32 %v2490, %v2491
      %2632 = vadd.xlane.f32.xlu0 %v2631
      %v2633 = vpop.xlane.xlu0 %2632
      %v2634 = vadd.f32 %v2492, %v2493
      %2635 = vadd.xlane.f32.xlu0 %v2634
      %v2636 = vpop.xlane.xlu0 %2635
      %v2637 = vadd.f32 %v2494, %v2495
      %2638 = vadd.xlane.f32.xlu0 %v2637
      %v2639 = vpop.xlane.xlu0 %2638
      %v2640 = vadd.f32 %v2496, %v2497
      %2641 = vadd.xlane.f32.xlu0 %v2640
      %v2642 = vpop.xlane.xlu0 %2641
      %v2643 = vadd.f32 %v2498, %v2499
      %2644 = vadd.xlane.f32.xlu0 %v2643
      %v2645 = vpop.xlane.xlu0 %2644
      %v2646 = vadd.f32 %v2500, %v2501
      %2647 = vadd.xlane.f32.xlu0 %v2646
      %v2648 = vpop.xlane.xlu0 %2647
      %v2649 = vadd.f32 %v2502, %v2503
      %2650 = vadd.xlane.f32.xlu0 %v2649
      %v2651 = vpop.xlane.xlu0 %2650
      %v2652 = vadd.f32 %v2504, %v2505
      %2653 = vadd.xlane.f32.xlu0 %v2652
      %v2654 = vpop.xlane.xlu0 %2653
      %v2655 = vadd.f32 %v2506, %v2507
      %2656 = vadd.xlane.f32.xlu0 %v2655
      %v2657 = vpop.xlane.xlu0 %2656
      %v2658 = vadd.f32 %v2508, %v2509
      %2659 = vadd.xlane.f32.xlu0 %v2658
      %v2660 = vpop.xlane.xlu0 %2659
      %v2661 = vadd.f32 %v2510, %v2511
      %2662 = vadd.xlane.f32.xlu0 %v2661
      %v2663 = vpop.xlane.xlu0 %2662
      %v2664 = vadd.f32 %v2512, %v2513
      %2665 = vadd.xlane.f32.xlu0 %v2664
      %v2666 = vpop.xlane.xlu0 %2665
      %v2667 = vadd.f32 %v2514, %v2515
      %2668 = vadd.xlane.f32.xlu0 %v2667
      %v2669 = vpop.xlane.xlu0 %2668
      %v2670 = vadd.f32 %v2516, %v2517
      %2671 = vadd.xlane.f32.xlu0 %v2670
      %v2672 = vpop.xlane.xlu0 %2671
      %v2673 = vadd.f32 %v2518, %v2519
      %2674 = vadd.xlane.f32.xlu0 %v2673
      %v2675 = vpop.xlane.xlu0 %2674
      %v2676 = vadd.f32 %v2520, %v2521
      %2677 = vadd.xlane.f32.xlu0 %v2676
      %v2678 = vpop.xlane.xlu0 %2677
      %v2679 = vadd.f32 %v2522, %v2523
      %2680 = vadd.xlane.f32.xlu0 %v2679
      %v2681 = vpop.xlane.xlu0 %2680
      %v2682 = vadd.f32 %v2524, %v2525
      %2683 = vadd.xlane.f32.xlu0 %v2682
      %v2684 = vpop.xlane.xlu0 %2683
      %v2685 = vadd.f32 %v2526, %v2527
      %2686 = vadd.xlane.f32.xlu0 %v2685
      %v2687 = vpop.xlane.xlu0 %2686
      %v2688 = vadd.f32 %v2528, %v2529
      %2689 = vadd.xlane.f32.xlu0 %v2688
      %v2690 = vpop.xlane.xlu0 %2689
      %v2691 = vadd.f32 %v2530, %v2531
      %2692 = vadd.xlane.f32.xlu0 %v2691
      %v2693 = vpop.xlane.xlu0 %2692
      %v2694 = vadd.f32 %v2532, %v2533
      %2695 = vadd.xlane.f32.xlu0 %v2694
      %v2696 = vpop.xlane.xlu0 %2695
      %v2697 = vadd.f32 %v2534, %v2535
      %2698 = vadd.xlane.f32.xlu0 %v2697
      %v2699 = vpop.xlane.xlu0 %2698
      %v2700 = vadd.f32 %v2536, %v2537
      %2701 = vadd.xlane.f32.xlu0 %v2700
      %v2702 = vpop.xlane.xlu0 %2701
      %v2703 = vadd.f32 %v2538, %v2539
      %2704 = vadd.xlane.f32.xlu0 %v2703
      %v2705 = vpop.xlane.xlu0 %2704
      %v2706 = vadd.f32 %v2540, %v2541
      %2707 = vadd.xlane.f32.xlu0 %v2706
      %v2708 = vpop.xlane.xlu0 %2707
      %v2709 = vadd.f32 %v2542, %v2543
      %2710 = vadd.xlane.f32.xlu0 %v2709
      %v2711 = vpop.xlane.xlu0 %2710
      %v2712 = vadd.f32 %v2544, %v2545
      %2713 = vadd.xlane.f32.xlu0 %v2712
      %v2714 = vpop.xlane.xlu0 %2713
      %v2715 = vadd.f32 %v2546, %v2547
      %2716 = vadd.xlane.f32.xlu0 %v2715
      %v2717 = vpop.xlane.xlu0 %2716
      %v2718 = vadd.f32 %v2548, %v2549
      %2719 = vadd.xlane.f32.xlu0 %v2718
      %v2720 = vpop.xlane.xlu0 %2719
      %v2721 = vadd.f32 %v2550, %v2551
      %2722 = vadd.xlane.f32.xlu0 %v2721
      %v2723 = vpop.xlane.xlu0 %2722
      %v2724 = vadd.f32 %v2552, %v2553
      %2725 = vadd.xlane.f32.xlu0 %v2724
      %v2726 = vpop.xlane.xlu0 %2725
      %v2727 = vadd.f32 %v2554, %v2555
      %2728 = vadd.xlane.f32.xlu0 %v2727
      %v2729 = vpop.xlane.xlu0 %2728
      %v2730 = vadd.f32 %v2556, %v2557
      %2731 = vadd.xlane.f32.xlu0 %v2730
      %v2732 = vpop.xlane.xlu0 %2731
      %v2733 = vadd.f32 %v2558, %v2559
      %2734 = vadd.xlane.f32.xlu0 %v2733
      %v2735 = vpop.xlane.xlu0 %2734
      %v2736 = vadd.f32 %v2560, %v2561
      %2737 = vadd.xlane.f32.xlu0 %v2736
      %v2738 = vpop.xlane.xlu0 %2737
      %v2739 = vadd.f32 %v2562, %v2563
      %2740 = vadd.xlane.f32.xlu0 %v2739
      %v2741 = vpop.xlane.xlu0 %2740
      %v2742 = vadd.f32 %v2564, %v2565
      %2743 = vadd.xlane.f32.xlu0 %v2742
      %v2744 = vpop.xlane.xlu0 %2743
      %v2745 = vadd.f32 %v2566, %v2567
      %2746 = vadd.xlane.f32.xlu0 %v2745
      %v2747 = vpop.xlane.xlu0 %2746
      %v2748 = vadd.f32 %v2568, %v2569
      %2749 = vadd.xlane.f32.xlu0 %v2748
      %v2750 = vpop.xlane.xlu0 %2749
      %v2751 = vadd.f32 %v2570, %v2571
      %2752 = vadd.xlane.f32.xlu0 %v2751
      %v2753 = vpop.xlane.xlu0 %2752
      %v2754 = vadd.f32 %v2572, %v2573
      %2755 = vadd.xlane.f32.xlu0 %v2754
      %v2756 = vpop.xlane.xlu0 %2755
      %v2757 = vadd.f32 %v2574, %v2575
      %2758 = vadd.xlane.f32.xlu0 %v2757
      %v2759 = vpop.xlane.xlu0 %2758
      %v2760 = vadd.f32 %v2576, %v2577
      %2761 = vadd.xlane.f32.xlu0 %v2760
      %v2762 = vpop.xlane.xlu0 %2761
      %v2763 = vadd.f32 %v2578, %v2579
      %2764 = vadd.xlane.f32.xlu0 %v2763
      %v2765 = vpop.xlane.xlu0 %2764
      %v2766 = vadd.f32 %v2580, %v2581
      %2767 = vadd.xlane.f32.xlu0 %v2766
      %v2768 = vpop.xlane.xlu0 %2767
      %v2769 = vadd.f32 %v2582, %v2583
      %2770 = vadd.xlane.f32.xlu0 %v2769
      %v2771 = vpop.xlane.xlu0 %2770
      %v2772 = vadd.f32 %v2584, %v2585
      %2773 = vadd.xlane.f32.xlu0 %v2772
      %v2774 = vpop.xlane.xlu0 %2773
      %v2775 = vadd.f32 %v2586, %v2587
      %2776 = vadd.xlane.f32.xlu0 %v2775
      %v2777 = vpop.xlane.xlu0 %2776
      %v2778 = vadd.f32 %v2588, %v2589
      %2779 = vadd.xlane.f32.xlu0 %v2778
      %v2780 = vpop.xlane.xlu0 %2779
      %v2781 = vadd.f32 %v2590, %v2591
      %2782 = vadd.xlane.f32.xlu0 %v2781
      %v2783 = vpop.xlane.xlu0 %2782
      %v2784 = vmul.f32 %v2594, 0.00390625
      %v2785 = vmul.f32 %v2597, 0.00390625
      %v2786 = vmul.f32 %v2600, 0.00390625
      %v2787 = vmul.f32 %v2603, 0.00390625
      %v2788 = vmul.f32 %v2606, 0.00390625
      %v2789 = vmul.f32 %v2609, 0.00390625
      %v2790 = vmul.f32 %v2612, 0.00390625
      %v2791 = vmul.f32 %v2615, 0.00390625
      %v2792 = vmul.f32 %v2618, 0.00390625
      %v2793 = vmul.f32 %v2621, 0.00390625
      %v2794 = vmul.f32 %v2624, 0.00390625
      %v2795 = vmul.f32 %v2627, 0.00390625
      %v2796 = vmul.f32 %v2630, 0.00390625
      %v2797 = vmul.f32 %v2633, 0.00390625
      %v2798 = vmul.f32 %v2636, 0.00390625
      %v2799 = vmul.f32 %v2639, 0.00390625
      %v2800 = vmul.f32 %v2642, 0.00390625
      %v2801 = vmul.f32 %v2645, 0.00390625
      %v2802 = vmul.f32 %v2648, 0.00390625
      %v2803 = vmul.f32 %v2651, 0.00390625
      %v2804 = vmul.f32 %v2654, 0.00390625
      %v2805 = vmul.f32 %v2657, 0.00390625
      %v2806 = vmul.f32 %v2660, 0.00390625
      %v2807 = vmul.f32 %v2663, 0.00390625
      %v2808 = vmul.f32 %v2666, 0.00390625
      %v2809 = vmul.f32 %v2669, 0.00390625
      %v2810 = vmul.f32 %v2672, 0.00390625
      %v2811 = vmul.f32 %v2675, 0.00390625
      %v2812 = vmul.f32 %v2678, 0.00390625
      %v2813 = vmul.f32 %v2681, 0.00390625
      %v2814 = vmul.f32 %v2684, 0.00390625
      %v2815 = vmul.f32 %v2687, 0.00390625
      %v2816 = vmul.f32 %v2690, 0.00390625
      %v2817 = vmul.f32 %v2693, 0.00390625
      %v2818 = vmul.f32 %v2696, 0.00390625
      %v2819 = vmul.f32 %v2699, 0.00390625
      %v2820 = vmul.f32 %v2702, 0.00390625
      %v2821 = vmul.f32 %v2705, 0.00390625
      %v2822 = vmul.f32 %v2708, 0.00390625
      %v2823 = vmul.f32 %v2711, 0.00390625
      %v2824 = vmul.f32 %v2714, 0.00390625
      %v2825 = vmul.f32 %v2717, 0.00390625
      %v2826 = vmul.f32 %v2720, 0.00390625
      %v2827 = vmul.f32 %v2723, 0.00390625
      %v2828 = vmul.f32 %v2726, 0.00390625
      %v2829 = vmul.f32 %v2729, 0.00390625
      %v2830 = vmul.f32 %v2732, 0.00390625
      %v2831 = vmul.f32 %v2735, 0.00390625
      %v2832 = vmul.f32 %v2738, 0.00390625
      %v2833 = vmul.f32 %v2741, 0.00390625
      %v2834 = vmul.f32 %v2744, 0.00390625
      %v2835 = vmul.f32 %v2747, 0.00390625
      %v2836 = vmul.f32 %v2750, 0.00390625
      %v2837 = vmul.f32 %v2753, 0.00390625
      %v2838 = vmul.f32 %v2756, 0.00390625
      %v2839 = vmul.f32 %v2759, 0.00390625
      %v2840 = vmul.f32 %v2762, 0.00390625
      %v2841 = vmul.f32 %v2765, 0.00390625
      %v2842 = vmul.f32 %v2768, 0.00390625
      %v2843 = vmul.f32 %v2771, 0.00390625
      %v2844 = vmul.f32 %v2774, 0.00390625
      %v2845 = vmul.f32 %v2777, 0.00390625
      %v2846 = vmul.f32 %v2780, 0.00390625
      %v2847 = vmul.f32 %v2783, 0.00390625
      %v2912 = vlaneseq
      %v2913 = vand.u32 %v2912, 127
      %v2914 = vperm.slane %v2400, %v2913
      %v2915 = vadd.s32 %v2913, 4294967288
      %v2916 = vperm.slane %v2401, %v2915
      %vm2917 = vcmask 130112
      %v2918 = vsel %vm2917, %v2916, %v2914
      %v2919 = vadd.s32 %v2913, 4294967280
      %v2920 = vperm.slane %v2402, %v2919
      %vm2921 = vcmask 195712
      %v2922 = vsel %vm2921, %v2920, %v2918
      %v2923 = vadd.s32 %v2913, 4294967272
      %v2924 = vperm.slane %v2403, %v2923
      %vm2925 = vcmask 261312
      %v2926 = vsel %vm2925, %v2924, %v2922
      %v2927 = vadd.s32 %v2913, 4294967264
      %v2928 = vperm.slane %v2404, %v2927
      %vm2929 = vcmask 326912
      %v2930 = vsel %vm2929, %v2928, %v2926
      %v2931 = vadd.s32 %v2913, 4294967256
      %v2932 = vperm.slane %v2405, %v2931
      %vm2933 = vcmask 392512
      %v2934 = vsel %vm2933, %v2932, %v2930
      %v2935 = vadd.s32 %v2913, 4294967248
      %v2936 = vperm.slane %v2406, %v2935
      %vm2937 = vcmask 458112
      %v2938 = vsel %vm2937, %v2936, %v2934
      %v2939 = vadd.s32 %v2913, 4294967240
      %v2940 = vperm.slane %v2407, %v2939
      %vm2941 = vcmask 523712
      %v2942 = vsel %vm2941, %v2940, %v2938
      %v2943 = vperm.slane %v2408, %v2913
      %v2944 = vperm.slane %v2409, %v2915
      %v2945 = vsel %vm2917, %v2944, %v2943
      %v2946 = vperm.slane %v2410, %v2919
      %v2947 = vsel %vm2921, %v2946, %v2945
      %v2948 = vperm.slane %v2411, %v2923
      %v2949 = vsel %vm2925, %v2948, %v2947
      %v2950 = vperm.slane %v2412, %v2927
      %v2951 = vsel %vm2929, %v2950, %v2949
      %v2952 = vperm.slane %v2413, %v2931
      %v2953 = vsel %vm2933, %v2952, %v2951
      %v2954 = vperm.slane %v2414, %v2935
      %v2955 = vsel %vm2937, %v2954, %v2953
      %v2956 = vperm.slane %v2415, %v2939
      %v2957 = vsel %vm2941, %v2956, %v2955
      %v2958 = vperm.slane %v2416, %v2913
      %v2959 = vperm.slane %v2417, %v2915
      %v2960 = vsel %vm2917, %v2959, %v2958
      %v2961 = vperm.slane %v2418, %v2919
      %v2962 = vsel %vm2921, %v2961, %v2960
      %v2963 = vperm.slane %v2419, %v2923
      %v2964 = vsel %vm2925, %v2963, %v2962
      %v2965 = vperm.slane %v2420, %v2927
      %v2966 = vsel %vm2929, %v2965, %v2964
      %v2967 = vperm.slane %v2421, %v2931
      %v2968 = vsel %vm2933, %v2967, %v2966
      %v2969 = vperm.slane %v2422, %v2935
      %v2970 = vsel %vm2937, %v2969, %v2968
      %v2971 = vperm.slane %v2423, %v2939
      %v2972 = vsel %vm2941, %v2971, %v2970
      %v2973 = vperm.slane %v2424, %v2913
      %v2974 = vperm.slane %v2425, %v2915
      %v2975 = vsel %vm2917, %v2974, %v2973
      %v2976 = vperm.slane %v2426, %v2919
      %v2977 = vsel %vm2921, %v2976, %v2975
      %v2978 = vperm.slane %v2427, %v2923
      %v2979 = vsel %vm2925, %v2978, %v2977
      %v2980 = vperm.slane %v2428, %v2927
      %v2981 = vsel %vm2929, %v2980, %v2979
      %v2982 = vperm.slane %v2429, %v2931
      %v2983 = vsel %vm2933, %v2982, %v2981
      %v2984 = vperm.slane %v2430, %v2935
      %v2985 = vsel %vm2937, %v2984, %v2983
      %v2986 = vperm.slane %v2431, %v2939
      %v2987 = vsel %vm2941, %v2986, %v2985
      %v2988 = vperm.slane %v2432, %v2913
      %v2989 = vperm.slane %v2433, %v2915
      %v2990 = vsel %vm2917, %v2989, %v2988
      %v2991 = vperm.slane %v2434, %v2919
      %v2992 = vsel %vm2921, %v2991, %v2990
      %v2993 = vperm.slane %v2435, %v2923
      %v2994 = vsel %vm2925, %v2993, %v2992
      %v2995 = vperm.slane %v2436, %v2927
      %v2996 = vsel %vm2929, %v2995, %v2994
      %v2997 = vperm.slane %v2437, %v2931
      %v2998 = vsel %vm2933, %v2997, %v2996
      %v2999 = vperm.slane %v2438, %v2935
      %v3000 = vsel %vm2937, %v2999, %v2998
      %v3001 = vperm.slane %v2439, %v2939
      %v3002 = vsel %vm2941, %v3001, %v3000
      %v3003 = vperm.slane %v2440, %v2913
      %v3004 = vperm.slane %v2441, %v2915
      %v3005 = vsel %vm2917, %v3004, %v3003
      %v3006 = vperm.slane %v2442, %v2919
      %v3007 = vsel %vm2921, %v3006, %v3005
      %v3008 = vperm.slane %v2443, %v2923
      %v3009 = vsel %vm2925, %v3008, %v3007
      %v3010 = vperm.slane %v2444, %v2927
      %v3011 = vsel %vm2929, %v3010, %v3009
      %v3012 = vperm.slane %v2445, %v2931
      %v3013 = vsel %vm2933, %v3012, %v3011
      %v3014 = vperm.slane %v2446, %v2935
      %v3015 = vsel %vm2937, %v3014, %v3013
      %v3016 = vperm.slane %v2447, %v2939
      %v3017 = vsel %vm2941, %v3016, %v3015
      %v3018 = vperm.slane %v2448, %v2913
      %v3019 = vperm.slane %v2449, %v2915
      %v3020 = vsel %vm2917, %v3019, %v3018
      %v3021 = vperm.slane %v2450, %v2919
      %v3022 = vsel %vm2921, %v3021, %v3020
      %v3023 = vperm.slane %v2451, %v2923
      %v3024 = vsel %vm2925, %v3023, %v3022
      %v3025 = vperm.slane %v2452, %v2927
      %v3026 = vsel %vm2929, %v3025, %v3024
      %v3027 = vperm.slane %v2453, %v2931
      %v3028 = vsel %vm2933, %v3027, %v3026
      %v3029 = vperm.slane %v2454, %v2935
      %v3030 = vsel %vm2937, %v3029, %v3028
      %v3031 = vperm.slane %v2455, %v2939
      %v3032 = vsel %vm2941, %v3031, %v3030
      %v3033 = vperm.slane %v2456, %v2913
      %v3034 = vperm.slane %v2457, %v2915
      %v3035 = vsel %vm2917, %v3034, %v3033
      %v3036 = vperm.slane %v2458, %v2919
      %v3037 = vsel %vm2921, %v3036, %v3035
      %v3038 = vperm.slane %v2459, %v2923
      %v3039 = vsel %vm2925, %v3038, %v3037
      %v3040 = vperm.slane %v2460, %v2927
      %v3041 = vsel %vm2929, %v3040, %v3039
      %v3042 = vperm.slane %v2461, %v2931
      %v3043 = vsel %vm2933, %v3042, %v3041
      %v3044 = vperm.slane %v2462, %v2935
      %v3045 = vsel %vm2937, %v3044, %v3043
      %v3046 = vperm.slane %v2463, %v2939
      %v3047 = vsel %vm2941, %v3046, %v3045
      %vm3048 = vcmask 1041409
      %v3049 = vsel %vm3048, %v2957, %v2942
      %vm3050 = vcmask 1042434
      %v3051 = vsel %vm3050, %v2972, %v3049
      %vm3052 = vcmask 1043459
      %v3053 = vsel %vm3052, %v2987, %v3051
      %vm3054 = vcmask 1044484
      %v3055 = vsel %vm3054, %v3002, %v3053
      %vm3056 = vcmask 1045509
      %v3057 = vsel %vm3056, %v3017, %v3055
      %vm3058 = vcmask 1046534
      %v3059 = vsel %vm3058, %v3032, %v3057
      %vm3060 = vcmask 1047559
      %v3061 = vsel %vm3060, %v3047, %v3059
      %v3127 = vadd.s32 %v2913, 4294967232
      %v3128 = vperm.slane %v2784, %v3127
      %v3129 = vadd.s32 %v2913, 4294967224
      %v3130 = vperm.slane %v2785, %v3129
      %vm3131 = vcmask 654912
      %v3132 = vsel %vm3131, %v3130, %v3128
      %v3133 = vadd.s32 %v2913, 4294967216
      %v3134 = vperm.slane %v2786, %v3133
      %vm3135 = vcmask 720512
      %v3136 = vsel %vm3135, %v3134, %v3132
      %v3137 = vadd.s32 %v2913, 4294967208
      %v3138 = vperm.slane %v2787, %v3137
      %vm3139 = vcmask 786112
      %v3140 = vsel %vm3139, %v3138, %v3136
      %v3141 = vadd.s32 %v2913, 4294967200
      %v3142 = vperm.slane %v2788, %v3141
      %vm3143 = vcmask 851712
      %v3144 = vsel %vm3143, %v3142, %v3140
      %v3145 = vadd.s32 %v2913, 4294967192
      %v3146 = vperm.slane %v2789, %v3145
      %vm3147 = vcmask 917312
      %v3148 = vsel %vm3147, %v3146, %v3144
      %v3149 = vadd.s32 %v2913, 4294967184
      %v3150 = vperm.slane %v2790, %v3149
      %vm3151 = vcmask 982912
      %v3152 = vsel %vm3151, %v3150, %v3148
      %v3153 = vadd.s32 %v2913, 4294967176
      %v3154 = vperm.slane %v2791, %v3153
      %vm3155 = vcmask 1048512
      %v3156 = vsel %vm3155, %v3154, %v3152
      %v3157 = vperm.slane %v2792, %v3127
      %v3158 = vperm.slane %v2793, %v3129
      %v3159 = vsel %vm3131, %v3158, %v3157
      %v3160 = vperm.slane %v2794, %v3133
      %v3161 = vsel %vm3135, %v3160, %v3159
      %v3162 = vperm.slane %v2795, %v3137
      %v3163 = vsel %vm3139, %v3162, %v3161
      %v3164 = vperm.slane %v2796, %v3141
      %v3165 = vsel %vm3143, %v3164, %v3163
      %v3166 = vperm.slane %v2797, %v3145
      %v3167 = vsel %vm3147, %v3166, %v3165
      %v3168 = vperm.slane %v2798, %v3149
      %v3169 = vsel %vm3151, %v3168, %v3167
      %v3170 = vperm.slane %v2799, %v3153
      %v3171 = vsel %vm3155, %v3170, %v3169
      %v3172 = vperm.slane %v2800, %v3127
      %v3173 = vperm.slane %v2801, %v3129
      %v3174 = vsel %vm3131, %v3173, %v3172
      %v3175 = vperm.slane %v2802, %v3133
      %v3176 = vsel %vm3135, %v3175, %v3174
      %v3177 = vperm.slane %v2803, %v3137
      %v3178 = vsel %vm3139, %v3177, %v3176
      %v3179 = vperm.slane %v2804, %v3141
      %v3180 = vsel %vm3143, %v3179, %v3178
      %v3181 = vperm.slane %v2805, %v3145
      %v3182 = vsel %vm3147, %v3181, %v3180
      %v3183 = vperm.slane %v2806, %v3149
      %v3184 = vsel %vm3151, %v3183, %v3182
      %v3185 = vperm.slane %v2807, %v3153
      %v3186 = vsel %vm3155, %v3185, %v3184
      %v3187 = vperm.slane %v2808, %v3127
      %v3188 = vperm.slane %v2809, %v3129
      %v3189 = vsel %vm3131, %v3188, %v3187
      %v3190 = vperm.slane %v2810, %v3133
      %v3191 = vsel %vm3135, %v3190, %v3189
      %v3192 = vperm.slane %v2811, %v3137
      %v3193 = vsel %vm3139, %v3192, %v3191
      %v3194 = vperm.slane %v2812, %v3141
      %v3195 = vsel %vm3143, %v3194, %v3193
      %v3196 = vperm.slane %v2813, %v3145
      %v3197 = vsel %vm3147, %v3196, %v3195
      %v3198 = vperm.slane %v2814, %v3149
      %v3199 = vsel %vm3151, %v3198, %v3197
      %v3200 = vperm.slane %v2815, %v3153
      %v3201 = vsel %vm3155, %v3200, %v3199
      %v3202 = vperm.slane %v2816, %v3127
      %v3203 = vperm.slane %v2817, %v3129
      %v3204 = vsel %vm3131, %v3203, %v3202
      %v3205 = vperm.slane %v2818, %v3133
      %v3206 = vsel %vm3135, %v3205, %v3204
      %v3207 = vperm.slane %v2819, %v3137
      %v3208 = vsel %vm3139, %v3207, %v3206
      %v3209 = vperm.slane %v2820, %v3141
      %v3210 = vsel %vm3143, %v3209, %v3208
      %v3211 = vperm.slane %v2821, %v3145
      %v3212 = vsel %vm3147, %v3211, %v3210
      %v3213 = vperm.slane %v2822, %v3149
      %v3214 = vsel %vm3151, %v3213, %v3212
      %v3215 = vperm.slane %v2823, %v3153
      %v3216 = vsel %vm3155, %v3215, %v3214
      %v3217 = vperm.slane %v2824, %v3127
      %v3218 = vperm.slane %v2825, %v3129
      %v3219 = vsel %vm3131, %v3218, %v3217
      %v3220 = vperm.slane %v2826, %v3133
      %v3221 = vsel %vm3135, %v3220, %v3219
      %v3222 = vperm.slane %v2827, %v3137
      %v3223 = vsel %vm3139, %v3222, %v3221
      %v3224 = vperm.slane %v2828, %v3141
      %v3225 = vsel %vm3143, %v3224, %v3223
      %v3226 = vperm.slane %v2829, %v3145
      %v3227 = vsel %vm3147, %v3226, %v3225
      %v3228 = vperm.slane %v2830, %v3149
      %v3229 = vsel %vm3151, %v3228, %v3227
      %v3230 = vperm.slane %v2831, %v3153
      %v3231 = vsel %vm3155, %v3230, %v3229
      %v3232 = vperm.slane %v2832, %v3127
      %v3233 = vperm.slane %v2833, %v3129
      %v3234 = vsel %vm3131, %v3233, %v3232
      %v3235 = vperm.slane %v2834, %v3133
      %v3236 = vsel %vm3135, %v3235, %v3234
      %v3237 = vperm.slane %v2835, %v3137
      %v3238 = vsel %vm3139, %v3237, %v3236
      %v3239 = vperm.slane %v2836, %v3141
      %v3240 = vsel %vm3143, %v3239, %v3238
      %v3241 = vperm.slane %v2837, %v3145
      %v3242 = vsel %vm3147, %v3241, %v3240
      %v3243 = vperm.slane %v2838, %v3149
      %v3244 = vsel %vm3151, %v3243, %v3242
      %v3245 = vperm.slane %v2839, %v3153
      %v3246 = vsel %vm3155, %v3245, %v3244
      %v3247 = vperm.slane %v2840, %v3127
      %v3248 = vperm.slane %v2841, %v3129
      %v3249 = vsel %vm3131, %v3248, %v3247
      %v3250 = vperm.slane %v2842, %v3133
      %v3251 = vsel %vm3135, %v3250, %v3249
      %v3252 = vperm.slane %v2843, %v3137
      %v3253 = vsel %vm3139, %v3252, %v3251
      %v3254 = vperm.slane %v2844, %v3141
      %v3255 = vsel %vm3143, %v3254, %v3253
      %v3256 = vperm.slane %v2845, %v3145
      %v3257 = vsel %vm3147, %v3256, %v3255
      %v3258 = vperm.slane %v2846, %v3149
      %v3259 = vsel %vm3151, %v3258, %v3257
      %v3260 = vperm.slane %v2847, %v3153
      %v3261 = vsel %vm3155, %v3260, %v3259
      %v3262 = vsel %vm3048, %v3171, %v3156
      %v3263 = vsel %vm3050, %v3186, %v3262
      %v3264 = vsel %vm3052, %v3201, %v3263
      %v3265 = vsel %vm3054, %v3216, %v3264
      %v3266 = vsel %vm3056, %v3231, %v3265
      %v3267 = vsel %vm3058, %v3246, %v3266
      %v3268 = vsel %vm3060, %v3261, %v3267
      %vm3270 = vcmask 523264
      %v3271 = vsel %vm3270, %v3061, %v3268
      %v3272 = vld [vmem:[%s6] sm:$0xff]
      %v3273 = vld [vmem:[%s6 + $0x8] sm:$0xff]
      %v3274 = vld [vmem:[%s6 + $0x10] sm:$0xff]
      %v3275 = vld [vmem:[%s6 + $0x18] sm:$0xff]
      %v3276 = vld [vmem:[%s6 + $0x20] sm:$0xff]
      %v3277 = vld [vmem:[%s6 + $0x28] sm:$0xff]
      %v3278 = vld [vmem:[%s6 + $0x30] sm:$0xff]
      %v3279 = vld [vmem:[%s6 + $0x38] sm:$0xff]
      %v3280 = vld [vmem:[%s6 + $0x40] sm:$0xff]
      %v3281 = vld [vmem:[%s6 + $0x48] sm:$0xff]
      %v3282 = vld [vmem:[%s6 + $0x50] sm:$0xff]
      %v3283 = vld [vmem:[%s6 + $0x58] sm:$0xff]
      %v3284 = vld [vmem:[%s6 + $0x60] sm:$0xff]
      %v3285 = vld [vmem:[%s6 + $0x68] sm:$0xff]
      %v3286 = vld [vmem:[%s6 + $0x70] sm:$0xff]
      %v3287 = vld [vmem:[%s6 + $0x78] sm:$0xff]
      %v3288 = vld [vmem:[%s7] sm:$0x1]
      %v3290 = vperm.slane %v3288, 0
      %3292 = vmatpush.msra.mxu0 %v3287
      %3293 = vmatpush.msra.mxu0 %v3286
      %3294 = vmatpush.msra.mxu0 %v3285
      %3295 = vmatpush.msra.mxu0 %v3284
      %3296 = vmatpush.msra.mxu0 %v3283
      %3297 = vmatpush.msra.mxu0 %v3282
      %3298 = vmatpush.msra.mxu0 %v3281
      %3299 = vmatpush.msra.mxu0 %v3280
      %3300 = vmatpush.msra.mxu0 %v3279
      %3301 = vmatpush.msra.mxu0 %v3278
      %3302 = vmatpush.msra.mxu0 %v3277
      %3303 = vmatpush.msra.mxu0 %v3276
      %3304 = vmatpush.msra.mxu0 %v3275
      %3305 = vmatpush.msra.mxu0 %v3274
      %3306 = vmatpush.msra.mxu0 %v3273
      %3307 = vmatpush.msra.mxu0 %v3272
      %3308 = vmatmul.f32.gmra.mxu0 %v3271
      %v3309 = vpop.f32.mrf.mxu0
      %v3310 = vadd.f32 %v3290, %v3309
      %3311 = vdwg.mxu0
      %v3312 = vmax.f32 %v3310, 0.0
      %v3313 = vld [vmem:[%s8] sm:$0xff]
      %v3314 = vld [vmem:[%s8 + $0x8] sm:$0xff]
      %v3315 = vld [vmem:[%s8 + $0x10] sm:$0xff]
      %v3316 = vld [vmem:[%s8 + $0x18] sm:$0xff]
      %v3317 = vld [vmem:[%s8 + $0x20] sm:$0xff]
      %v3318 = vld [vmem:[%s8 + $0x28] sm:$0xff]
      %v3319 = vld [vmem:[%s8 + $0x30] sm:$0xff]
      %v3320 = vld [vmem:[%s8 + $0x38] sm:$0xff]
      %v3321 = vld [vmem:[%s9] sm:$0x1]
      %v3323 = vperm.slane %v3321, 0
      %v3326 = vsel %vm3270, %v3312, 0
      %3328 = vmatpush.msra.mxu0 0.0
      %3329 = vmatpush.msra.mxu0 0.0
      %3330 = vmatpush.msra.mxu0 0.0
      %3331 = vmatpush.msra.mxu0 0.0
      %3332 = vmatpush.msra.mxu0 0.0
      %3333 = vmatpush.msra.mxu0 0.0
      %3334 = vmatpush.msra.mxu0 0.0
      %3335 = vmatpush.msra.mxu0 0.0
      %3336 = vmatpush.msra.mxu0 %v3320
      %3337 = vmatpush.msra.mxu0 %v3319
      %3338 = vmatpush.msra.mxu0 %v3318
      %3339 = vmatpush.msra.mxu0 %v3317
      %3340 = vmatpush.msra.mxu0 %v3316
      %3341 = vmatpush.msra.mxu0 %v3315
      %3342 = vmatpush.msra.mxu0 %v3314
      %3343 = vmatpush.msra.mxu0 %v3313
      %3344 = vmatmul.f32.gmra.mxu0 %v3326
      %v3345 = vpop.f32.mrf.mxu0
      %v3346 = vadd.f32 %v3323, %v3345
      %3347 = vdwg.mxu0
      %vm3348 = vcmask 15360
      %v3349 = vsel %vm3348, %v3346, 0.0
      %v3350 = vrot.slane %v3349, 4
      %v3351 = vadd.f32 %v3349, %v3350
      %v3352 = vrot.slane %v3351, 2
      %v3353 = vadd.f32 %v3351, %v3352
      %v3354 = vrot.slane %v3353, 1
      %v3355 = vadd.f32 %v3353, %v3354
      %v3356 = vmul.f32 %v3355, 0.125
      %s3357 = scalar_lea.vmem [#allocation3], %s356
      %vm3358 = vcmask 8192
      %3359 = vst.msk [vmem:[%s3357] sm:$0x1] %vm3358, %v3356
    $region46: #{x3d_2stream_forward.1} parent=1 // loop_footer
      %s360 = sadd.s32 1, %s356
    $region47: #{x3d_2stream_forward.1} parent=1 // loop_footer_branch
      %355 = sbr.rel target = $region43
    $region48: #{x3d_2stream_forward.1} parent=1 // loop_exit
      _
    // Predicated region
    $region49: #{x3d_2stream_forward.1} parent=1 // pred_check
      _
    $region50: #{x3d_2stream_forward.1} parent=1 // pred_check_branch
      %3361 = sbr.rel (0) target = $region52
    $region51: #{x3d_2stream_forward.1} parent=1 // pred_region
      %3363 = vsyncadd [#allocation4], 0
      %s3365 = sshll.u32 [#allocation3], 4
      %s3366 = int_to_ptr.vmem [resolvable:$true] %s3365
      %s3367 = sshll.u32 %s10, 4
      %s3368 = int_to_ptr.hbm [resolvable:$true] %s3367
      %3370 = dma.vmem_to_hbm [thread:$0]  %s3366, 32, %s3368, [#allocation4]
    $region52: #{x3d_2stream_forward.1} parent=1 // pred_fallthru
      _
    // Predicated region
    $region53: #{x3d_2stream_forward.1} parent=1 // pred_check
      _
    $region54: #{x3d_2stream_forward.1} parent=1 // pred_check_branch
      %3372 = sbr.rel (0) target = $region56
    $region55: #{x3d_2stream_forward.1} parent=1 // pred_region
      %3374 = dma.done [#allocation4], 32
    $region56: #{x3d_2stream_forward.1} parent=1 // pred_fallthru
      _
    %3375 = vsyncpa [#allocation4], 1

</llo_original>
